<compile_context>
chip_gen: v7x
topology: tpu7x:2x2x1
jax: 0.10.0
libtpu: 0.0.40
codegen_flags: <defaults>
</compile_context>

<pallas_src>
import functools

import jax
import jax.numpy as jnp
import numpy as np
from jax.experimental import pallas as pl
from jax.experimental.pallas import tpu as pltpu

NEG_SLOPE = 0.2        # LeakyReLU slope used by the module
TM_MAX = 1024          # max M-tile rows (multiple of 8); bigger tiles -> better
                       # HBM roofline fraction, still tiny vs. VMEM here.

# Flip to jnp.bfloat16 for ~2x HBM traffic / MXU throughput (accumulation
# stays f32 via preferred_element_type).  Kept f32 here so the strict 2e-3
# check against the f32 XLA reference holds through 8 chained layers.
COMPUTE_DTYPE = jnp.float32


def _round_up(a, b):
    return (a + b - 1) // b * b


def _cdiv(a, b):
    return (a + b - 1) // b


# ----------------------------- Pallas kernels ------------------------------ #
def _conv_kernel_plain(p_ref, w_ref, b_ref, o_ref):
    acc = jnp.dot(p_ref[...], w_ref[...], preferred_element_type=jnp.float32)
    o_ref[...] = acc + b_ref[...]


def _conv_kernel_lrelu(p_ref, w_ref, b_ref, o_ref):
    acc = jnp.dot(p_ref[...], w_ref[...], preferred_element_type=jnp.float32)
    acc = acc + b_ref[...]
    o_ref[...] = jnp.where(acc >= 0, acc, NEG_SLOPE * acc)


def _conv_kernel_lrelu_residual(p_ref, w_ref, b_ref, r_ref, o_ref):
    acc = jnp.dot(p_ref[...], w_ref[...], preferred_element_type=jnp.float32)
    acc = acc + b_ref[...]
    acc = jnp.where(acc >= 0, acc, NEG_SLOPE * acc)
    o_ref[...] = r_ref[...] + acc


# ------------------------------ JAX glue ----------------------------------- #
def _im2col(x_nhwc, k, stride, pad):
    """Extract KxK patches -> (N*Ho*Wo, K*K*Ci), flattened in (ky, kx, ci)
    order to match HWIO weight flattening."""
    n, h, w, c = x_nhwc.shape
    xp = jnp.pad(x_nhwc, ((0, 0), (pad, pad), (pad, pad), (0, 0)))
    hp, wp = h + 2 * pad, w + 2 * pad
    ho = (hp - k) // stride + 1
    wo = (wp - k) // stride + 1
    cols = []
    for ky in range(k):
        for kx in range(k):
            cols.append(
                xp[:, ky:ky + stride * ho:stride, kx:kx + stride * wo:stride, :]
            )
    patches = jnp.concatenate(cols, axis=-1)        # (n, ho, wo, k*k*c)
    return patches.reshape(n * ho * wo, k * k * c), (n, ho, wo)


def _tile_rows(m):
    """Balanced M tiling: same number of grid steps as fixed TM_MAX, minimal
    row padding.  Returns (tm, m_pad, grid)."""
    num_tiles = max(1, _cdiv(m, TM_MAX))
    tm = _round_up(_cdiv(m, num_tiles), 8)
    m_pad = tm * num_tiles
    return tm, m_pad, num_tiles


def conv2d_pallas(x_nhwc, w_hwio, bias, *, stride, pad, lrelu, residual_raw=None):
    """One Conv2d (+ optional LeakyReLU and fused residual add) via a tiled
    Pallas matmul.

    Returns (y_nhwc, y_raw): y_raw is the lane-dense (M_pad, CO_pad) matrix
    kept around so a following residual layer can consume/alias it directly.
    """
    k, _, ci, co = w_hwio.shape
    patches, (n, ho, wo) = _im2col(x_nhwc, k, stride, pad)
    m, kd = patches.shape

    # Lane-dense padding (unmasked loads/stores, aligned MXU dims).
    kd_pad = _round_up(kd, 128)
    co_pad = _round_up(co, 128)
    tm, m_pad, grid = _tile_rows(m)

    patches = jnp.pad(patches, ((0, m_pad - m), (0, kd_pad - kd)))
    w2 = jnp.pad(w_hwio.reshape(kd, co), ((0, kd_pad - kd), (0, co_pad - co)))
    b2 = jnp.pad(bias.reshape(1, co), ((0, 0), (0, co_pad - co)))

    args = [patches.astype(COMPUTE_DTYPE), w2.astype(COMPUTE_DTYPE), b2]
    in_specs = [
        pl.BlockSpec((tm, kd_pad), lambda i: (i, 0)),      # streamed M tiles
        pl.BlockSpec((kd_pad, co_pad), lambda i: (0, 0)),  # resident weights
        pl.BlockSpec((1, co_pad), lambda i: (0, 0)),       # resident bias
    ]
    io_aliases = {}
    if residual_raw is not None:
        assert residual_raw.shape == (m_pad, co_pad), (
            residual_raw.shape, (m_pad, co_pad))
        args.append(residual_raw)
        in_specs.append(pl.BlockSpec((tm, co_pad), lambda i: (i, 0)))
        io_aliases = {3: 0}            # residual buffer is written in place
        kernel = _conv_kernel_lrelu_residual
    elif lrelu:
        kernel = _conv_kernel_lrelu
    else:
        kernel = _conv_kernel_plain

    elem = jnp.dtype(COMPUTE_DTYPE).itemsize
    bytes_accessed = (
        m_pad * kd_pad * elem + kd_pad * co_pad * elem + co_pad * 4
        + m_pad * co_pad * 4 * (2 if residual_raw is not None else 1))

    y_raw = pl.pallas_call(
        kernel,
        out_shape=jax.ShapeDtypeStruct((m_pad, co_pad), jnp.float32),
        grid=(grid,),
        in_specs=in_specs,
        out_specs=pl.BlockSpec((tm, co_pad), lambda i: (i, 0)),
        input_output_aliases=io_aliases,
        compiler_params=pltpu.CompilerParams(
            dimension_semantics=("parallel",),
            vmem_limit_bytes=32 * 1024 * 1024),
        cost_estimate=pl.CostEstimate(
            flops=2 * m_pad * kd_pad * co_pad,
            transcendentals=0,
            bytes_accessed=bytes_accessed),
    )(*args)

    y_nhwc = y_raw[:m, :co].reshape(n, ho, wo, co)
    return y_nhwc, y_raw


# --------------------------- model definition ------------------------------ #
_LAYER_DEFS = lambda hd, out_dim: {          # name -> (kernel, Ci, Co)
    "conv1_1": (5, 3, hd),
    "conv2_1": (5, hd, 2 * hd),
    "conv1_2": (3, 2 * hd, 2 * hd),
    "conv2_2": (3, 2 * hd, 4 * hd),
    "conv1_3": (3, 4 * hd, 4 * hd),
    "conv2_3": (3, 4 * hd, 8 * hd),
    "conv1_4": (3, 8 * hd, 8 * hd),
    "conv2_4": (3, 8 * hd, out_dim),
}


def init_params(key, hidden_dim=4, output_dim=16):
    """Deterministic init mimicking PyTorch Conv2d default (uniform +-1/sqrt(fan_in))."""
    params = {}
    for name, (k, ci, co) in _LAYER_DEFS(hidden_dim, output_dim).items():
        key, kw, kb = jax.random.split(key, 3)
        bound = 1.0 / np.sqrt(ci * k * k)
        w = jax.random.uniform(kw, (k, k, ci, co), jnp.float32, -bound, bound)
        b = jax.random.uniform(kb, (co,), jnp.float32, -bound, bound)
        params[name] = (w, b)
    return params


@functools.partial(jax.jit, static_argnames=())
def conv_down_sample_forward(params, x_nchw):
    x = jnp.transpose(x_nchw, (0, 2, 3, 1))                                   # -> NHWC
    x, _ = conv2d_pallas(x, *params["conv1_1"], stride=1, pad=2, lrelu=True)
    x, xr = conv2d_pallas(x, *params["conv2_1"], stride=5, pad=2, lrelu=True)
    x, _ = conv2d_pallas(x, *params["conv1_2"], stride=1, pad=1, lrelu=True,
                         residual_raw=xr)
    x, xr = conv2d_pallas(x, *params["conv2_2"], stride=3, pad=1, lrelu=True)
    x, _ = conv2d_pallas(x, *params["conv1_3"], stride=1, pad=1, lrelu=True,
                         residual_raw=xr)
    x, xr = conv2d_pallas(x, *params["conv2_3"], stride=2, pad=1, lrelu=True)
    x, _ = conv2d_pallas(x, *params["conv1_4"], stride=1, pad=1, lrelu=True,
                         residual_raw=xr)
    x, _ = conv2d_pallas(x, *params["conv2_4"], stride=1, pad=1, lrelu=False)
    return jnp.transpose(x, (0, 3, 1, 2))                                     # -> NCHW


# ----------------------- pure-JAX reference (for check) -------------------- #
def _conv_ref(x, w, b, stride, pad):
    y = jax.lax.conv_general_dilated(
        x, w, (stride, stride), [(pad, pad), (pad, pad)],
        dimension_numbers=("NHWC", "HWIO", "NHWC"))
    return y + b


def _lrelu(x):
    return jnp.where(x >= 0, x, NEG_SLOPE * x)


def forward_ref(params, x_nchw):
    x = jnp.transpose(x_nchw, (0, 2, 3, 1))
    x = _lrelu(_conv_ref(x, *params["conv1_1"], 1, 2))
    x = _lrelu(_conv_ref(x, *params["conv2_1"], 5, 2))
    x = x + _lrelu(_conv_ref(x, *params["conv1_2"], 1, 1))
    x = _lrelu(_conv_ref(x, *params["conv2_2"], 3, 1))
    x = x + _lrelu(_conv_ref(x, *params["conv1_3"], 1, 1))
    x = _lrelu(_conv_ref(x, *params["conv2_3"], 2, 1))
    x = x + _lrelu(_conv_ref(x, *params["conv1_4"], 1, 1))
    x = _conv_ref(x, *params["conv2_4"], 1, 1)
    return jnp.transpose(x, (0, 3, 1, 2))


# --------------------------------- main ------------------------------------ #
if __name__ == "__main__":
    # Small-but-consistent shapes: batch=2, 3-channel 60x60 input,
    # hidden_dim=4, output_dim=16  ->  output (2, 16, 2, 2).
    batch, input_shape, hidden_dim, output_dim = 2, 60, 4, 16

    key = jax.random.PRNGKey(0)
    k_params, k_x = jax.random.split(key)
    params = init_params(k_params, hidden_dim, output_dim)
    x = jax.random.normal(k_x, (batch, 3, input_shape, input_shape), jnp.float32)

    out = jax.block_until_ready(conv_down_sample_forward(params, x))
    ref = jax.block_until_ready(forward_ref(params, x))

    assert out.shape == (batch, output_dim, 2, 2), out.shape
    np.testing.assert_allclose(np.asarray(out), np.asarray(ref), rtol=2e-3, atol=2e-3)
    print("KERNEL_OK")
</pallas_src>

<mosaic_0001>
module attributes {stable_mosaic.version = 11 : i64} {
  func.func @_conv_kernel_lrelu(%arg0: i32, %arg1: memref<904x128xf32, #tpu.memory_space<vmem>>, %arg2: memref<128x128xf32, #tpu.memory_space<vmem>>, %arg3: memref<1x128xf32, #tpu.memory_space<vmem>>, %arg4: memref<904x128xf32, #tpu.memory_space<vmem>>) attributes {dimension_semantics = [#tpu.dimension_semantics<parallel>], iteration_bounds = array<i64: 8>, scalar_prefetch = 0 : i64, scratch_operands = 0 : i64, tpu.core_type = #tpu.core_type<tc>, window_params = [{transform_indices = @transform_0, window_bounds = array<i64: 904, 128>}, {pipeline_mode = #tpu.pipeline_mode<synchronous>, transform_indices = @transform_1, window_bounds = array<i64: 128, 128>}, {pipeline_mode = #tpu.pipeline_mode<synchronous>, transform_indices = @transform_2, window_bounds = array<i64: 1, 128>}, {transform_indices = @transform_3, window_bounds = array<i64: 904, 128>}]} {
    %c0 = arith.constant 0 : index
    %c0_0 = arith.constant 0 : index
    %0 = vector.load %arg1[%c0, %c0_0] : memref<904x128xf32, #tpu.memory_space<vmem>>, vector<904x128xf32>
    %c0_1 = arith.constant 0 : index
    %c0_2 = arith.constant 0 : index
    %1 = vector.load %arg2[%c0_1, %c0_2] : memref<128x128xf32, #tpu.memory_space<vmem>>, vector<128x128xf32>
    %cst = arith.constant dense<0.000000e+00> : vector<904x128xf32>
    %2 = tpu.matmul %0, %1, %cst {dimension_numbers = #tpu.dot_dimension_numbers<[1], [0], [0], [1], [0, 0, 1, 1], [], []>} : vector<904x128xf32>, vector<128x128xf32>, vector<904x128xf32> -> vector<904x128xf32>
    %c0_3 = arith.constant 0 : index
    %c0_4 = arith.constant 0 : index
    %3 = vector.load %arg3[%c0_3, %c0_4] : memref<1x128xf32, #tpu.memory_space<vmem>>, vector<1x128xf32>
    %4 = vector.broadcast %3 : vector<1x128xf32> to vector<904x128xf32>
    %5 = arith.addf %2, %4 : vector<904x128xf32>
    %cst_5 = arith.constant 0.000000e+00 : f32
    %6 = vector.broadcast %cst_5 : f32 to vector<904x128xf32>
    %7 = arith.cmpf oge, %5, %6 : vector<904x128xf32>
    %cst_6 = arith.constant 2.000000e-01 : f32
    %8 = vector.broadcast %cst_6 : f32 to vector<904x128xf32>
    %9 = arith.mulf %8, %5 : vector<904x128xf32>
    %10 = arith.select %7, %5, %9 : vector<904x128xi1>, vector<904x128xf32>
    %c0_7 = arith.constant 0 : index
    %c0_8 = arith.constant 0 : index
    %11 = vector.load %arg4[%c0_7, %c0_8] : memref<904x128xf32, #tpu.memory_space<vmem>>, vector<904x128xf32>
    tpu.vector_store %arg4[%c0_7, %c0_8], %10 {strides = array<i32>} : memref<904x128xf32, #tpu.memory_space<vmem>>, vector<904x128xf32>,
    return
  }
  func.func @transform_0(%arg0: i32) -> (i32, i32) {
    %c0_i32 = arith.constant 0 : i32
    %c0_i32_0 = arith.constant 0 : i32
    return %arg0, %c0_i32 : i32, i32
  }
  func.func @transform_1(%arg0: i32) -> (i32, i32) {
    %c0_i32 = arith.constant 0 : i32
    %c0_i32_0 = arith.constant 0 : i32
    %c0_i32_1 = arith.constant 0 : i32
    return %c0_i32, %c0_i32_0 : i32, i32
  }
  func.func @transform_2(%arg0: i32) -> (i32, i32) {
    %c0_i32 = arith.constant 0 : i32
    %c0_i32_0 = arith.constant 0 : i32
    %c0_i32_1 = arith.constant 0 : i32
    return %c0_i32, %c0_i32_0 : i32, i32
  }
  func.func @transform_3(%arg0: i32) -> (i32, i32) {
    %c0_i32 = arith.constant 0 : i32
    %c0_i32_0 = arith.constant 0 : i32
    return %arg0, %c0_i32 : i32, i32
  }
}

module attributes {stable_mosaic.version = 11 : i64} {
  func.func @_conv_kernel_lrelu(%arg0: i32, %arg1: memref<288x128xf32, #tpu.memory_space<vmem>>, %arg2: memref<128x128xf32, #tpu.memory_space<vmem>>, %arg3: memref<1x128xf32, #tpu.memory_space<vmem>>, %arg4: memref<288x128xf32, #tpu.memory_space<vmem>>) attributes {dimension_semantics = [#tpu.dimension_semantics<parallel>], iteration_bounds = array<i64: 1>, scalar_prefetch = 0 : i64, scratch_operands = 0 : i64, tpu.core_type = #tpu.core_type<tc>, window_params = [{transform_indices = @transform_0, window_bounds = array<i64: 288, 128>}, {pipeline_mode = #tpu.pipeline_mode<synchronous>, transform_indices = @transform_1, window_bounds = array<i64: 128, 128>}, {pipeline_mode = #tpu.pipeline_mode<synchronous>, transform_indices = @transform_2, window_bounds = array<i64: 1, 128>}, {transform_indices = @transform_3, window_bounds = array<i64: 288, 128>}]} {
    %c0 = arith.constant 0 : index
    %c0_0 = arith.constant 0 : index
    %0 = vector.load %arg1[%c0, %c0_0] : memref<288x128xf32, #tpu.memory_space<vmem>>, vector<288x128xf32>
    %c0_1 = arith.constant 0 : index
    %c0_2 = arith.constant 0 : index
    %1 = vector.load %arg2[%c0_1, %c0_2] : memref<128x128xf32, #tpu.memory_space<vmem>>, vector<128x128xf32>
    %cst = arith.constant dense<0.000000e+00> : vector<288x128xf32>
    %2 = tpu.matmul %0, %1, %cst {dimension_numbers = #tpu.dot_dimension_numbers<[1], [0], [0], [1], [0, 0, 1, 1], [], []>} : vector<288x128xf32>, vector<128x128xf32>, vector<288x128xf32> -> vector<288x128xf32>
    %c0_3 = arith.constant 0 : index
    %c0_4 = arith.constant 0 : index
    %3 = vector.load %arg3[%c0_3, %c0_4] : memref<1x128xf32, #tpu.memory_space<vmem>>, vector<1x128xf32>
    %4 = vector.broadcast %3 : vector<1x128xf32> to vector<288x128xf32>
    %5 = arith.addf %2, %4 : vector<288x128xf32>
    %cst_5 = arith.constant 0.000000e+00 : f32
    %6 = vector.broadcast %cst_5 : f32 to vector<288x128xf32>
    %7 = arith.cmpf oge, %5, %6 : vector<288x128xf32>
    %cst_6 = arith.constant 2.000000e-01 : f32
    %8 = vector.broadcast %cst_6 : f32 to vector<288x128xf32>
    %9 = arith.mulf %8, %5 : vector<288x128xf32>
    %10 = arith.select %7, %5, %9 : vector<288x128xi1>, vector<288x128xf32>
    %c0_7 = arith.constant 0 : index
    %c0_8 = arith.constant 0 : index
    %11 = vector.load %arg4[%c0_7, %c0_8] : memref<288x128xf32, #tpu.memory_space<vmem>>, vector<288x128xf32>
    tpu.vector_store %arg4[%c0_7, %c0_8], %10 {strides = array<i32>} : memref<288x128xf32, #tpu.memory_space<vmem>>, vector<288x128xf32>,
    return
  }
  func.func @transform_0(%arg0: i32) -> (i32, i32) {
    %c0_i32 = arith.constant 0 : i32
    %c0_i32_0 = arith.constant 0 : i32
    return %arg0, %c0_i32 : i32, i32
  }
  func.func @transform_1(%arg0: i32) -> (i32, i32) {
    %c0_i32 = arith.constant 0 : i32
    %c0_i32_0 = arith.constant 0 : i32
    %c0_i32_1 = arith.constant 0 : i32
    return %c0_i32, %c0_i32_0 : i32, i32
  }
  func.func @transform_2(%arg0: i32) -> (i32, i32) {
    %c0_i32 = arith.constant 0 : i32
    %c0_i32_0 = arith.constant 0 : i32
    %c0_i32_1 = arith.constant 0 : i32
    return %c0_i32, %c0_i32_0 : i32, i32
  }
  func.func @transform_3(%arg0: i32) -> (i32, i32) {
    %c0_i32 = arith.constant 0 : i32
    %c0_i32_0 = arith.constant 0 : i32
    return %arg0, %c0_i32 : i32, i32
  }
}

module attributes {stable_mosaic.version = 11 : i64} {
  func.func @_conv_kernel_lrelu_residual(%arg0: i32, %arg1: memref<288x128xf32, #tpu.memory_space<vmem>>, %arg2: memref<128x128xf32, #tpu.memory_space<vmem>>, %arg3: memref<1x128xf32, #tpu.memory_space<vmem>>, %arg4: memref<288x128xf32, #tpu.memory_space<vmem>>, %arg5: memref<288x128xf32, #tpu.memory_space<vmem>>) attributes {dimension_semantics = [#tpu.dimension_semantics<parallel>], iteration_bounds = array<i64: 1>, scalar_prefetch = 0 : i64, scratch_operands = 0 : i64, tpu.core_type = #tpu.core_type<tc>, window_params = [{transform_indices = @transform_0, window_bounds = array<i64: 288, 128>}, {pipeline_mode = #tpu.pipeline_mode<synchronous>, transform_indices = @transform_1, window_bounds = array<i64: 128, 128>}, {pipeline_mode = #tpu.pipeline_mode<synchronous>, transform_indices = @transform_2, window_bounds = array<i64: 1, 128>}, {transform_indices = @transform_3, window_bounds = array<i64: 288, 128>}, {transform_indices = @transform_4, window_bounds = array<i64: 288, 128>}]} {
    %c0 = arith.constant 0 : index
    %c0_0 = arith.constant 0 : index
    %0 = vector.load %arg1[%c0, %c0_0] : memref<288x128xf32, #tpu.memory_space<vmem>>, vector<288x128xf32>
    %c0_1 = arith.constant 0 : index
    %c0_2 = arith.constant 0 : index
    %1 = vector.load %arg2[%c0_1, %c0_2] : memref<128x128xf32, #tpu.memory_space<vmem>>, vector<128x128xf32>
    %cst = arith.constant dense<0.000000e+00> : vector<288x128xf32>
    %2 = tpu.matmul %0, %1, %cst {dimension_numbers = #tpu.dot_dimension_numbers<[1], [0], [0], [1], [0, 0, 1, 1], [], []>} : vector<288x128xf32>, vector<128x128xf32>, vector<288x128xf32> -> vector<288x128xf32>
    %c0_3 = arith.constant 0 : index
    %c0_4 = arith.constant 0 : index
    %3 = vector.load %arg3[%c0_3, %c0_4] : memref<1x128xf32, #tpu.memory_space<vmem>>, vector<1x128xf32>
    %4 = vector.broadcast %3 : vector<1x128xf32> to vector<288x128xf32>
    %5 = arith.addf %2, %4 : vector<288x128xf32>
    %cst_5 = arith.constant 0.000000e+00 : f32
    %6 = vector.broadcast %cst_5 : f32 to vector<288x128xf32>
    %7 = arith.cmpf oge, %5, %6 : vector<288x128xf32>
    %cst_6 = arith.constant 2.000000e-01 : f32
    %8 = vector.broadcast %cst_6 : f32 to vector<288x128xf32>
    %9 = arith.mulf %8, %5 : vector<288x128xf32>
    %10 = arith.select %7, %5, %9 : vector<288x128xi1>, vector<288x128xf32>
    %c0_7 = arith.constant 0 : index
    %c0_8 = arith.constant 0 : index
    %11 = vector.load %arg4[%c0_7, %c0_8] : memref<288x128xf32, #tpu.memory_space<vmem>>, vector<288x128xf32>
    %12 = arith.addf %11, %10 : vector<288x128xf32>
    %c0_9 = arith.constant 0 : index
    %c0_10 = arith.constant 0 : index
    %13 = vector.load %arg5[%c0_9, %c0_10] : memref<288x128xf32, #tpu.memory_space<vmem>>, vector<288x128xf32>
    tpu.vector_store %arg5[%c0_9, %c0_10], %12 {strides = array<i32>} : memref<288x128xf32, #tpu.memory_space<vmem>>, vector<288x128xf32>,
    return
  }
  func.func @transform_0(%arg0: i32) -> (i32, i32) {
    %c0_i32 = arith.constant 0 : i32
    %c0_i32_0 = arith.constant 0 : i32
    return %arg0, %c0_i32 : i32, i32
  }
  func.func @transform_1(%arg0: i32) -> (i32, i32) {
    %c0_i32 = arith.constant 0 : i32
    %c0_i32_0 = arith.constant 0 : i32
    %c0_i32_1 = arith.constant 0 : i32
    return %c0_i32, %c0_i32_0 : i32, i32
  }
  func.func @transform_2(%arg0: i32) -> (i32, i32) {
    %c0_i32 = arith.constant 0 : i32
    %c0_i32_0 = arith.constant 0 : i32
    %c0_i32_1 = arith.constant 0 : i32
    return %c0_i32, %c0_i32_0 : i32, i32
  }
  func.func @transform_3(%arg0: i32) -> (i32, i32) {
    %c0_i32 = arith.constant 0 : i32
    %c0_i32_0 = arith.constant 0 : i32
    return %arg0, %c0_i32 : i32, i32
  }
  func.func @transform_4(%arg0: i32) -> (i32, i32) {
    %c0_i32 = arith.constant 0 : i32
    %c0_i32_0 = arith.constant 0 : i32
    return %arg0, %c0_i32 : i32, i32
  }
}

module attributes {stable_mosaic.version = 11 : i64} {
  func.func @_conv_kernel_lrelu(%arg0: i32, %arg1: memref<32x128xf32, #tpu.memory_space<vmem>>, %arg2: memref<128x128xf32, #tpu.memory_space<vmem>>, %arg3: memref<1x128xf32, #tpu.memory_space<vmem>>, %arg4: memref<32x128xf32, #tpu.memory_space<vmem>>) attributes {dimension_semantics = [#tpu.dimension_semantics<parallel>], iteration_bounds = array<i64: 1>, scalar_prefetch = 0 : i64, scratch_operands = 0 : i64, tpu.core_type = #tpu.core_type<tc>, window_params = [{transform_indices = @transform_0, window_bounds = array<i64: 32, 128>}, {pipeline_mode = #tpu.pipeline_mode<synchronous>, transform_indices = @transform_1, window_bounds = array<i64: 128, 128>}, {pipeline_mode = #tpu.pipeline_mode<synchronous>, transform_indices = @transform_2, window_bounds = array<i64: 1, 128>}, {transform_indices = @transform_3, window_bounds = array<i64: 32, 128>}]} {
    %c0 = arith.constant 0 : index
    %c0_0 = arith.constant 0 : index
    %0 = vector.load %arg1[%c0, %c0_0] : memref<32x128xf32, #tpu.memory_space<vmem>>, vector<32x128xf32>
    %c0_1 = arith.constant 0 : index
    %c0_2 = arith.constant 0 : index
    %1 = vector.load %arg2[%c0_1, %c0_2] : memref<128x128xf32, #tpu.memory_space<vmem>>, vector<128x128xf32>
    %cst = arith.constant dense<0.000000e+00> : vector<32x128xf32>
    %2 = tpu.matmul %0, %1, %cst {dimension_numbers = #tpu.dot_dimension_numbers<[1], [0], [0], [1], [0, 0, 1, 1], [], []>} : vector<32x128xf32>, vector<128x128xf32>, vector<32x128xf32> -> vector<32x128xf32>
    %c0_3 = arith.constant 0 : index
    %c0_4 = arith.constant 0 : index
    %3 = vector.load %arg3[%c0_3, %c0_4] : memref<1x128xf32, #tpu.memory_space<vmem>>, vector<1x128xf32>
    %4 = vector.broadcast %3 : vector<1x128xf32> to vector<32x128xf32>
    %5 = arith.addf %2, %4 : vector<32x128xf32>
    %cst_5 = arith.constant 0.000000e+00 : f32
    %6 = vector.broadcast %cst_5 : f32 to vector<32x128xf32>
    %7 = arith.cmpf oge, %5, %6 : vector<32x128xf32>
    %cst_6 = arith.constant 2.000000e-01 : f32
    %8 = vector.broadcast %cst_6 : f32 to vector<32x128xf32>
    %9 = arith.mulf %8, %5 : vector<32x128xf32>
    %10 = arith.select %7, %5, %9 : vector<32x128xi1>, vector<32x128xf32>
    %c0_7 = arith.constant 0 : index
    %c0_8 = arith.constant 0 : index
    %11 = vector.load %arg4[%c0_7, %c0_8] : memref<32x128xf32, #tpu.memory_space<vmem>>, vector<32x128xf32>
    tpu.vector_store %arg4[%c0_7, %c0_8], %10 {strides = array<i32>} : memref<32x128xf32, #tpu.memory_space<vmem>>, vector<32x128xf32>,
    return
  }
  func.func @transform_0(%arg0: i32) -> (i32, i32) {
    %c0_i32 = arith.constant 0 : i32
    %c0_i32_0 = arith.constant 0 : i32
    return %arg0, %c0_i32 : i32, i32
  }
  func.func @transform_1(%arg0: i32) -> (i32, i32) {
    %c0_i32 = arith.constant 0 : i32
    %c0_i32_0 = arith.constant 0 : i32
    %c0_i32_1 = arith.constant 0 : i32
    return %c0_i32, %c0_i32_0 : i32, i32
  }
  func.func @transform_2(%arg0: i32) -> (i32, i32) {
    %c0_i32 = arith.constant 0 : i32
    %c0_i32_0 = arith.constant 0 : i32
    %c0_i32_1 = arith.constant 0 : i32
    return %c0_i32, %c0_i32_0 : i32, i32
  }
  func.func @transform_3(%arg0: i32) -> (i32, i32) {
    %c0_i32 = arith.constant 0 : i32
    %c0_i32_0 = arith.constant 0 : i32
    return %arg0, %c0_i32 : i32, i32
  }
}

module attributes {stable_mosaic.version = 11 : i64} {
  func.func @_conv_kernel_lrelu_residual(%arg0: i32, %arg1: memref<32x256xf32, #tpu.memory_space<vmem>>, %arg2: memref<256x128xf32, #tpu.memory_space<vmem>>, %arg3: memref<1x128xf32, #tpu.memory_space<vmem>>, %arg4: memref<32x128xf32, #tpu.memory_space<vmem>>, %arg5: memref<32x128xf32, #tpu.memory_space<vmem>>) attributes {dimension_semantics = [#tpu.dimension_semantics<parallel>], iteration_bounds = array<i64: 1>, scalar_prefetch = 0 : i64, scratch_operands = 0 : i64, tpu.core_type = #tpu.core_type<tc>, window_params = [{transform_indices = @transform_0, window_bounds = array<i64: 32, 256>}, {pipeline_mode = #tpu.pipeline_mode<synchronous>, transform_indices = @transform_1, window_bounds = array<i64: 256, 128>}, {pipeline_mode = #tpu.pipeline_mode<synchronous>, transform_indices = @transform_2, window_bounds = array<i64: 1, 128>}, {transform_indices = @transform_3, window_bounds = array<i64: 32, 128>}, {transform_indices = @transform_4, window_bounds = array<i64: 32, 128>}]} {
    %c0 = arith.constant 0 : index
    %c0_0 = arith.constant 0 : index
    %0 = vector.load %arg1[%c0, %c0_0] : memref<32x256xf32, #tpu.memory_space<vmem>>, vector<32x256xf32>
    %c0_1 = arith.constant 0 : index
    %c0_2 = arith.constant 0 : index
    %1 = vector.load %arg2[%c0_1, %c0_2] : memref<256x128xf32, #tpu.memory_space<vmem>>, vector<256x128xf32>
    %cst = arith.constant dense<0.000000e+00> : vector<32x128xf32>
    %2 = tpu.matmul %0, %1, %cst {dimension_numbers = #tpu.dot_dimension_numbers<[1], [0], [0], [1], [0, 0, 1, 1], [], []>} : vector<32x256xf32>, vector<256x128xf32>, vector<32x128xf32> -> vector<32x128xf32>
    %c0_3 = arith.constant 0 : index
    %c0_4 = arith.constant 0 : index
    %3 = vector.load %arg3[%c0_3, %c0_4] : memref<1x128xf32, #tpu.memory_space<vmem>>, vector<1x128xf32>
    %4 = vector.broadcast %3 : vector<1x128xf32> to vector<32x128xf32>
    %5 = arith.addf %2, %4 : vector<32x128xf32>
    %cst_5 = arith.constant 0.000000e+00 : f32
    %6 = vector.broadcast %cst_5 : f32 to vector<32x128xf32>
    %7 = arith.cmpf oge, %5, %6 : vector<32x128xf32>
    %cst_6 = arith.constant 2.000000e-01 : f32
    %8 = vector.broadcast %cst_6 : f32 to vector<32x128xf32>
    %9 = arith.mulf %8, %5 : vector<32x128xf32>
    %10 = arith.select %7, %5, %9 : vector<32x128xi1>, vector<32x128xf32>
    %c0_7 = arith.constant 0 : index
    %c0_8 = arith.constant 0 : index
    %11 = vector.load %arg4[%c0_7, %c0_8] : memref<32x128xf32, #tpu.memory_space<vmem>>, vector<32x128xf32>
    %12 = arith.addf %11, %10 : vector<32x128xf32>
    %c0_9 = arith.constant 0 : index
    %c0_10 = arith.constant 0 : index
    %13 = vector.load %arg5[%c0_9, %c0_10] : memref<32x128xf32, #tpu.memory_space<vmem>>, vector<32x128xf32>
    tpu.vector_store %arg5[%c0_9, %c0_10], %12 {strides = array<i32>} : memref<32x128xf32, #tpu.memory_space<vmem>>, vector<32x128xf32>,
    return
  }
  func.func @transform_0(%arg0: i32) -> (i32, i32) {
    %c0_i32 = arith.constant 0 : i32
    %c0_i32_0 = arith.constant 0 : i32
    return %arg0, %c0_i32 : i32, i32
  }
  func.func @transform_1(%arg0: i32) -> (i32, i32) {
    %c0_i32 = arith.constant 0 : i32
    %c0_i32_0 = arith.constant 0 : i32
    %c0_i32_1 = arith.constant 0 : i32
    return %c0_i32, %c0_i32_0 : i32, i32
  }
  func.func @transform_2(%arg0: i32) -> (i32, i32) {
    %c0_i32 = arith.constant 0 : i32
    %c0_i32_0 = arith.constant 0 : i32
    %c0_i32_1 = arith.constant 0 : i32
    return %c0_i32, %c0_i32_0 : i32, i32
  }
  func.func @transform_3(%arg0: i32) -> (i32, i32) {
    %c0_i32 = arith.constant 0 : i32
    %c0_i32_0 = arith.constant 0 : i32
    return %arg0, %c0_i32 : i32, i32
  }
  func.func @transform_4(%arg0: i32) -> (i32, i32) {
    %c0_i32 = arith.constant 0 : i32
    %c0_i32_0 = arith.constant 0 : i32
    return %arg0, %c0_i32 : i32, i32
  }
}

module attributes {stable_mosaic.version = 11 : i64} {
  func.func @_conv_kernel_lrelu(%arg0: i32, %arg1: memref<8x256xf32, #tpu.memory_space<vmem>>, %arg2: memref<256x128xf32, #tpu.memory_space<vmem>>, %arg3: memref<1x128xf32, #tpu.memory_space<vmem>>, %arg4: memref<8x128xf32, #tpu.memory_space<vmem>>) attributes {dimension_semantics = [#tpu.dimension_semantics<parallel>], iteration_bounds = array<i64: 1>, scalar_prefetch = 0 : i64, scratch_operands = 0 : i64, tpu.core_type = #tpu.core_type<tc>, window_params = [{transform_indices = @transform_0, window_bounds = array<i64: 8, 256>}, {pipeline_mode = #tpu.pipeline_mode<synchronous>, transform_indices = @transform_1, window_bounds = array<i64: 256, 128>}, {pipeline_mode = #tpu.pipeline_mode<synchronous>, transform_indices = @transform_2, window_bounds = array<i64: 1, 128>}, {transform_indices = @transform_3, window_bounds = array<i64: 8, 128>}]} {
    %c0 = arith.constant 0 : index
    %c0_0 = arith.constant 0 : index
    %0 = vector.load %arg1[%c0, %c0_0] : memref<8x256xf32, #tpu.memory_space<vmem>>, vector<8x256xf32>
    %c0_1 = arith.constant 0 : index
    %c0_2 = arith.constant 0 : index
    %1 = vector.load %arg2[%c0_1, %c0_2] : memref<256x128xf32, #tpu.memory_space<vmem>>, vector<256x128xf32>
    %cst = arith.constant dense<0.000000e+00> : vector<8x128xf32>
    %2 = tpu.matmul %0, %1, %cst {dimension_numbers = #tpu.dot_dimension_numbers<[1], [0], [0], [1], [0, 0, 1, 1], [], []>} : vector<8x256xf32>, vector<256x128xf32>, vector<8x128xf32> -> vector<8x128xf32>
    %c0_3 = arith.constant 0 : index
    %c0_4 = arith.constant 0 : index
    %3 = vector.load %arg3[%c0_3, %c0_4] : memref<1x128xf32, #tpu.memory_space<vmem>>, vector<1x128xf32>
    %4 = vector.broadcast %3 : vector<1x128xf32> to vector<8x128xf32>
    %5 = arith.addf %2, %4 : vector<8x128xf32>
    %cst_5 = arith.constant 0.000000e+00 : f32
    %6 = vector.broadcast %cst_5 : f32 to vector<8x128xf32>
    %7 = arith.cmpf oge, %5, %6 : vector<8x128xf32>
    %cst_6 = arith.constant 2.000000e-01 : f32
    %8 = vector.broadcast %cst_6 : f32 to vector<8x128xf32>
    %9 = arith.mulf %8, %5 : vector<8x128xf32>
    %10 = arith.select %7, %5, %9 : vector<8x128xi1>, vector<8x128xf32>
    %c0_7 = arith.constant 0 : index
    %c0_8 = arith.constant 0 : index
    %11 = vector.load %arg4[%c0_7, %c0_8] : memref<8x128xf32, #tpu.memory_space<vmem>>, vector<8x128xf32>
    tpu.vector_store %arg4[%c0_7, %c0_8], %10 {strides = array<i32>} : memref<8x128xf32, #tpu.memory_space<vmem>>, vector<8x128xf32>,
    return
  }
  func.func @transform_0(%arg0: i32) -> (i32, i32) {
    %c0_i32 = arith.constant 0 : i32
    %c0_i32_0 = arith.constant 0 : i32
    return %arg0, %c0_i32 : i32, i32
  }
  func.func @transform_1(%arg0: i32) -> (i32, i32) {
    %c0_i32 = arith.constant 0 : i32
    %c0_i32_0 = arith.constant 0 : i32
    %c0_i32_1 = arith.constant 0 : i32
    return %c0_i32, %c0_i32_0 : i32, i32
  }
  func.func @transform_2(%arg0: i32) -> (i32, i32) {
    %c0_i32 = arith.constant 0 : i32
    %c0_i32_0 = arith.constant 0 : i32
    %c0_i32_1 = arith.constant 0 : i32
    return %c0_i32, %c0_i32_0 : i32, i32
  }
  func.func @transform_3(%arg0: i32) -> (i32, i32) {
    %c0_i32 = arith.constant 0 : i32
    %c0_i32_0 = arith.constant 0 : i32
    return %arg0, %c0_i32 : i32, i32
  }
}

module attributes {stable_mosaic.version = 11 : i64} {
  func.func @_conv_kernel_lrelu_residual(%arg0: i32, %arg1: memref<8x384xf32, #tpu.memory_space<vmem>>, %arg2: memref<384x128xf32, #tpu.memory_space<vmem>>, %arg3: memref<1x128xf32, #tpu.memory_space<vmem>>, %arg4: memref<8x128xf32, #tpu.memory_space<vmem>>, %arg5: memref<8x128xf32, #tpu.memory_space<vmem>>) attributes {dimension_semantics = [#tpu.dimension_semantics<parallel>], iteration_bounds = array<i64: 1>, scalar_prefetch = 0 : i64, scratch_operands = 0 : i64, tpu.core_type = #tpu.core_type<tc>, window_params = [{transform_indices = @transform_0, window_bounds = array<i64: 8, 384>}, {pipeline_mode = #tpu.pipeline_mode<synchronous>, transform_indices = @transform_1, window_bounds = array<i64: 384, 128>}, {pipeline_mode = #tpu.pipeline_mode<synchronous>, transform_indices = @transform_2, window_bounds = array<i64: 1, 128>}, {transform_indices = @transform_3, window_bounds = array<i64: 8, 128>}, {transform_indices = @transform_4, window_bounds = array<i64: 8, 128>}]} {
    %c0 = arith.constant 0 : index
    %c0_0 = arith.constant 0 : index
    %0 = vector.load %arg1[%c0, %c0_0] : memref<8x384xf32, #tpu.memory_space<vmem>>, vector<8x384xf32>
    %c0_1 = arith.constant 0 : index
    %c0_2 = arith.constant 0 : index
    %1 = vector.load %arg2[%c0_1, %c0_2] : memref<384x128xf32, #tpu.memory_space<vmem>>, vector<384x128xf32>
    %cst = arith.constant dense<0.000000e+00> : vector<8x128xf32>
    %2 = tpu.matmul %0, %1, %cst {dimension_numbers = #tpu.dot_dimension_numbers<[1], [0], [0], [1], [0, 0, 1, 1], [], []>} : vector<8x384xf32>, vector<384x128xf32>, vector<8x128xf32> -> vector<8x128xf32>
    %c0_3 = arith.constant 0 : index
    %c0_4 = arith.constant 0 : index
    %3 = vector.load %arg3[%c0_3, %c0_4] : memref<1x128xf32, #tpu.memory_space<vmem>>, vector<1x128xf32>
    %4 = vector.broadcast %3 : vector<1x128xf32> to vector<8x128xf32>
    %5 = arith.addf %2, %4 : vector<8x128xf32>
    %cst_5 = arith.constant 0.000000e+00 : f32
    %6 = vector.broadcast %cst_5 : f32 to vector<8x128xf32>
    %7 = arith.cmpf oge, %5, %6 : vector<8x128xf32>
    %cst_6 = arith.constant 2.000000e-01 : f32
    %8 = vector.broadcast %cst_6 : f32 to vector<8x128xf32>
    %9 = arith.mulf %8, %5 : vector<8x128xf32>
    %10 = arith.select %7, %5, %9 : vector<8x128xi1>, vector<8x128xf32>
    %c0_7 = arith.constant 0 : index
    %c0_8 = arith.constant 0 : index
    %11 = vector.load %arg4[%c0_7, %c0_8] : memref<8x128xf32, #tpu.memory_space<vmem>>, vector<8x128xf32>
    %12 = arith.addf %11, %10 : vector<8x128xf32>
    %c0_9 = arith.constant 0 : index
    %c0_10 = arith.constant 0 : index
    %13 = vector.load %arg5[%c0_9, %c0_10] : memref<8x128xf32, #tpu.memory_space<vmem>>, vector<8x128xf32>
    tpu.vector_store %arg5[%c0_9, %c0_10], %12 {strides = array<i32>} : memref<8x128xf32, #tpu.memory_space<vmem>>, vector<8x128xf32>,
    return
  }
  func.func @transform_0(%arg0: i32) -> (i32, i32) {
    %c0_i32 = arith.constant 0 : i32
    %c0_i32_0 = arith.constant 0 : i32
    return %arg0, %c0_i32 : i32, i32
  }
  func.func @transform_1(%arg0: i32) -> (i32, i32) {
    %c0_i32 = arith.constant 0 : i32
    %c0_i32_0 = arith.constant 0 : i32
    %c0_i32_1 = arith.constant 0 : i32
    return %c0_i32, %c0_i32_0 : i32, i32
  }
  func.func @transform_2(%arg0: i32) -> (i32, i32) {
    %c0_i32 = arith.constant 0 : i32
    %c0_i32_0 = arith.constant 0 : i32
    %c0_i32_1 = arith.constant 0 : i32
    return %c0_i32, %c0_i32_0 : i32, i32
  }
  func.func @transform_3(%arg0: i32) -> (i32, i32) {
    %c0_i32 = arith.constant 0 : i32
    %c0_i32_0 = arith.constant 0 : i32
    return %arg0, %c0_i32 : i32, i32
  }
  func.func @transform_4(%arg0: i32) -> (i32, i32) {
    %c0_i32 = arith.constant 0 : i32
    %c0_i32_0 = arith.constant 0 : i32
    return %arg0, %c0_i32 : i32, i32
  }
}

module attributes {stable_mosaic.version = 11 : i64} {
  func.func @_conv_kernel_plain(%arg0: i32, %arg1: memref<8x384xf32, #tpu.memory_space<vmem>>, %arg2: memref<384x128xf32, #tpu.memory_space<vmem>>, %arg3: memref<1x128xf32, #tpu.memory_space<vmem>>, %arg4: memref<8x128xf32, #tpu.memory_space<vmem>>) attributes {dimension_semantics = [#tpu.dimension_semantics<parallel>], iteration_bounds = array<i64: 1>, scalar_prefetch = 0 : i64, scratch_operands = 0 : i64, tpu.core_type = #tpu.core_type<tc>, window_params = [{transform_indices = @transform_0, window_bounds = array<i64: 8, 384>}, {pipeline_mode = #tpu.pipeline_mode<synchronous>, transform_indices = @transform_1, window_bounds = array<i64: 384, 128>}, {pipeline_mode = #tpu.pipeline_mode<synchronous>, transform_indices = @transform_2, window_bounds = array<i64: 1, 128>}, {transform_indices = @transform_3, window_bounds = array<i64: 8, 128>}]} {
    %c0 = arith.constant 0 : index
    %c0_0 = arith.constant 0 : index
    %0 = vector.load %arg1[%c0, %c0_0] : memref<8x384xf32, #tpu.memory_space<vmem>>, vector<8x384xf32>
    %c0_1 = arith.constant 0 : index
    %c0_2 = arith.constant 0 : index
    %1 = vector.load %arg2[%c0_1, %c0_2] : memref<384x128xf32, #tpu.memory_space<vmem>>, vector<384x128xf32>
    %cst = arith.constant dense<0.000000e+00> : vector<8x128xf32>
    %2 = tpu.matmul %0, %1, %cst {dimension_numbers = #tpu.dot_dimension_numbers<[1], [0], [0], [1], [0, 0, 1, 1], [], []>} : vector<8x384xf32>, vector<384x128xf32>, vector<8x128xf32> -> vector<8x128xf32>
    %c0_3 = arith.constant 0 : index
    %c0_4 = arith.constant 0 : index
    %3 = vector.load %arg3[%c0_3, %c0_4] : memref<1x128xf32, #tpu.memory_space<vmem>>, vector<1x128xf32>
    %4 = vector.broadcast %3 : vector<1x128xf32> to vector<8x128xf32>
    %5 = arith.addf %2, %4 : vector<8x128xf32>
    %c0_5 = arith.constant 0 : index
    %c0_6 = arith.constant 0 : index
    %6 = vector.load %arg4[%c0_5, %c0_6] : memref<8x128xf32, #tpu.memory_space<vmem>>, vector<8x128xf32>
    tpu.vector_store %arg4[%c0_5, %c0_6], %5 {strides = array<i32>} : memref<8x128xf32, #tpu.memory_space<vmem>>, vector<8x128xf32>,
    return
  }
  func.func @transform_0(%arg0: i32) -> (i32, i32) {
    %c0_i32 = arith.constant 0 : i32
    %c0_i32_0 = arith.constant 0 : i32
    return %arg0, %c0_i32 : i32, i32
  }
  func.func @transform_1(%arg0: i32) -> (i32, i32) {
    %c0_i32 = arith.constant 0 : i32
    %c0_i32_0 = arith.constant 0 : i32
    %c0_i32_1 = arith.constant 0 : i32
    return %c0_i32, %c0_i32_0 : i32, i32
  }
  func.func @transform_2(%arg0: i32) -> (i32, i32) {
    %c0_i32 = arith.constant 0 : i32
    %c0_i32_0 = arith.constant 0 : i32
    %c0_i32_1 = arith.constant 0 : i32
    return %c0_i32, %c0_i32_0 : i32, i32
  }
  func.func @transform_3(%arg0: i32) -> (i32, i32) {
    %c0_i32 = arith.constant 0 : i32
    %c0_i32_0 = arith.constant 0 : i32
    return %arg0, %c0_i32 : i32, i32
  }
}

</mosaic_0001>

<llo_original>
// kernel: conv_down_sample_forward.8
$region0: #{conv_down_sample_forward.8}
  #allocation0 [shape = 'u32[]', space=smem, size = 0x4, offset = 0x4, fixed_abs, tag = 'smem constant byte address 0x4 - core index']
  #allocation1 [shape = 'u32[144,128]{1,0:T(1,128)}', space=vmem, size = 0x12000, scoped, tag = 'internal scratch']
  %s0 = inlined_call_operand.vmem [shape: f32[7232,128], index: 0, kind: input, shape index: {}]
  %s1 = inlined_call_operand.vmem [shape: f32[128,128], index: 1, kind: input, shape index: {}]
  %s2 = inlined_call_operand.vmem [shape: f32[1,128], index: 2, kind: input, shape index: {}]
  %s3 = inlined_call_operand.vmem [shape: f32[7232,128], index: 3, kind: output, shape index: {}]
  %s4 = sld [smem:[#allocation0]]
  $region45: #{conv_down_sample_forward.8} parent=0
    _
  %s6 = ssub.s32 1, %s4
  %s7 = scalar_select 0, %s6, %s4
  loop: start=0, step=1, limit=10
  $region2: #{conv_down_sample_forward.8} parent=0 // loop_pre_header
    _
  $region3: #{conv_down_sample_forward.8} parent=0 // loop_header
    %s9 = sphi 0, %s13
    %p10 = scmp.ge.s32.totalorder %s9, 10
    %s19 = sphi 0, %s21
    %s22 = sphi 0, %s19
    %s23 = sphi 0, %s22
    %s39 = sphi 0, %s23
    %s43 = sphi 0, %s43
    %s45 = sphi 0, %s43
    %s46 = sphi 0, %s45
    %s60 = sphi 0, %s46
    %s64 = sphi 0, %s64
    %s66 = sphi 0, %s64
    %s67 = sphi 0, %s66
    %s81 = sphi 0, %s67
    %s87 = sphi 0, %s89
    %s90 = sphi 0, %s87
    %s91 = sphi 0, %s90
    %s107 = sphi 0, %s91
  $region4: #{conv_down_sample_forward.8} parent=0 // loop_header_branch
    %12 = sbr.rel (%p10) target = $region8
  $region5: #{conv_down_sample_forward.8} parent=0 // loop_body
    %s14 = ssub.s32 %s9, 1
    %s15 = ssub.s32 %s9, 2
    %s16 = sadd.s32 %s9, 1
    %s17 = ssub.s32 %s9, %s16
    %p18 = scmp.eq.s32.totalorder %s17, 0
    %s20 = sadd.s32 %s19, 1
    %s21 = scalar_select %p18, %s19, %s20
    %p24 = pneg %p18
    %p25 = scmp.eq.s32.totalorder %s9, 7
    %p26 = por %p24, %p25
    %p27 = scmp.ne.s32.totalorder %s19, %s22
    %p28 = scmp.eq.s32.totalorder %s9, 0
    %p29 = por %p27, %p28
    %p30 = scmp.ne.s32.totalorder %s19, %s22
    %p31 = scmp.eq.s32.totalorder %s14, 7
    %p32 = por %p30, %p31
    %p33 = scmp.ne.s32.totalorder %s22, %s23
    %p34 = scmp.eq.s32.totalorder %s14, 0
    %p35 = por %p33, %p34
    %p36 = scmp.ne.s32.totalorder %s22, %s23
    %p37 = scmp.eq.s32.totalorder %s15, 7
    %p38 = por %p36, %p37
    %p40 = scmp.ne.s32.totalorder %s23, %s39
    %p41 = scmp.eq.s32.totalorder %s15, 0
    %p42 = por %p40, %p41
    %s44 = sadd.s32 %s43, 1
    %p47 = scmp.eq.s32.totalorder %s9, 7
    %p48 = scmp.ne.s32.totalorder %s43, %s45
    %p49 = scmp.eq.s32.totalorder %s9, 0
    %p50 = por %p48, %p49
    %p51 = scmp.ne.s32.totalorder %s43, %s45
    %p52 = scmp.eq.s32.totalorder %s14, 7
    %p53 = por %p51, %p52
    %p54 = scmp.ne.s32.totalorder %s45, %s46
    %p55 = scmp.eq.s32.totalorder %s14, 0
    %p56 = por %p54, %p55
    %p57 = scmp.ne.s32.totalorder %s45, %s46
    %p58 = scmp.eq.s32.totalorder %s15, 7
    %p59 = por %p57, %p58
    %p61 = scmp.ne.s32.totalorder %s46, %s60
    %p62 = scmp.eq.s32.totalorder %s15, 0
    %p63 = por %p61, %p62
    %s65 = sadd.s32 %s64, 1
    %p68 = scmp.eq.s32.totalorder %s9, 7
    %p69 = scmp.ne.s32.totalorder %s64, %s66
    %p70 = scmp.eq.s32.totalorder %s9, 0
    %p71 = por %p69, %p70
    %p72 = scmp.ne.s32.totalorder %s64, %s66
    %p73 = scmp.eq.s32.totalorder %s14, 7
    %p74 = por %p72, %p73
    %p75 = scmp.ne.s32.totalorder %s66, %s67
    %p76 = scmp.eq.s32.totalorder %s14, 0
    %p77 = por %p75, %p76
    %p78 = scmp.ne.s32.totalorder %s66, %s67
    %p79 = scmp.eq.s32.totalorder %s15, 7
    %p80 = por %p78, %p79
    %p82 = scmp.ne.s32.totalorder %s67, %s81
    %p83 = scmp.eq.s32.totalorder %s15, 0
    %p84 = por %p82, %p83
    %s85 = ssub.s32 %s9, %s16
    %p86 = scmp.eq.s32.totalorder %s85, 0
    %s88 = sadd.s32 %s87, 1
    %s89 = scalar_select %p86, %s87, %s88
    %p92 = pneg %p86
    %p93 = scmp.eq.s32.totalorder %s9, 7
    %p94 = por %p92, %p93
    %p95 = scmp.ne.s32.totalorder %s87, %s90
    %p96 = scmp.eq.s32.totalorder %s9, 0
    %p97 = por %p95, %p96
    %p98 = scmp.ne.s32.totalorder %s87, %s90
    %p99 = scmp.eq.s32.totalorder %s14, 7
    %p100 = por %p98, %p99
    %p101 = scmp.ne.s32.totalorder %s90, %s91
    %p102 = scmp.eq.s32.totalorder %s14, 0
    %p103 = por %p101, %p102
    %p104 = scmp.ne.s32.totalorder %s90, %s91
    %p105 = scmp.eq.s32.totalorder %s15, 7
    %p106 = por %p104, %p105
    %p108 = scmp.ne.s32.totalorder %s91, %s107
    %p109 = scmp.eq.s32.totalorder %s15, 0
    %p110 = por %p108, %p109
    %p111 = scmp.le.s32.totalorder 1, %s9
    %p112 = scmp.lt.s32.totalorder %s9, 9
    %p113 = pnand %p111, %p112
    %p114 = pneg %p113
    // Predicated region
    $region9: #{conv_down_sample_forward.8} parent=5 // pred_check
      _
    $region10: #{conv_down_sample_forward.8} parent=5 // pred_check_branch
      %116 = sbr.rel (%p113) target = $region12
    $region11: #{conv_down_sample_forward.8} parent=5 // pred_region
      %s117 = ssub.s32 %s9, 1
      // Predicated region
      $region13: #{conv_down_sample_forward.8} parent=11 // pred_check
        %p118 = pneg %p56
      $region14: #{conv_down_sample_forward.8} parent=11 // pred_check_branch
        %120 = sbr.rel (%p118) target = $region16
      $region15: #{conv_down_sample_forward.8} parent=11 // pred_region
        _
      $region16: #{conv_down_sample_forward.8} parent=11 // pred_fallthru
        _
      // Predicated region
      $region17: #{conv_down_sample_forward.8} parent=11 // pred_check
        %p121 = pneg %p77
      $region18: #{conv_down_sample_forward.8} parent=11 // pred_check_branch
        %123 = sbr.rel (%p121) target = $region20
      $region19: #{conv_down_sample_forward.8} parent=11 // pred_region
        _
      $region20: #{conv_down_sample_forward.8} parent=11 // pred_fallthru
        _
    $region12: #{conv_down_sample_forward.8} parent=5 // pred_fallthru
      _
    %p124 = scmp.lt.s32.totalorder %s9, 8
    // Predicated region
    $region21: #{conv_down_sample_forward.8} parent=5 // pred_check
      %p125 = pneg %p124
    $region22: #{conv_down_sample_forward.8} parent=5 // pred_check_branch
      %127 = sbr.rel (%p125) target = $region24
    $region23: #{conv_down_sample_forward.8} parent=5 // pred_region
      // Predicated region
      $region25: #{conv_down_sample_forward.8} parent=23 // pred_check
        %p128 = pneg %p29
      $region26: #{conv_down_sample_forward.8} parent=23 // pred_check_branch
        %130 = sbr.rel (%p128) target = $region28
      $region27: #{conv_down_sample_forward.8} parent=23 // pred_region
        %s131 = smul.u32 113, %s9
        %p132 = scmp.lt.s32.totalorder %s131, 903
        %s133 = scalar_select %p132, %s131, 903
        %s134 = smul.addr %s133, 8
        %s135 = scalar_lea.vmem %s0, %s134
        %s136 = smul.u32 113, %s9
      $region28: #{conv_down_sample_forward.8} parent=23 // pred_fallthru
        _
    $region24: #{conv_down_sample_forward.8} parent=5 // pred_fallthru
      _
    %p137 = scmp.le.s32.totalorder 1, %s9
    %p138 = scmp.lt.s32.totalorder %s9, 9
    %p139 = pnand %p137, %p138
    %p140 = pneg %p139
    // Predicated region
    $region29: #{conv_down_sample_forward.8} parent=5 // pred_check
      _
    $region30: #{conv_down_sample_forward.8} parent=5 // pred_check_branch
      %142 = sbr.rel (%p139) target = $region32
    $region31: #{conv_down_sample_forward.8} parent=5 // pred_region
      %s143 = ssub.s32 %s9, 1
      %s144 = smul.u32 113, %s14
      %p145 = scmp.lt.s32.totalorder %s144, 903
      %s146 = scalar_select %p145, %s144, 903
      %s147 = smul.addr %s146, 8
      %s148 = scalar_lea.vmem %s0, %s147
      %p149 = pneg %p35
      %p150 = pneg %p32
      %p151 = pneg %p56
      %p152 = pneg %p53
      %p153 = pneg %p77
      %p154 = pneg %p74
      %p155 = pneg %p103
      %p156 = pneg %p100
      %s157 = smul.u32 113, %s14
      %p158 = scmp.lt.s32.totalorder %s157, 903
      %s159 = scalar_select %p158, %s157, 903
      %s160 = smul.addr %s159, 8
      %s161 = scalar_lea.vmem %s3, %s160
      %s162 = smul.u32 113, %s14
      %p163 = scmp.lt.s32.totalorder %s162, 903
      %s164 = scalar_select %p163, %s162, 903
      %s165 = smul.addr %s164, 8
      %s166 = scalar_lea.vmem %s0, %s165
      %s167 = smul.u32 113, %s14
      %s168 = smul.u32 113, %s14
      %p169 = scmp.lt.s32.totalorder %s168, 903
      %s170 = scalar_select %p169, %s168, 903
      %s171 = smul.addr %s170, 8
      %s172 = scalar_lea.vmem %s3, %s171
      %s173 = smul.u32 113, %s14
      %v174 = vld [vmem:[%s166] sm:$0xff]
      %v175 = vld [vmem:[%s166 + $0x8] sm:$0xff]
      %v176 = vld [vmem:[%s166 + $0x10] sm:$0xff]
      %v177 = vld [vmem:[%s166 + $0x18] sm:$0xff]
      %v178 = vld [vmem:[%s166 + $0x20] sm:$0xff]
      %v179 = vld [vmem:[%s166 + $0x28] sm:$0xff]
      %v180 = vld [vmem:[%s166 + $0x30] sm:$0xff]
      %v181 = vld [vmem:[%s166 + $0x38] sm:$0xff]
      %v182 = vld [vmem:[%s166 + $0x40] sm:$0xff]
      %v183 = vld [vmem:[%s166 + $0x48] sm:$0xff]
      %v184 = vld [vmem:[%s166 + $0x50] sm:$0xff]
      %v185 = vld [vmem:[%s166 + $0x58] sm:$0xff]
      %v186 = vld [vmem:[%s166 + $0x60] sm:$0xff]
      %v187 = vld [vmem:[%s166 + $0x68] sm:$0xff]
      %v188 = vld [vmem:[%s166 + $0x70] sm:$0xff]
      %v189 = vld [vmem:[%s166 + $0x78] sm:$0xff]
      %v190 = vld [vmem:[%s166 + $0x80] sm:$0xff]
      %v191 = vld [vmem:[%s166 + $0x88] sm:$0xff]
      %v192 = vld [vmem:[%s166 + $0x90] sm:$0xff]
      %v193 = vld [vmem:[%s166 + $0x98] sm:$0xff]
      %v194 = vld [vmem:[%s166 + $0xa0] sm:$0xff]
      %v195 = vld [vmem:[%s166 + $0xa8] sm:$0xff]
      %v196 = vld [vmem:[%s166 + $0xb0] sm:$0xff]
      %v197 = vld [vmem:[%s166 + $0xb8] sm:$0xff]
      %v198 = vld [vmem:[%s166 + $0xc0] sm:$0xff]
      %v199 = vld [vmem:[%s166 + $0xc8] sm:$0xff]
      %v200 = vld [vmem:[%s166 + $0xd0] sm:$0xff]
      %v201 = vld [vmem:[%s166 + $0xd8] sm:$0xff]
      %v202 = vld [vmem:[%s166 + $0xe0] sm:$0xff]
      %v203 = vld [vmem:[%s166 + $0xe8] sm:$0xff]
      %v204 = vld [vmem:[%s166 + $0xf0] sm:$0xff]
      %v205 = vld [vmem:[%s166 + $0xf8] sm:$0xff]
      %v206 = vld [vmem:[%s166 + $0x100] sm:$0xff]
      %v207 = vld [vmem:[%s166 + $0x108] sm:$0xff]
      %v208 = vld [vmem:[%s166 + $0x110] sm:$0xff]
      %v209 = vld [vmem:[%s166 + $0x118] sm:$0xff]
      %v210 = vld [vmem:[%s166 + $0x120] sm:$0xff]
      %v211 = vld [vmem:[%s166 + $0x128] sm:$0xff]
      %v212 = vld [vmem:[%s166 + $0x130] sm:$0xff]
      %v213 = vld [vmem:[%s166 + $0x138] sm:$0xff]
      %v214 = vld [vmem:[%s166 + $0x140] sm:$0xff]
      %v215 = vld [vmem:[%s166 + $0x148] sm:$0xff]
      %v216 = vld [vmem:[%s166 + $0x150] sm:$0xff]
      %v217 = vld [vmem:[%s166 + $0x158] sm:$0xff]
      %v218 = vld [vmem:[%s166 + $0x160] sm:$0xff]
      %v219 = vld [vmem:[%s166 + $0x168] sm:$0xff]
      %v220 = vld [vmem:[%s166 + $0x170] sm:$0xff]
      %v221 = vld [vmem:[%s166 + $0x178] sm:$0xff]
      %v222 = vld [vmem:[%s166 + $0x180] sm:$0xff]
      %v223 = vld [vmem:[%s166 + $0x188] sm:$0xff]
      %v224 = vld [vmem:[%s166 + $0x190] sm:$0xff]
      %v225 = vld [vmem:[%s166 + $0x198] sm:$0xff]
      %v226 = vld [vmem:[%s166 + $0x1a0] sm:$0xff]
      %v227 = vld [vmem:[%s166 + $0x1a8] sm:$0xff]
      %v228 = vld [vmem:[%s166 + $0x1b0] sm:$0xff]
      %v229 = vld [vmem:[%s166 + $0x1b8] sm:$0xff]
      %v230 = vld [vmem:[%s166 + $0x1c0] sm:$0xff]
      %v231 = vld [vmem:[%s166 + $0x1c8] sm:$0xff]
      %v232 = vld [vmem:[%s166 + $0x1d0] sm:$0xff]
      %v233 = vld [vmem:[%s166 + $0x1d8] sm:$0xff]
      %v234 = vld [vmem:[%s166 + $0x1e0] sm:$0xff]
      %v235 = vld [vmem:[%s166 + $0x1e8] sm:$0xff]
      %v236 = vld [vmem:[%s166 + $0x1f0] sm:$0xff]
      %v237 = vld [vmem:[%s166 + $0x1f8] sm:$0xff]
      %v238 = vld [vmem:[%s166 + $0x200] sm:$0xff]
      %v239 = vld [vmem:[%s166 + $0x208] sm:$0xff]
      %v240 = vld [vmem:[%s166 + $0x210] sm:$0xff]
      %v241 = vld [vmem:[%s166 + $0x218] sm:$0xff]
      %v242 = vld [vmem:[%s166 + $0x220] sm:$0xff]
      %v243 = vld [vmem:[%s166 + $0x228] sm:$0xff]
      %v244 = vld [vmem:[%s166 + $0x230] sm:$0xff]
      %v245 = vld [vmem:[%s166 + $0x238] sm:$0xff]
      %v246 = vld [vmem:[%s166 + $0x240] sm:$0xff]
      %v247 = vld [vmem:[%s166 + $0x248] sm:$0xff]
      %v248 = vld [vmem:[%s166 + $0x250] sm:$0xff]
      %v249 = vld [vmem:[%s166 + $0x258] sm:$0xff]
      %v250 = vld [vmem:[%s166 + $0x260] sm:$0xff]
      %v251 = vld [vmem:[%s166 + $0x268] sm:$0xff]
      %v252 = vld [vmem:[%s166 + $0x270] sm:$0xff]
      %v253 = vld [vmem:[%s166 + $0x278] sm:$0xff]
      %v254 = vld [vmem:[%s166 + $0x280] sm:$0xff]
      %v255 = vld [vmem:[%s166 + $0x288] sm:$0xff]
      %v256 = vld [vmem:[%s166 + $0x290] sm:$0xff]
      %v257 = vld [vmem:[%s166 + $0x298] sm:$0xff]
      %v258 = vld [vmem:[%s166 + $0x2a0] sm:$0xff]
      %v259 = vld [vmem:[%s166 + $0x2a8] sm:$0xff]
      %v260 = vld [vmem:[%s166 + $0x2b0] sm:$0xff]
      %v261 = vld [vmem:[%s166 + $0x2b8] sm:$0xff]
      %v262 = vld [vmem:[%s166 + $0x2c0] sm:$0xff]
      %v263 = vld [vmem:[%s166 + $0x2c8] sm:$0xff]
      %v264 = vld [vmem:[%s166 + $0x2d0] sm:$0xff]
      %v265 = vld [vmem:[%s166 + $0x2d8] sm:$0xff]
      %v266 = vld [vmem:[%s166 + $0x2e0] sm:$0xff]
      %v267 = vld [vmem:[%s166 + $0x2e8] sm:$0xff]
      %v268 = vld [vmem:[%s166 + $0x2f0] sm:$0xff]
      %v269 = vld [vmem:[%s166 + $0x2f8] sm:$0xff]
      %v270 = vld [vmem:[%s166 + $0x300] sm:$0xff]
      %v271 = vld [vmem:[%s166 + $0x308] sm:$0xff]
      %v272 = vld [vmem:[%s166 + $0x310] sm:$0xff]
      %v273 = vld [vmem:[%s166 + $0x318] sm:$0xff]
      %v274 = vld [vmem:[%s166 + $0x320] sm:$0xff]
      %v275 = vld [vmem:[%s166 + $0x328] sm:$0xff]
      %v276 = vld [vmem:[%s166 + $0x330] sm:$0xff]
      %v277 = vld [vmem:[%s166 + $0x338] sm:$0xff]
      %v278 = vld [vmem:[%s166 + $0x340] sm:$0xff]
      %v279 = vld [vmem:[%s166 + $0x348] sm:$0xff]
      %v280 = vld [vmem:[%s166 + $0x350] sm:$0xff]
      %v281 = vld [vmem:[%s166 + $0x358] sm:$0xff]
      %v282 = vld [vmem:[%s166 + $0x360] sm:$0xff]
      %v283 = vld [vmem:[%s166 + $0x368] sm:$0xff]
      %v284 = vld [vmem:[%s166 + $0x370] sm:$0xff]
      %v285 = vld [vmem:[%s166 + $0x378] sm:$0xff]
      %v286 = vld [vmem:[%s166 + $0x380] sm:$0xff]
      %v287 = vld [vmem:[%s1] sm:$0xff]
      %v288 = vld [vmem:[%s1 + $0x8] sm:$0xff]
      %v289 = vld [vmem:[%s1 + $0x10] sm:$0xff]
      %v290 = vld [vmem:[%s1 + $0x18] sm:$0xff]
      %v291 = vld [vmem:[%s1 + $0x20] sm:$0xff]
      %v292 = vld [vmem:[%s1 + $0x28] sm:$0xff]
      %v293 = vld [vmem:[%s1 + $0x30] sm:$0xff]
      %v294 = vld [vmem:[%s1 + $0x38] sm:$0xff]
      %v295 = vld [vmem:[%s1 + $0x40] sm:$0xff]
      %v296 = vld [vmem:[%s1 + $0x48] sm:$0xff]
      %v297 = vld [vmem:[%s1 + $0x50] sm:$0xff]
      %v298 = vld [vmem:[%s1 + $0x58] sm:$0xff]
      %v299 = vld [vmem:[%s1 + $0x60] sm:$0xff]
      %v300 = vld [vmem:[%s1 + $0x68] sm:$0xff]
      %v301 = vld [vmem:[%s1 + $0x70] sm:$0xff]
      %v302 = vld [vmem:[%s1 + $0x78] sm:$0xff]
      %v303 = vld [vmem:[%s2] sm:$0x1]
      %v305 = vlaneseq
      %v306 = vshrl.u32 %v305, 7
      %v307 = vsub.s32 0, %v306
      %v308 = vrot.slane %v303, %v307
      %310 = vmatprep.subr.mxu0 0.0
      %311 = vmatpush1.msra.mxu0 %v287
      %312 = vmatprep.subr.mxu0 0.0
      %313 = vmatpush1.msra.mxu0 %v288
      %314 = vmatprep.subr.mxu0 0.0
      %315 = vmatpush1.msra.mxu0 %v289
      %316 = vmatprep.subr.mxu0 0.0
      %317 = vmatpush1.msra.mxu0 %v290
      %318 = vmatprep.subr.mxu0 0.0
      %319 = vmatpush1.msra.mxu0 %v291
      %320 = vmatprep.subr.mxu0 0.0
      %321 = vmatpush1.msra.mxu0 %v292
      %322 = vmatprep.subr.mxu0 0.0
      %323 = vmatpush1.msra.mxu0 %v293
      %324 = vmatprep.subr.mxu0 0.0
      %325 = vmatpush1.msra.mxu0 %v294
      %326 = vmatprep.subr.mxu0 0.0
      %327 = vmatpush1.msra.mxu0 %v295
      %328 = vmatprep.subr.mxu0 0.0
      %329 = vmatpush1.msra.mxu0 %v296
      %330 = vmatprep.subr.mxu0 0.0
      %331 = vmatpush1.msra.mxu0 %v297
      %332 = vmatprep.subr.mxu0 0.0
      %333 = vmatpush1.msra.mxu0 %v298
      %334 = vmatprep.subr.mxu0 0.0
      %335 = vmatpush1.msra.mxu0 %v299
      %336 = vmatprep.subr.mxu0 0.0
      %337 = vmatpush1.msra.mxu0 %v300
      %338 = vmatprep.subr.mxu0 0.0
      %339 = vmatpush1.msra.mxu0 %v301
      %340 = vmatprep.subr.mxu0 0.0
      %341 = vmatpush1.msra.mxu0 %v302
      %342 = vmatprep.subr.mxu0 0.0
      %343 = vmatpush1.msra.mxu0 0.0
      %344 = vmatprep.subr.mxu0 0.0
      %345 = vmatpush1.msra.mxu0 0.0
      %346 = vmatprep.subr.mxu0 0.0
      %347 = vmatpush1.msra.mxu0 0.0
      %348 = vmatprep.subr.mxu0 0.0
      %349 = vmatpush1.msra.mxu0 0.0
      %350 = vmatprep.subr.mxu0 0.0
      %351 = vmatpush1.msra.mxu0 0.0
      %352 = vmatprep.subr.mxu0 0.0
      %353 = vmatpush1.msra.mxu0 0.0
      %354 = vmatprep.subr.mxu0 0.0
      %355 = vmatpush1.msra.mxu0 0.0
      %356 = vmatprep.subr.mxu0 0.0
      %357 = vmatpush1.msra.mxu0 0.0
      %358 = vmatprep.subr.mxu0 0.0
      %359 = vmatpush1.msra.mxu0 0.0
      %360 = vmatprep.subr.mxu0 0.0
      %361 = vmatpush1.msra.mxu0 0.0
      %362 = vmatprep.subr.mxu0 0.0
      %363 = vmatpush1.msra.mxu0 0.0
      %364 = vmatprep.subr.mxu0 0.0
      %365 = vmatpush1.msra.mxu0 0.0
      %366 = vmatprep.subr.mxu0 0.0
      %367 = vmatpush1.msra.mxu0 0.0
      %368 = vmatprep.subr.mxu0 0.0
      %369 = vmatpush1.msra.mxu0 0.0
      %370 = vmatprep.subr.mxu0 0.0
      %371 = vmatpush1.msra.mxu0 0.0
      %372 = vmatprep.subr.mxu0 0.0
      %373 = vmatpush1.msra.mxu0 0.0
      %374 = vmatprep.mubr.f32.mxu0 0.0
      %375 = vmatmul.mubr.f32.gmra.mrb[0].mxu0 %v174
      %v376 = vpop.f32.mrb[0].mxu0
      %v377 = vadd.f32 %v308, %v376
      %v378 = vpop.f32.mrb[0].mxu0
      %379 = vmatprep.mubr.f32.mxu0 0.0
      %380 = vmatmul.mubr.f32.gmra.mrb[0].mxu0 %v175
      %v381 = vpop.f32.mrb[0].mxu0
      %v382 = vadd.f32 %v308, %v381
      %v383 = vpop.f32.mrb[0].mxu0
      %384 = vmatprep.mubr.f32.mxu0 0.0
      %385 = vmatmul.mubr.f32.gmra.mrb[0].mxu0 %v176
      %v386 = vpop.f32.mrb[0].mxu0
      %v387 = vadd.f32 %v308, %v386
      %v388 = vpop.f32.mrb[0].mxu0
      %389 = vmatprep.mubr.f32.mxu0 0.0
      %390 = vmatmul.mubr.f32.gmra.mrb[0].mxu0 %v177
      %v391 = vpop.f32.mrb[0].mxu0
      %v392 = vadd.f32 %v308, %v391
      %v393 = vpop.f32.mrb[0].mxu0
      %394 = vmatprep.mubr.f32.mxu0 0.0
      %395 = vmatmul.mubr.f32.gmra.mrb[0].mxu0 %v178
      %v396 = vpop.f32.mrb[0].mxu0
      %v397 = vadd.f32 %v308, %v396
      %v398 = vpop.f32.mrb[0].mxu0
      %399 = vmatprep.mubr.f32.mxu0 0.0
      %400 = vmatmul.mubr.f32.gmra.mrb[0].mxu0 %v179
      %v401 = vpop.f32.mrb[0].mxu0
      %v402 = vadd.f32 %v308, %v401
      %v403 = vpop.f32.mrb[0].mxu0
      %404 = vmatprep.mubr.f32.mxu0 0.0
      %405 = vmatmul.mubr.f32.gmra.mrb[0].mxu0 %v180
      %v406 = vpop.f32.mrb[0].mxu0
      %v407 = vadd.f32 %v308, %v406
      %v408 = vpop.f32.mrb[0].mxu0
      %409 = vmatprep.mubr.f32.mxu0 0.0
      %410 = vmatmul.mubr.f32.gmra.mrb[0].mxu0 %v181
      %v411 = vpop.f32.mrb[0].mxu0
      %v412 = vadd.f32 %v308, %v411
      %v413 = vpop.f32.mrb[0].mxu0
      %414 = vmatprep.mubr.f32.mxu0 0.0
      %415 = vmatmul.mubr.f32.gmra.mrb[0].mxu0 %v182
      %v416 = vpop.f32.mrb[0].mxu0
      %v417 = vadd.f32 %v308, %v416
      %v418 = vpop.f32.mrb[0].mxu0
      %419 = vmatprep.mubr.f32.mxu0 0.0
      %420 = vmatmul.mubr.f32.gmra.mrb[0].mxu0 %v183
      %v421 = vpop.f32.mrb[0].mxu0
      %v422 = vadd.f32 %v308, %v421
      %v423 = vpop.f32.mrb[0].mxu0
      %424 = vmatprep.mubr.f32.mxu0 0.0
      %425 = vmatmul.mubr.f32.gmra.mrb[0].mxu0 %v184
      %v426 = vpop.f32.mrb[0].mxu0
      %v427 = vadd.f32 %v308, %v426
      %v428 = vpop.f32.mrb[0].mxu0
      %429 = vmatprep.mubr.f32.mxu0 0.0
      %430 = vmatmul.mubr.f32.gmra.mrb[0].mxu0 %v185
      %v431 = vpop.f32.mrb[0].mxu0
      %v432 = vadd.f32 %v308, %v431
      %v433 = vpop.f32.mrb[0].mxu0
      %434 = vmatprep.mubr.f32.mxu0 0.0
      %435 = vmatmul.mubr.f32.gmra.mrb[0].mxu0 %v186
      %v436 = vpop.f32.mrb[0].mxu0
      %v437 = vadd.f32 %v308, %v436
      %v438 = vpop.f32.mrb[0].mxu0
      %439 = vmatprep.mubr.f32.mxu0 0.0
      %440 = vmatmul.mubr.f32.gmra.mrb[0].mxu0 %v187
      %v441 = vpop.f32.mrb[0].mxu0
      %v442 = vadd.f32 %v308, %v441
      %v443 = vpop.f32.mrb[0].mxu0
      %444 = vmatprep.mubr.f32.mxu0 0.0
      %445 = vmatmul.mubr.f32.gmra.mrb[0].mxu0 %v188
      %v446 = vpop.f32.mrb[0].mxu0
      %v447 = vadd.f32 %v308, %v446
      %v448 = vpop.f32.mrb[0].mxu0
      %449 = vmatprep.mubr.f32.mxu0 0.0
      %450 = vmatmul.mubr.f32.gmra.mrb[0].mxu0 %v189
      %v451 = vpop.f32.mrb[0].mxu0
      %v452 = vadd.f32 %v308, %v451
      %v453 = vpop.f32.mrb[0].mxu0
      %454 = vmatprep.mubr.f32.mxu0 0.0
      %455 = vmatmul.mubr.f32.gmra.mrb[0].mxu0 %v190
      %v456 = vpop.f32.mrb[0].mxu0
      %v457 = vadd.f32 %v308, %v456
      %v458 = vpop.f32.mrb[0].mxu0
      %459 = vmatprep.mubr.f32.mxu0 0.0
      %460 = vmatmul.mubr.f32.gmra.mrb[0].mxu0 %v191
      %v461 = vpop.f32.mrb[0].mxu0
      %v462 = vadd.f32 %v308, %v461
      %v463 = vpop.f32.mrb[0].mxu0
      %464 = vmatprep.mubr.f32.mxu0 0.0
      %465 = vmatmul.mubr.f32.gmra.mrb[0].mxu0 %v192
      %v466 = vpop.f32.mrb[0].mxu0
      %v467 = vadd.f32 %v308, %v466
      %v468 = vpop.f32.mrb[0].mxu0
      %469 = vmatprep.mubr.f32.mxu0 0.0
      %470 = vmatmul.mubr.f32.gmra.mrb[0].mxu0 %v193
      %v471 = vpop.f32.mrb[0].mxu0
      %v472 = vadd.f32 %v308, %v471
      %v473 = vpop.f32.mrb[0].mxu0
      %474 = vmatprep.mubr.f32.mxu0 0.0
      %475 = vmatmul.mubr.f32.gmra.mrb[0].mxu0 %v194
      %v476 = vpop.f32.mrb[0].mxu0
      %v477 = vadd.f32 %v308, %v476
      %v478 = vpop.f32.mrb[0].mxu0
      %479 = vmatprep.mubr.f32.mxu0 0.0
      %480 = vmatmul.mubr.f32.gmra.mrb[0].mxu0 %v195
      %v481 = vpop.f32.mrb[0].mxu0
      %v482 = vadd.f32 %v308, %v481
      %v483 = vpop.f32.mrb[0].mxu0
      %484 = vmatprep.mubr.f32.mxu0 0.0
      %485 = vmatmul.mubr.f32.gmra.mrb[0].mxu0 %v196
      %v486 = vpop.f32.mrb[0].mxu0
      %v487 = vadd.f32 %v308, %v486
      %v488 = vpop.f32.mrb[0].mxu0
      %489 = vmatprep.mubr.f32.mxu0 0.0
      %490 = vmatmul.mubr.f32.gmra.mrb[0].mxu0 %v197
      %v491 = vpop.f32.mrb[0].mxu0
      %v492 = vadd.f32 %v308, %v491
      %v493 = vpop.f32.mrb[0].mxu0
      %494 = vmatprep.mubr.f32.mxu0 0.0
      %495 = vmatmul.mubr.f32.gmra.mrb[0].mxu0 %v198
      %v496 = vpop.f32.mrb[0].mxu0
      %v497 = vadd.f32 %v308, %v496
      %v498 = vpop.f32.mrb[0].mxu0
      %499 = vmatprep.mubr.f32.mxu0 0.0
      %500 = vmatmul.mubr.f32.gmra.mrb[0].mxu0 %v199
      %v501 = vpop.f32.mrb[0].mxu0
      %v502 = vadd.f32 %v308, %v501
      %v503 = vpop.f32.mrb[0].mxu0
      %504 = vmatprep.mubr.f32.mxu0 0.0
      %505 = vmatmul.mubr.f32.gmra.mrb[0].mxu0 %v200
      %v506 = vpop.f32.mrb[0].mxu0
      %v507 = vadd.f32 %v308, %v506
      %v508 = vpop.f32.mrb[0].mxu0
      %509 = vmatprep.mubr.f32.mxu0 0.0
      %510 = vmatmul.mubr.f32.gmra.mrb[0].mxu0 %v201
      %v511 = vpop.f32.mrb[0].mxu0
      %v512 = vadd.f32 %v308, %v511
      %v513 = vpop.f32.mrb[0].mxu0
      %514 = vmatprep.mubr.f32.mxu0 0.0
      %515 = vmatmul.mubr.f32.gmra.mrb[0].mxu0 %v202
      %v516 = vpop.f32.mrb[0].mxu0
      %v517 = vadd.f32 %v308, %v516
      %v518 = vpop.f32.mrb[0].mxu0
      %519 = vmatprep.mubr.f32.mxu0 0.0
      %520 = vmatmul.mubr.f32.gmra.mrb[0].mxu0 %v203
      %v521 = vpop.f32.mrb[0].mxu0
      %v522 = vadd.f32 %v308, %v521
      %v523 = vpop.f32.mrb[0].mxu0
      %524 = vmatprep.mubr.f32.mxu0 0.0
      %525 = vmatmul.mubr.f32.gmra.mrb[0].mxu0 %v204
      %v526 = vpop.f32.mrb[0].mxu0
      %v527 = vadd.f32 %v308, %v526
      %v528 = vpop.f32.mrb[0].mxu0
      %529 = vmatprep.mubr.f32.mxu0 0.0
      %530 = vmatmul.mubr.f32.gmra.mrb[0].mxu0 %v205
      %v531 = vpop.f32.mrb[0].mxu0
      %v532 = vadd.f32 %v308, %v531
      %v533 = vpop.f32.mrb[0].mxu0
      %534 = vmatprep.mubr.f32.mxu0 0.0
      %535 = vmatmul.mubr.f32.gmra.mrb[0].mxu0 %v206
      %v536 = vpop.f32.mrb[0].mxu0
      %v537 = vadd.f32 %v308, %v536
      %v538 = vpop.f32.mrb[0].mxu0
      %539 = vmatprep.mubr.f32.mxu0 0.0
      %540 = vmatmul.mubr.f32.gmra.mrb[0].mxu0 %v207
      %v541 = vpop.f32.mrb[0].mxu0
      %v542 = vadd.f32 %v308, %v541
      %v543 = vpop.f32.mrb[0].mxu0
      %544 = vmatprep.mubr.f32.mxu0 0.0
      %545 = vmatmul.mubr.f32.gmra.mrb[0].mxu0 %v208
      %v546 = vpop.f32.mrb[0].mxu0
      %v547 = vadd.f32 %v308, %v546
      %v548 = vpop.f32.mrb[0].mxu0
      %549 = vmatprep.mubr.f32.mxu0 0.0
      %550 = vmatmul.mubr.f32.gmra.mrb[0].mxu0 %v209
      %v551 = vpop.f32.mrb[0].mxu0
      %v552 = vadd.f32 %v308, %v551
      %v553 = vpop.f32.mrb[0].mxu0
      %554 = vmatprep.mubr.f32.mxu0 0.0
      %555 = vmatmul.mubr.f32.gmra.mrb[0].mxu0 %v210
      %v556 = vpop.f32.mrb[0].mxu0
      %v557 = vadd.f32 %v308, %v556
      %v558 = vpop.f32.mrb[0].mxu0
      %559 = vmatprep.mubr.f32.mxu0 0.0
      %560 = vmatmul.mubr.f32.gmra.mrb[0].mxu0 %v211
      %v561 = vpop.f32.mrb[0].mxu0
      %v562 = vadd.f32 %v308, %v561
      %v563 = vpop.f32.mrb[0].mxu0
      %564 = vmatprep.mubr.f32.mxu0 0.0
      %565 = vmatmul.mubr.f32.gmra.mrb[0].mxu0 %v212
      %v566 = vpop.f32.mrb[0].mxu0
      %v567 = vadd.f32 %v308, %v566
      %v568 = vpop.f32.mrb[0].mxu0
      %569 = vmatprep.mubr.f32.mxu0 0.0
      %570 = vmatmul.mubr.f32.gmra.mrb[0].mxu0 %v213
      %v571 = vpop.f32.mrb[0].mxu0
      %v572 = vadd.f32 %v308, %v571
      %v573 = vpop.f32.mrb[0].mxu0
      %574 = vmatprep.mubr.f32.mxu0 0.0
      %575 = vmatmul.mubr.f32.gmra.mrb[0].mxu0 %v214
      %v576 = vpop.f32.mrb[0].mxu0
      %v577 = vadd.f32 %v308, %v576
      %v578 = vpop.f32.mrb[0].mxu0
      %579 = vmatprep.mubr.f32.mxu0 0.0
      %580 = vmatmul.mubr.f32.gmra.mrb[0].mxu0 %v215
      %v581 = vpop.f32.mrb[0].mxu0
      %v582 = vadd.f32 %v308, %v581
      %v583 = vpop.f32.mrb[0].mxu0
      %584 = vmatprep.mubr.f32.mxu0 0.0
      %585 = vmatmul.mubr.f32.gmra.mrb[0].mxu0 %v216
      %v586 = vpop.f32.mrb[0].mxu0
      %v587 = vadd.f32 %v308, %v586
      %v588 = vpop.f32.mrb[0].mxu0
      %589 = vmatprep.mubr.f32.mxu0 0.0
      %590 = vmatmul.mubr.f32.gmra.mrb[0].mxu0 %v217
      %v591 = vpop.f32.mrb[0].mxu0
      %v592 = vadd.f32 %v308, %v591
      %v593 = vpop.f32.mrb[0].mxu0
      %594 = vmatprep.mubr.f32.mxu0 0.0
      %595 = vmatmul.mubr.f32.gmra.mrb[0].mxu0 %v218
      %v596 = vpop.f32.mrb[0].mxu0
      %v597 = vadd.f32 %v308, %v596
      %v598 = vpop.f32.mrb[0].mxu0
      %599 = vmatprep.mubr.f32.mxu0 0.0
      %600 = vmatmul.mubr.f32.gmra.mrb[0].mxu0 %v219
      %v601 = vpop.f32.mrb[0].mxu0
      %v602 = vadd.f32 %v308, %v601
      %v603 = vpop.f32.mrb[0].mxu0
      %604 = vmatprep.mubr.f32.mxu0 0.0
      %605 = vmatmul.mubr.f32.gmra.mrb[0].mxu0 %v220
      %v606 = vpop.f32.mrb[0].mxu0
      %v607 = vadd.f32 %v308, %v606
      %v608 = vpop.f32.mrb[0].mxu0
      %609 = vmatprep.mubr.f32.mxu0 0.0
      %610 = vmatmul.mubr.f32.gmra.mrb[0].mxu0 %v221
      %v611 = vpop.f32.mrb[0].mxu0
      %v612 = vadd.f32 %v308, %v611
      %v613 = vpop.f32.mrb[0].mxu0
      %614 = vmatprep.mubr.f32.mxu0 0.0
      %615 = vmatmul.mubr.f32.gmra.mrb[0].mxu0 %v222
      %v616 = vpop.f32.mrb[0].mxu0
      %v617 = vadd.f32 %v308, %v616
      %v618 = vpop.f32.mrb[0].mxu0
      %619 = vmatprep.mubr.f32.mxu0 0.0
      %620 = vmatmul.mubr.f32.gmra.mrb[0].mxu0 %v223
      %v621 = vpop.f32.mrb[0].mxu0
      %v622 = vadd.f32 %v308, %v621
      %v623 = vpop.f32.mrb[0].mxu0
      %624 = vmatprep.mubr.f32.mxu0 0.0
      %625 = vmatmul.mubr.f32.gmra.mrb[0].mxu0 %v224
      %v626 = vpop.f32.mrb[0].mxu0
      %v627 = vadd.f32 %v308, %v626
      %v628 = vpop.f32.mrb[0].mxu0
      %629 = vmatprep.mubr.f32.mxu0 0.0
      %630 = vmatmul.mubr.f32.gmra.mrb[0].mxu0 %v225
      %v631 = vpop.f32.mrb[0].mxu0
      %v632 = vadd.f32 %v308, %v631
      %v633 = vpop.f32.mrb[0].mxu0
      %634 = vmatprep.mubr.f32.mxu0 0.0
      %635 = vmatmul.mubr.f32.gmra.mrb[0].mxu0 %v226
      %v636 = vpop.f32.mrb[0].mxu0
      %v637 = vadd.f32 %v308, %v636
      %v638 = vpop.f32.mrb[0].mxu0
      %639 = vmatprep.mubr.f32.mxu0 0.0
      %640 = vmatmul.mubr.f32.gmra.mrb[0].mxu0 %v227
      %v641 = vpop.f32.mrb[0].mxu0
      %v642 = vadd.f32 %v308, %v641
      %v643 = vpop.f32.mrb[0].mxu0
      %644 = vmatprep.mubr.f32.mxu0 0.0
      %645 = vmatmul.mubr.f32.gmra.mrb[0].mxu0 %v228
      %v646 = vpop.f32.mrb[0].mxu0
      %v647 = vadd.f32 %v308, %v646
      %v648 = vpop.f32.mrb[0].mxu0
      %649 = vmatprep.mubr.f32.mxu0 0.0
      %650 = vmatmul.mubr.f32.gmra.mrb[0].mxu0 %v229
      %v651 = vpop.f32.mrb[0].mxu0
      %v652 = vadd.f32 %v308, %v651
      %v653 = vpop.f32.mrb[0].mxu0
      %654 = vmatprep.mubr.f32.mxu0 0.0
      %655 = vmatmul.mubr.f32.gmra.mrb[0].mxu0 %v230
      %v656 = vpop.f32.mrb[0].mxu0
      %v657 = vadd.f32 %v308, %v656
      %v658 = vpop.f32.mrb[0].mxu0
      %659 = vmatprep.mubr.f32.mxu0 0.0
      %660 = vmatmul.mubr.f32.gmra.mrb[0].mxu0 %v231
      %v661 = vpop.f32.mrb[0].mxu0
      %v662 = vadd.f32 %v308, %v661
      %v663 = vpop.f32.mrb[0].mxu0
      %664 = vmatprep.mubr.f32.mxu0 0.0
      %665 = vmatmul.mubr.f32.gmra.mrb[0].mxu0 %v232
      %v666 = vpop.f32.mrb[0].mxu0
      %v667 = vadd.f32 %v308, %v666
      %v668 = vpop.f32.mrb[0].mxu0
      %669 = vmatprep.mubr.f32.mxu0 0.0
      %670 = vmatmul.mubr.f32.gmra.mrb[0].mxu0 %v233
      %v671 = vpop.f32.mrb[0].mxu0
      %v672 = vadd.f32 %v308, %v671
      %v673 = vpop.f32.mrb[0].mxu0
      %674 = vmatprep.mubr.f32.mxu0 0.0
      %675 = vmatmul.mubr.f32.gmra.mrb[0].mxu0 %v234
      %v676 = vpop.f32.mrb[0].mxu0
      %v677 = vadd.f32 %v308, %v676
      %v678 = vpop.f32.mrb[0].mxu0
      %679 = vmatprep.mubr.f32.mxu0 0.0
      %680 = vmatmul.mubr.f32.gmra.mrb[0].mxu0 %v235
      %v681 = vpop.f32.mrb[0].mxu0
      %v682 = vadd.f32 %v308, %v681
      %v683 = vpop.f32.mrb[0].mxu0
      %684 = vmatprep.mubr.f32.mxu0 0.0
      %685 = vmatmul.mubr.f32.gmra.mrb[0].mxu0 %v236
      %v686 = vpop.f32.mrb[0].mxu0
      %v687 = vadd.f32 %v308, %v686
      %v688 = vpop.f32.mrb[0].mxu0
      %689 = vmatprep.mubr.f32.mxu0 0.0
      %690 = vmatmul.mubr.f32.gmra.mrb[0].mxu0 %v237
      %v691 = vpop.f32.mrb[0].mxu0
      %v692 = vadd.f32 %v308, %v691
      %v693 = vpop.f32.mrb[0].mxu0
      %694 = vmatprep.mubr.f32.mxu0 0.0
      %695 = vmatmul.mubr.f32.gmra.mrb[0].mxu0 %v238
      %v696 = vpop.f32.mrb[0].mxu0
      %v697 = vadd.f32 %v308, %v696
      %v698 = vpop.f32.mrb[0].mxu0
      %699 = vmatprep.mubr.f32.mxu0 0.0
      %700 = vmatmul.mubr.f32.gmra.mrb[0].mxu0 %v239
      %v701 = vpop.f32.mrb[0].mxu0
      %v702 = vadd.f32 %v308, %v701
      %v703 = vpop.f32.mrb[0].mxu0
      %704 = vmatprep.mubr.f32.mxu0 0.0
      %705 = vmatmul.mubr.f32.gmra.mrb[0].mxu0 %v240
      %v706 = vpop.f32.mrb[0].mxu0
      %v707 = vadd.f32 %v308, %v706
      %v708 = vpop.f32.mrb[0].mxu0
      %709 = vmatprep.mubr.f32.mxu0 0.0
      %710 = vmatmul.mubr.f32.gmra.mrb[0].mxu0 %v241
      %v711 = vpop.f32.mrb[0].mxu0
      %v712 = vadd.f32 %v308, %v711
      %v713 = vpop.f32.mrb[0].mxu0
      %714 = vmatprep.mubr.f32.mxu0 0.0
      %715 = vmatmul.mubr.f32.gmra.mrb[0].mxu0 %v242
      %v716 = vpop.f32.mrb[0].mxu0
      %v717 = vadd.f32 %v308, %v716
      %v718 = vpop.f32.mrb[0].mxu0
      %719 = vmatprep.mubr.f32.mxu0 0.0
      %720 = vmatmul.mubr.f32.gmra.mrb[0].mxu0 %v243
      %v721 = vpop.f32.mrb[0].mxu0
      %v722 = vadd.f32 %v308, %v721
      %v723 = vpop.f32.mrb[0].mxu0
      %724 = vmatprep.mubr.f32.mxu0 0.0
      %725 = vmatmul.mubr.f32.gmra.mrb[0].mxu0 %v244
      %v726 = vpop.f32.mrb[0].mxu0
      %v727 = vadd.f32 %v308, %v726
      %v728 = vpop.f32.mrb[0].mxu0
      %729 = vmatprep.mubr.f32.mxu0 0.0
      %730 = vmatmul.mubr.f32.gmra.mrb[0].mxu0 %v245
      %v731 = vpop.f32.mrb[0].mxu0
      %v732 = vadd.f32 %v308, %v731
      %v733 = vpop.f32.mrb[0].mxu0
      %734 = vmatprep.mubr.f32.mxu0 0.0
      %735 = vmatmul.mubr.f32.gmra.mrb[0].mxu0 %v246
      %v736 = vpop.f32.mrb[0].mxu0
      %v737 = vadd.f32 %v308, %v736
      %v738 = vpop.f32.mrb[0].mxu0
      %739 = vmatprep.mubr.f32.mxu0 0.0
      %740 = vmatmul.mubr.f32.gmra.mrb[0].mxu0 %v247
      %v741 = vpop.f32.mrb[0].mxu0
      %v742 = vadd.f32 %v308, %v741
      %v743 = vpop.f32.mrb[0].mxu0
      %744 = vmatprep.mubr.f32.mxu0 0.0
      %745 = vmatmul.mubr.f32.gmra.mrb[0].mxu0 %v248
      %v746 = vpop.f32.mrb[0].mxu0
      %v747 = vadd.f32 %v308, %v746
      %v748 = vpop.f32.mrb[0].mxu0
      %749 = vmatprep.mubr.f32.mxu0 0.0
      %750 = vmatmul.mubr.f32.gmra.mrb[0].mxu0 %v249
      %v751 = vpop.f32.mrb[0].mxu0
      %v752 = vadd.f32 %v308, %v751
      %v753 = vpop.f32.mrb[0].mxu0
      %754 = vmatprep.mubr.f32.mxu0 0.0
      %755 = vmatmul.mubr.f32.gmra.mrb[0].mxu0 %v250
      %v756 = vpop.f32.mrb[0].mxu0
      %v757 = vadd.f32 %v308, %v756
      %v758 = vpop.f32.mrb[0].mxu0
      %759 = vmatprep.mubr.f32.mxu0 0.0
      %760 = vmatmul.mubr.f32.gmra.mrb[0].mxu0 %v251
      %v761 = vpop.f32.mrb[0].mxu0
      %v762 = vadd.f32 %v308, %v761
      %v763 = vpop.f32.mrb[0].mxu0
      %764 = vmatprep.mubr.f32.mxu0 0.0
      %765 = vmatmul.mubr.f32.gmra.mrb[0].mxu0 %v252
      %v766 = vpop.f32.mrb[0].mxu0
      %v767 = vadd.f32 %v308, %v766
      %v768 = vpop.f32.mrb[0].mxu0
      %769 = vmatprep.mubr.f32.mxu0 0.0
      %770 = vmatmul.mubr.f32.gmra.mrb[0].mxu0 %v253
      %v771 = vpop.f32.mrb[0].mxu0
      %v772 = vadd.f32 %v308, %v771
      %v773 = vpop.f32.mrb[0].mxu0
      %774 = vmatprep.mubr.f32.mxu0 0.0
      %775 = vmatmul.mubr.f32.gmra.mrb[0].mxu0 %v254
      %v776 = vpop.f32.mrb[0].mxu0
      %v777 = vadd.f32 %v308, %v776
      %v778 = vpop.f32.mrb[0].mxu0
      %779 = vmatprep.mubr.f32.mxu0 0.0
      %780 = vmatmul.mubr.f32.gmra.mrb[0].mxu0 %v255
      %v781 = vpop.f32.mrb[0].mxu0
      %v782 = vadd.f32 %v308, %v781
      %v783 = vpop.f32.mrb[0].mxu0
      %784 = vmatprep.mubr.f32.mxu0 0.0
      %785 = vmatmul.mubr.f32.gmra.mrb[0].mxu0 %v256
      %v786 = vpop.f32.mrb[0].mxu0
      %v787 = vadd.f32 %v308, %v786
      %v788 = vpop.f32.mrb[0].mxu0
      %789 = vmatprep.mubr.f32.mxu0 0.0
      %790 = vmatmul.mubr.f32.gmra.mrb[0].mxu0 %v257
      %v791 = vpop.f32.mrb[0].mxu0
      %v792 = vadd.f32 %v308, %v791
      %v793 = vpop.f32.mrb[0].mxu0
      %794 = vmatprep.mubr.f32.mxu0 0.0
      %795 = vmatmul.mubr.f32.gmra.mrb[0].mxu0 %v258
      %v796 = vpop.f32.mrb[0].mxu0
      %v797 = vadd.f32 %v308, %v796
      %v798 = vpop.f32.mrb[0].mxu0
      %799 = vmatprep.mubr.f32.mxu0 0.0
      %800 = vmatmul.mubr.f32.gmra.mrb[0].mxu0 %v259
      %v801 = vpop.f32.mrb[0].mxu0
      %v802 = vadd.f32 %v308, %v801
      %v803 = vpop.f32.mrb[0].mxu0
      %804 = vmatprep.mubr.f32.mxu0 0.0
      %805 = vmatmul.mubr.f32.gmra.mrb[0].mxu0 %v260
      %v806 = vpop.f32.mrb[0].mxu0
      %v807 = vadd.f32 %v308, %v806
      %v808 = vpop.f32.mrb[0].mxu0
      %809 = vmatprep.mubr.f32.mxu0 0.0
      %810 = vmatmul.mubr.f32.gmra.mrb[0].mxu0 %v261
      %v811 = vpop.f32.mrb[0].mxu0
      %v812 = vadd.f32 %v308, %v811
      %v813 = vpop.f32.mrb[0].mxu0
      %814 = vmatprep.mubr.f32.mxu0 0.0
      %815 = vmatmul.mubr.f32.gmra.mrb[0].mxu0 %v262
      %v816 = vpop.f32.mrb[0].mxu0
      %v817 = vadd.f32 %v308, %v816
      %v818 = vpop.f32.mrb[0].mxu0
      %819 = vmatprep.mubr.f32.mxu0 0.0
      %820 = vmatmul.mubr.f32.gmra.mrb[0].mxu0 %v263
      %v821 = vpop.f32.mrb[0].mxu0
      %v822 = vadd.f32 %v308, %v821
      %v823 = vpop.f32.mrb[0].mxu0
      %824 = vmatprep.mubr.f32.mxu0 0.0
      %825 = vmatmul.mubr.f32.gmra.mrb[0].mxu0 %v264
      %v826 = vpop.f32.mrb[0].mxu0
      %v827 = vadd.f32 %v308, %v826
      %v828 = vpop.f32.mrb[0].mxu0
      %829 = vmatprep.mubr.f32.mxu0 0.0
      %830 = vmatmul.mubr.f32.gmra.mrb[0].mxu0 %v265
      %v831 = vpop.f32.mrb[0].mxu0
      %v832 = vadd.f32 %v308, %v831
      %v833 = vpop.f32.mrb[0].mxu0
      %834 = vmatprep.mubr.f32.mxu0 0.0
      %835 = vmatmul.mubr.f32.gmra.mrb[0].mxu0 %v266
      %v836 = vpop.f32.mrb[0].mxu0
      %v837 = vadd.f32 %v308, %v836
      %v838 = vpop.f32.mrb[0].mxu0
      %839 = vmatprep.mubr.f32.mxu0 0.0
      %840 = vmatmul.mubr.f32.gmra.mrb[0].mxu0 %v267
      %v841 = vpop.f32.mrb[0].mxu0
      %v842 = vadd.f32 %v308, %v841
      %v843 = vpop.f32.mrb[0].mxu0
      %844 = vmatprep.mubr.f32.mxu0 0.0
      %845 = vmatmul.mubr.f32.gmra.mrb[0].mxu0 %v268
      %v846 = vpop.f32.mrb[0].mxu0
      %v847 = vadd.f32 %v308, %v846
      %v848 = vpop.f32.mrb[0].mxu0
      %849 = vmatprep.mubr.f32.mxu0 0.0
      %850 = vmatmul.mubr.f32.gmra.mrb[0].mxu0 %v269
      %v851 = vpop.f32.mrb[0].mxu0
      %v852 = vadd.f32 %v308, %v851
      %v853 = vpop.f32.mrb[0].mxu0
      %854 = vmatprep.mubr.f32.mxu0 0.0
      %855 = vmatmul.mubr.f32.gmra.mrb[0].mxu0 %v270
      %v856 = vpop.f32.mrb[0].mxu0
      %v857 = vadd.f32 %v308, %v856
      %v858 = vpop.f32.mrb[0].mxu0
      %859 = vmatprep.mubr.f32.mxu0 0.0
      %860 = vmatmul.mubr.f32.gmra.mrb[0].mxu0 %v271
      %v861 = vpop.f32.mrb[0].mxu0
      %v862 = vadd.f32 %v308, %v861
      %v863 = vpop.f32.mrb[0].mxu0
      %864 = vmatprep.mubr.f32.mxu0 0.0
      %865 = vmatmul.mubr.f32.gmra.mrb[0].mxu0 %v272
      %v866 = vpop.f32.mrb[0].mxu0
      %v867 = vadd.f32 %v308, %v866
      %v868 = vpop.f32.mrb[0].mxu0
      %869 = vmatprep.mubr.f32.mxu0 0.0
      %870 = vmatmul.mubr.f32.gmra.mrb[0].mxu0 %v273
      %v871 = vpop.f32.mrb[0].mxu0
      %v872 = vadd.f32 %v308, %v871
      %v873 = vpop.f32.mrb[0].mxu0
      %874 = vmatprep.mubr.f32.mxu0 0.0
      %875 = vmatmul.mubr.f32.gmra.mrb[0].mxu0 %v274
      %v876 = vpop.f32.mrb[0].mxu0
      %v877 = vadd.f32 %v308, %v876
      %v878 = vpop.f32.mrb[0].mxu0
      %879 = vmatprep.mubr.f32.mxu0 0.0
      %880 = vmatmul.mubr.f32.gmra.mrb[0].mxu0 %v275
      %v881 = vpop.f32.mrb[0].mxu0
      %v882 = vadd.f32 %v308, %v881
      %v883 = vpop.f32.mrb[0].mxu0
      %884 = vmatprep.mubr.f32.mxu0 0.0
      %885 = vmatmul.mubr.f32.gmra.mrb[0].mxu0 %v276
      %v886 = vpop.f32.mrb[0].mxu0
      %v887 = vadd.f32 %v308, %v886
      %v888 = vpop.f32.mrb[0].mxu0
      %889 = vmatprep.mubr.f32.mxu0 0.0
      %890 = vmatmul.mubr.f32.gmra.mrb[0].mxu0 %v277
      %v891 = vpop.f32.mrb[0].mxu0
      %v892 = vadd.f32 %v308, %v891
      %v893 = vpop.f32.mrb[0].mxu0
      %894 = vmatprep.mubr.f32.mxu0 0.0
      %895 = vmatmul.mubr.f32.gmra.mrb[0].mxu0 %v278
      %v896 = vpop.f32.mrb[0].mxu0
      %v897 = vadd.f32 %v308, %v896
      %v898 = vpop.f32.mrb[0].mxu0
      %899 = vmatprep.mubr.f32.mxu0 0.0
      %900 = vmatmul.mubr.f32.gmra.mrb[0].mxu0 %v279
      %v901 = vpop.f32.mrb[0].mxu0
      %v902 = vadd.f32 %v308, %v901
      %v903 = vpop.f32.mrb[0].mxu0
      %904 = vmatprep.mubr.f32.mxu0 0.0
      %905 = vmatmul.mubr.f32.gmra.mrb[0].mxu0 %v280
      %v906 = vpop.f32.mrb[0].mxu0
      %v907 = vadd.f32 %v308, %v906
      %v908 = vpop.f32.mrb[0].mxu0
      %909 = vmatprep.mubr.f32.mxu0 0.0
      %910 = vmatmul.mubr.f32.gmra.mrb[0].mxu0 %v281
      %v911 = vpop.f32.mrb[0].mxu0
      %v912 = vadd.f32 %v308, %v911
      %v913 = vpop.f32.mrb[0].mxu0
      %914 = vmatprep.mubr.f32.mxu0 0.0
      %915 = vmatmul.mubr.f32.gmra.mrb[0].mxu0 %v282
      %v916 = vpop.f32.mrb[0].mxu0
      %v917 = vadd.f32 %v308, %v916
      %v918 = vpop.f32.mrb[0].mxu0
      %919 = vmatprep.mubr.f32.mxu0 0.0
      %920 = vmatmul.mubr.f32.gmra.mrb[0].mxu0 %v283
      %v921 = vpop.f32.mrb[0].mxu0
      %v922 = vadd.f32 %v308, %v921
      %v923 = vpop.f32.mrb[0].mxu0
      %924 = vmatprep.mubr.f32.mxu0 0.0
      %925 = vmatmul.mubr.f32.gmra.mrb[0].mxu0 %v284
      %v926 = vpop.f32.mrb[0].mxu0
      %v927 = vadd.f32 %v308, %v926
      %v928 = vpop.f32.mrb[0].mxu0
      %929 = vmatprep.mubr.f32.mxu0 0.0
      %930 = vmatmul.mubr.f32.gmra.mrb[0].mxu0 %v285
      %v931 = vpop.f32.mrb[0].mxu0
      %v932 = vadd.f32 %v308, %v931
      %v933 = vpop.f32.mrb[0].mxu0
      %934 = vmatprep.mubr.f32.mxu0 0.0
      %935 = vmatmul.mubr.f32.gmra.mrb[0].mxu0 %v286
      %v936 = vpop.f32.mrb[0].mxu0
      %v937 = vadd.f32 %v308, %v936
      %v938 = vpop.f32.mrb[0].mxu0
      %939 = vdwg.mxu0
      %vm940 = vcmp.ge.f32.partialorder %v377, 0.0
      %vm941 = vcmp.ge.f32.partialorder %v382, 0.0
      %vm942 = vcmp.ge.f32.partialorder %v387, 0.0
      %vm943 = vcmp.ge.f32.partialorder %v392, 0.0
      %vm944 = vcmp.ge.f32.partialorder %v397, 0.0
      %vm945 = vcmp.ge.f32.partialorder %v402, 0.0
      %vm946 = vcmp.ge.f32.partialorder %v407, 0.0
      %vm947 = vcmp.ge.f32.partialorder %v412, 0.0
      %vm948 = vcmp.ge.f32.partialorder %v417, 0.0
      %vm949 = vcmp.ge.f32.partialorder %v422, 0.0
      %vm950 = vcmp.ge.f32.partialorder %v427, 0.0
      %vm951 = vcmp.ge.f32.partialorder %v432, 0.0
      %vm952 = vcmp.ge.f32.partialorder %v437, 0.0
      %vm953 = vcmp.ge.f32.partialorder %v442, 0.0
      %vm954 = vcmp.ge.f32.partialorder %v447, 0.0
      %vm955 = vcmp.ge.f32.partialorder %v452, 0.0
      %vm956 = vcmp.ge.f32.partialorder %v457, 0.0
      %vm957 = vcmp.ge.f32.partialorder %v462, 0.0
      %vm958 = vcmp.ge.f32.partialorder %v467, 0.0
      %vm959 = vcmp.ge.f32.partialorder %v472, 0.0
      %vm960 = vcmp.ge.f32.partialorder %v477, 0.0
      %vm961 = vcmp.ge.f32.partialorder %v482, 0.0
      %vm962 = vcmp.ge.f32.partialorder %v487, 0.0
      %vm963 = vcmp.ge.f32.partialorder %v492, 0.0
      %vm964 = vcmp.ge.f32.partialorder %v497, 0.0
      %vm965 = vcmp.ge.f32.partialorder %v502, 0.0
      %vm966 = vcmp.ge.f32.partialorder %v507, 0.0
      %vm967 = vcmp.ge.f32.partialorder %v512, 0.0
      %vm968 = vcmp.ge.f32.partialorder %v517, 0.0
      %vm969 = vcmp.ge.f32.partialorder %v522, 0.0
      %vm970 = vcmp.ge.f32.partialorder %v527, 0.0
      %vm971 = vcmp.ge.f32.partialorder %v532, 0.0
      %vm972 = vcmp.ge.f32.partialorder %v537, 0.0
      %vm973 = vcmp.ge.f32.partialorder %v542, 0.0
      %vm974 = vcmp.ge.f32.partialorder %v547, 0.0
      %vm975 = vcmp.ge.f32.partialorder %v552, 0.0
      %vm976 = vcmp.ge.f32.partialorder %v557, 0.0
      %vm977 = vcmp.ge.f32.partialorder %v562, 0.0
      %vm978 = vcmp.ge.f32.partialorder %v567, 0.0
      %vm979 = vcmp.ge.f32.partialorder %v572, 0.0
      %vm980 = vcmp.ge.f32.partialorder %v577, 0.0
      %vm981 = vcmp.ge.f32.partialorder %v582, 0.0
      %vm982 = vcmp.ge.f32.partialorder %v587, 0.0
      %vm983 = vcmp.ge.f32.partialorder %v592, 0.0
      %vm984 = vcmp.ge.f32.partialorder %v597, 0.0
      %vm985 = vcmp.ge.f32.partialorder %v602, 0.0
      %vm986 = vcmp.ge.f32.partialorder %v607, 0.0
      %vm987 = vcmp.ge.f32.partialorder %v612, 0.0
      %vm988 = vcmp.ge.f32.partialorder %v617, 0.0
      %vm989 = vcmp.ge.f32.partialorder %v622, 0.0
      %vm990 = vcmp.ge.f32.partialorder %v627, 0.0
      %vm991 = vcmp.ge.f32.partialorder %v632, 0.0
      %vm992 = vcmp.ge.f32.partialorder %v637, 0.0
      %vm993 = vcmp.ge.f32.partialorder %v642, 0.0
      %vm994 = vcmp.ge.f32.partialorder %v647, 0.0
      %vm995 = vcmp.ge.f32.partialorder %v652, 0.0
      %vm996 = vcmp.ge.f32.partialorder %v657, 0.0
      %vm997 = vcmp.ge.f32.partialorder %v662, 0.0
      %vm998 = vcmp.ge.f32.partialorder %v667, 0.0
      %vm999 = vcmp.ge.f32.partialorder %v672, 0.0
      %vm1000 = vcmp.ge.f32.partialorder %v677, 0.0
      %vm1001 = vcmp.ge.f32.partialorder %v682, 0.0
      %vm1002 = vcmp.ge.f32.partialorder %v687, 0.0
      %vm1003 = vcmp.ge.f32.partialorder %v692, 0.0
      %vm1004 = vcmp.ge.f32.partialorder %v697, 0.0
      %vm1005 = vcmp.ge.f32.partialorder %v702, 0.0
      %vm1006 = vcmp.ge.f32.partialorder %v707, 0.0
      %vm1007 = vcmp.ge.f32.partialorder %v712, 0.0
      %vm1008 = vcmp.ge.f32.partialorder %v717, 0.0
      %vm1009 = vcmp.ge.f32.partialorder %v722, 0.0
      %vm1010 = vcmp.ge.f32.partialorder %v727, 0.0
      %vm1011 = vcmp.ge.f32.partialorder %v732, 0.0
      %vm1012 = vcmp.ge.f32.partialorder %v737, 0.0
      %vm1013 = vcmp.ge.f32.partialorder %v742, 0.0
      %vm1014 = vcmp.ge.f32.partialorder %v747, 0.0
      %vm1015 = vcmp.ge.f32.partialorder %v752, 0.0
      %vm1016 = vcmp.ge.f32.partialorder %v757, 0.0
      %vm1017 = vcmp.ge.f32.partialorder %v762, 0.0
      %vm1018 = vcmp.ge.f32.partialorder %v767, 0.0
      %vm1019 = vcmp.ge.f32.partialorder %v772, 0.0
      %vm1020 = vcmp.ge.f32.partialorder %v777, 0.0
      %vm1021 = vcmp.ge.f32.partialorder %v782, 0.0
      %vm1022 = vcmp.ge.f32.partialorder %v787, 0.0
      %vm1023 = vcmp.ge.f32.partialorder %v792, 0.0
      %vm1024 = vcmp.ge.f32.partialorder %v797, 0.0
      %vm1025 = vcmp.ge.f32.partialorder %v802, 0.0
      %vm1026 = vcmp.ge.f32.partialorder %v807, 0.0
      %vm1027 = vcmp.ge.f32.partialorder %v812, 0.0
      %vm1028 = vcmp.ge.f32.partialorder %v817, 0.0
      %vm1029 = vcmp.ge.f32.partialorder %v822, 0.0
      %vm1030 = vcmp.ge.f32.partialorder %v827, 0.0
      %vm1031 = vcmp.ge.f32.partialorder %v832, 0.0
      %vm1032 = vcmp.ge.f32.partialorder %v837, 0.0
      %vm1033 = vcmp.ge.f32.partialorder %v842, 0.0
      %vm1034 = vcmp.ge.f32.partialorder %v847, 0.0
      %vm1035 = vcmp.ge.f32.partialorder %v852, 0.0
      %vm1036 = vcmp.ge.f32.partialorder %v857, 0.0
      %vm1037 = vcmp.ge.f32.partialorder %v862, 0.0
      %vm1038 = vcmp.ge.f32.partialorder %v867, 0.0
      %vm1039 = vcmp.ge.f32.partialorder %v872, 0.0
      %vm1040 = vcmp.ge.f32.partialorder %v877, 0.0
      %vm1041 = vcmp.ge.f32.partialorder %v882, 0.0
      %vm1042 = vcmp.ge.f32.partialorder %v887, 0.0
      %vm1043 = vcmp.ge.f32.partialorder %v892, 0.0
      %vm1044 = vcmp.ge.f32.partialorder %v897, 0.0
      %vm1045 = vcmp.ge.f32.partialorder %v902, 0.0
      %vm1046 = vcmp.ge.f32.partialorder %v907, 0.0
      %vm1047 = vcmp.ge.f32.partialorder %v912, 0.0
      %vm1048 = vcmp.ge.f32.partialorder %v917, 0.0
      %vm1049 = vcmp.ge.f32.partialorder %v922, 0.0
      %vm1050 = vcmp.ge.f32.partialorder %v927, 0.0
      %vm1051 = vcmp.ge.f32.partialorder %v932, 0.0
      %vm1052 = vcmp.ge.f32.partialorder %v937, 0.0
      %v1053 = vmul.f32 %v377, 0.2
      %v1054 = vmul.f32 %v382, 0.2
      %v1055 = vmul.f32 %v387, 0.2
      %v1056 = vmul.f32 %v392, 0.2
      %v1057 = vmul.f32 %v397, 0.2
      %v1058 = vmul.f32 %v402, 0.2
      %v1059 = vmul.f32 %v407, 0.2
      %v1060 = vmul.f32 %v412, 0.2
      %v1061 = vmul.f32 %v417, 0.2
      %v1062 = vmul.f32 %v422, 0.2
      %v1063 = vmul.f32 %v427, 0.2
      %v1064 = vmul.f32 %v432, 0.2
      %v1065 = vmul.f32 %v437, 0.2
      %v1066 = vmul.f32 %v442, 0.2
      %v1067 = vmul.f32 %v447, 0.2
      %v1068 = vmul.f32 %v452, 0.2
      %v1069 = vmul.f32 %v457, 0.2
      %v1070 = vmul.f32 %v462, 0.2
      %v1071 = vmul.f32 %v467, 0.2
      %v1072 = vmul.f32 %v472, 0.2
      %v1073 = vmul.f32 %v477, 0.2
      %v1074 = vmul.f32 %v482, 0.2
      %v1075 = vmul.f32 %v487, 0.2
      %v1076 = vmul.f32 %v492, 0.2
      %v1077 = vmul.f32 %v497, 0.2
      %v1078 = vmul.f32 %v502, 0.2
      %v1079 = vmul.f32 %v507, 0.2
      %v1080 = vmul.f32 %v512, 0.2
      %v1081 = vmul.f32 %v517, 0.2
      %v1082 = vmul.f32 %v522, 0.2
      %v1083 = vmul.f32 %v527, 0.2
      %v1084 = vmul.f32 %v532, 0.2
      %v1085 = vmul.f32 %v537, 0.2
      %v1086 = vmul.f32 %v542, 0.2
      %v1087 = vmul.f32 %v547, 0.2
      %v1088 = vmul.f32 %v552, 0.2
      %v1089 = vmul.f32 %v557, 0.2
      %v1090 = vmul.f32 %v562, 0.2
      %v1091 = vmul.f32 %v567, 0.2
      %v1092 = vmul.f32 %v572, 0.2
      %v1093 = vmul.f32 %v577, 0.2
      %v1094 = vmul.f32 %v582, 0.2
      %v1095 = vmul.f32 %v587, 0.2
      %v1096 = vmul.f32 %v592, 0.2
      %v1097 = vmul.f32 %v597, 0.2
      %v1098 = vmul.f32 %v602, 0.2
      %v1099 = vmul.f32 %v607, 0.2
      %v1100 = vmul.f32 %v612, 0.2
      %v1101 = vmul.f32 %v617, 0.2
      %v1102 = vmul.f32 %v622, 0.2
      %v1103 = vmul.f32 %v627, 0.2
      %v1104 = vmul.f32 %v632, 0.2
      %v1105 = vmul.f32 %v637, 0.2
      %v1106 = vmul.f32 %v642, 0.2
      %v1107 = vmul.f32 %v647, 0.2
      %v1108 = vmul.f32 %v652, 0.2
      %v1109 = vmul.f32 %v657, 0.2
      %v1110 = vmul.f32 %v662, 0.2
      %v1111 = vmul.f32 %v667, 0.2
      %v1112 = vmul.f32 %v672, 0.2
      %v1113 = vmul.f32 %v677, 0.2
      %v1114 = vmul.f32 %v682, 0.2
      %v1115 = vmul.f32 %v687, 0.2
      %v1116 = vmul.f32 %v692, 0.2
      %v1117 = vmul.f32 %v697, 0.2
      %v1118 = vmul.f32 %v702, 0.2
      %v1119 = vmul.f32 %v707, 0.2
      %v1120 = vmul.f32 %v712, 0.2
      %v1121 = vmul.f32 %v717, 0.2
      %v1122 = vmul.f32 %v722, 0.2
      %v1123 = vmul.f32 %v727, 0.2
      %v1124 = vmul.f32 %v732, 0.2
      %v1125 = vmul.f32 %v737, 0.2
      %v1126 = vmul.f32 %v742, 0.2
      %v1127 = vmul.f32 %v747, 0.2
      %v1128 = vmul.f32 %v752, 0.2
      %v1129 = vmul.f32 %v757, 0.2
      %v1130 = vmul.f32 %v762, 0.2
      %v1131 = vmul.f32 %v767, 0.2
      %v1132 = vmul.f32 %v772, 0.2
      %v1133 = vmul.f32 %v777, 0.2
      %v1134 = vmul.f32 %v782, 0.2
      %v1135 = vmul.f32 %v787, 0.2
      %v1136 = vmul.f32 %v792, 0.2
      %v1137 = vmul.f32 %v797, 0.2
      %v1138 = vmul.f32 %v802, 0.2
      %v1139 = vmul.f32 %v807, 0.2
      %v1140 = vmul.f32 %v812, 0.2
      %v1141 = vmul.f32 %v817, 0.2
      %v1142 = vmul.f32 %v822, 0.2
      %v1143 = vmul.f32 %v827, 0.2
      %v1144 = vmul.f32 %v832, 0.2
      %v1145 = vmul.f32 %v837, 0.2
      %v1146 = vmul.f32 %v842, 0.2
      %v1147 = vmul.f32 %v847, 0.2
      %v1148 = vmul.f32 %v852, 0.2
      %v1149 = vmul.f32 %v857, 0.2
      %v1150 = vmul.f32 %v862, 0.2
      %v1151 = vmul.f32 %v867, 0.2
      %v1152 = vmul.f32 %v872, 0.2
      %v1153 = vmul.f32 %v877, 0.2
      %v1154 = vmul.f32 %v882, 0.2
      %v1155 = vmul.f32 %v887, 0.2
      %v1156 = vmul.f32 %v892, 0.2
      %v1157 = vmul.f32 %v897, 0.2
      %v1158 = vmul.f32 %v902, 0.2
      %v1159 = vmul.f32 %v907, 0.2
      %v1160 = vmul.f32 %v912, 0.2
      %v1161 = vmul.f32 %v917, 0.2
      %v1162 = vmul.f32 %v922, 0.2
      %v1163 = vmul.f32 %v927, 0.2
      %v1164 = vmul.f32 %v932, 0.2
      %v1165 = vmul.f32 %v937, 0.2
      %v1166 = vsel %vm940, %v377, %v1053
      %v1167 = vsel %vm941, %v382, %v1054
      %v1168 = vsel %vm942, %v387, %v1055
      %v1169 = vsel %vm943, %v392, %v1056
      %v1170 = vsel %vm944, %v397, %v1057
      %v1171 = vsel %vm945, %v402, %v1058
      %v1172 = vsel %vm946, %v407, %v1059
      %v1173 = vsel %vm947, %v412, %v1060
      %v1174 = vsel %vm948, %v417, %v1061
      %v1175 = vsel %vm949, %v422, %v1062
      %v1176 = vsel %vm950, %v427, %v1063
      %v1177 = vsel %vm951, %v432, %v1064
      %v1178 = vsel %vm952, %v437, %v1065
      %v1179 = vsel %vm953, %v442, %v1066
      %v1180 = vsel %vm954, %v447, %v1067
      %v1181 = vsel %vm955, %v452, %v1068
      %v1182 = vsel %vm956, %v457, %v1069
      %v1183 = vsel %vm957, %v462, %v1070
      %v1184 = vsel %vm958, %v467, %v1071
      %v1185 = vsel %vm959, %v472, %v1072
      %v1186 = vsel %vm960, %v477, %v1073
      %v1187 = vsel %vm961, %v482, %v1074
      %v1188 = vsel %vm962, %v487, %v1075
      %v1189 = vsel %vm963, %v492, %v1076
      %v1190 = vsel %vm964, %v497, %v1077
      %v1191 = vsel %vm965, %v502, %v1078
      %v1192 = vsel %vm966, %v507, %v1079
      %v1193 = vsel %vm967, %v512, %v1080
      %v1194 = vsel %vm968, %v517, %v1081
      %v1195 = vsel %vm969, %v522, %v1082
      %v1196 = vsel %vm970, %v527, %v1083
      %v1197 = vsel %vm971, %v532, %v1084
      %v1198 = vsel %vm972, %v537, %v1085
      %v1199 = vsel %vm973, %v542, %v1086
      %v1200 = vsel %vm974, %v547, %v1087
      %v1201 = vsel %vm975, %v552, %v1088
      %v1202 = vsel %vm976, %v557, %v1089
      %v1203 = vsel %vm977, %v562, %v1090
      %v1204 = vsel %vm978, %v567, %v1091
      %v1205 = vsel %vm979, %v572, %v1092
      %v1206 = vsel %vm980, %v577, %v1093
      %v1207 = vsel %vm981, %v582, %v1094
      %v1208 = vsel %vm982, %v587, %v1095
      %v1209 = vsel %vm983, %v592, %v1096
      %v1210 = vsel %vm984, %v597, %v1097
      %v1211 = vsel %vm985, %v602, %v1098
      %v1212 = vsel %vm986, %v607, %v1099
      %v1213 = vsel %vm987, %v612, %v1100
      %v1214 = vsel %vm988, %v617, %v1101
      %v1215 = vsel %vm989, %v622, %v1102
      %v1216 = vsel %vm990, %v627, %v1103
      %v1217 = vsel %vm991, %v632, %v1104
      %v1218 = vsel %vm992, %v637, %v1105
      %v1219 = vsel %vm993, %v642, %v1106
      %v1220 = vsel %vm994, %v647, %v1107
      %v1221 = vsel %vm995, %v652, %v1108
      %v1222 = vsel %vm996, %v657, %v1109
      %v1223 = vsel %vm997, %v662, %v1110
      %v1224 = vsel %vm998, %v667, %v1111
      %v1225 = vsel %vm999, %v672, %v1112
      %v1226 = vsel %vm1000, %v677, %v1113
      %v1227 = vsel %vm1001, %v682, %v1114
      %v1228 = vsel %vm1002, %v687, %v1115
      %v1229 = vsel %vm1003, %v692, %v1116
      %v1230 = vsel %vm1004, %v697, %v1117
      %v1231 = vsel %vm1005, %v702, %v1118
      %v1232 = vsel %vm1006, %v707, %v1119
      %v1233 = vsel %vm1007, %v712, %v1120
      %v1234 = vsel %vm1008, %v717, %v1121
      %v1235 = vsel %vm1009, %v722, %v1122
      %v1236 = vsel %vm1010, %v727, %v1123
      %v1237 = vsel %vm1011, %v732, %v1124
      %v1238 = vsel %vm1012, %v737, %v1125
      %v1239 = vsel %vm1013, %v742, %v1126
      %v1240 = vsel %vm1014, %v747, %v1127
      %v1241 = vsel %vm1015, %v752, %v1128
      %v1242 = vsel %vm1016, %v757, %v1129
      %v1243 = vsel %vm1017, %v762, %v1130
      %v1244 = vsel %vm1018, %v767, %v1131
      %v1245 = vsel %vm1019, %v772, %v1132
      %v1246 = vsel %vm1020, %v777, %v1133
      %v1247 = vsel %vm1021, %v782, %v1134
      %v1248 = vsel %vm1022, %v787, %v1135
      %v1249 = vsel %vm1023, %v792, %v1136
      %v1250 = vsel %vm1024, %v797, %v1137
      %v1251 = vsel %vm1025, %v802, %v1138
      %v1252 = vsel %vm1026, %v807, %v1139
      %v1253 = vsel %vm1027, %v812, %v1140
      %v1254 = vsel %vm1028, %v817, %v1141
      %v1255 = vsel %vm1029, %v822, %v1142
      %v1256 = vsel %vm1030, %v827, %v1143
      %v1257 = vsel %vm1031, %v832, %v1144
      %v1258 = vsel %vm1032, %v837, %v1145
      %v1259 = vsel %vm1033, %v842, %v1146
      %v1260 = vsel %vm1034, %v847, %v1147
      %v1261 = vsel %vm1035, %v852, %v1148
      %v1262 = vsel %vm1036, %v857, %v1149
      %v1263 = vsel %vm1037, %v862, %v1150
      %v1264 = vsel %vm1038, %v867, %v1151
      %v1265 = vsel %vm1039, %v872, %v1152
      %v1266 = vsel %vm1040, %v877, %v1153
      %v1267 = vsel %vm1041, %v882, %v1154
      %v1268 = vsel %vm1042, %v887, %v1155
      %v1269 = vsel %vm1043, %v892, %v1156
      %v1270 = vsel %vm1044, %v897, %v1157
      %v1271 = vsel %vm1045, %v902, %v1158
      %v1272 = vsel %vm1046, %v907, %v1159
      %v1273 = vsel %vm1047, %v912, %v1160
      %v1274 = vsel %vm1048, %v917, %v1161
      %v1275 = vsel %vm1049, %v922, %v1162
      %v1276 = vsel %vm1050, %v927, %v1163
      %v1277 = vsel %vm1051, %v932, %v1164
      %v1278 = vsel %vm1052, %v937, %v1165
      %1279 = vst [vmem:[%s172] sm:$0xff] %v1166
      %1280 = vst [vmem:[%s172 + $0x8] sm:$0xff] %v1167
      %1281 = vst [vmem:[%s172 + $0x10] sm:$0xff] %v1168
      %1282 = vst [vmem:[%s172 + $0x18] sm:$0xff] %v1169
      %1283 = vst [vmem:[%s172 + $0x20] sm:$0xff] %v1170
      %1284 = vst [vmem:[%s172 + $0x28] sm:$0xff] %v1171
      %1285 = vst [vmem:[%s172 + $0x30] sm:$0xff] %v1172
      %1286 = vst [vmem:[%s172 + $0x38] sm:$0xff] %v1173
      %1287 = vst [vmem:[%s172 + $0x40] sm:$0xff] %v1174
      %1288 = vst [vmem:[%s172 + $0x48] sm:$0xff] %v1175
      %1289 = vst [vmem:[%s172 + $0x50] sm:$0xff] %v1176
      %1290 = vst [vmem:[%s172 + $0x58] sm:$0xff] %v1177
      %1291 = vst [vmem:[%s172 + $0x60] sm:$0xff] %v1178
      %1292 = vst [vmem:[%s172 + $0x68] sm:$0xff] %v1179
      %1293 = vst [vmem:[%s172 + $0x70] sm:$0xff] %v1180
      %1294 = vst [vmem:[%s172 + $0x78] sm:$0xff] %v1181
      %1295 = vst [vmem:[%s172 + $0x80] sm:$0xff] %v1182
      %1296 = vst [vmem:[%s172 + $0x88] sm:$0xff] %v1183
      %1297 = vst [vmem:[%s172 + $0x90] sm:$0xff] %v1184
      %1298 = vst [vmem:[%s172 + $0x98] sm:$0xff] %v1185
      %1299 = vst [vmem:[%s172 + $0xa0] sm:$0xff] %v1186
      %1300 = vst [vmem:[%s172 + $0xa8] sm:$0xff] %v1187
      %1301 = vst [vmem:[%s172 + $0xb0] sm:$0xff] %v1188
      %1302 = vst [vmem:[%s172 + $0xb8] sm:$0xff] %v1189
      %1303 = vst [vmem:[%s172 + $0xc0] sm:$0xff] %v1190
      %1304 = vst [vmem:[%s172 + $0xc8] sm:$0xff] %v1191
      %1305 = vst [vmem:[%s172 + $0xd0] sm:$0xff] %v1192
      %1306 = vst [vmem:[%s172 + $0xd8] sm:$0xff] %v1193
      %1307 = vst [vmem:[%s172 + $0xe0] sm:$0xff] %v1194
      %1308 = vst [vmem:[%s172 + $0xe8] sm:$0xff] %v1195
      %1309 = vst [vmem:[%s172 + $0xf0] sm:$0xff] %v1196
      %1310 = vst [vmem:[%s172 + $0xf8] sm:$0xff] %v1197
      %1311 = vst [vmem:[%s172 + $0x100] sm:$0xff] %v1198
      %1312 = vst [vmem:[%s172 + $0x108] sm:$0xff] %v1199
      %1313 = vst [vmem:[%s172 + $0x110] sm:$0xff] %v1200
      %1314 = vst [vmem:[%s172 + $0x118] sm:$0xff] %v1201
      %1315 = vst [vmem:[%s172 + $0x120] sm:$0xff] %v1202
      %1316 = vst [vmem:[%s172 + $0x128] sm:$0xff] %v1203
      %1317 = vst [vmem:[%s172 + $0x130] sm:$0xff] %v1204
      %1318 = vst [vmem:[%s172 + $0x138] sm:$0xff] %v1205
      %1319 = vst [vmem:[%s172 + $0x140] sm:$0xff] %v1206
      %1320 = vst [vmem:[%s172 + $0x148] sm:$0xff] %v1207
      %1321 = vst [vmem:[%s172 + $0x150] sm:$0xff] %v1208
      %1322 = vst [vmem:[%s172 + $0x158] sm:$0xff] %v1209
      %1323 = vst [vmem:[%s172 + $0x160] sm:$0xff] %v1210
      %1324 = vst [vmem:[%s172 + $0x168] sm:$0xff] %v1211
      %1325 = vst [vmem:[%s172 + $0x170] sm:$0xff] %v1212
      %1326 = vst [vmem:[%s172 + $0x178] sm:$0xff] %v1213
      %1327 = vst [vmem:[%s172 + $0x180] sm:$0xff] %v1214
      %1328 = vst [vmem:[%s172 + $0x188] sm:$0xff] %v1215
      %1329 = vst [vmem:[%s172 + $0x190] sm:$0xff] %v1216
      %1330 = vst [vmem:[%s172 + $0x198] sm:$0xff] %v1217
      %1331 = vst [vmem:[%s172 + $0x1a0] sm:$0xff] %v1218
      %1332 = vst [vmem:[%s172 + $0x1a8] sm:$0xff] %v1219
      %1333 = vst [vmem:[%s172 + $0x1b0] sm:$0xff] %v1220
      %1334 = vst [vmem:[%s172 + $0x1b8] sm:$0xff] %v1221
      %1335 = vst [vmem:[%s172 + $0x1c0] sm:$0xff] %v1222
      %1336 = vst [vmem:[%s172 + $0x1c8] sm:$0xff] %v1223
      %1337 = vst [vmem:[%s172 + $0x1d0] sm:$0xff] %v1224
      %1338 = vst [vmem:[%s172 + $0x1d8] sm:$0xff] %v1225
      %1339 = vst [vmem:[%s172 + $0x1e0] sm:$0xff] %v1226
      %1340 = vst [vmem:[%s172 + $0x1e8] sm:$0xff] %v1227
      %1341 = vst [vmem:[%s172 + $0x1f0] sm:$0xff] %v1228
      %1342 = vst [vmem:[%s172 + $0x1f8] sm:$0xff] %v1229
      %1343 = vst [vmem:[%s172 + $0x200] sm:$0xff] %v1230
      %1344 = vst [vmem:[%s172 + $0x208] sm:$0xff] %v1231
      %1345 = vst [vmem:[%s172 + $0x210] sm:$0xff] %v1232
      %1346 = vst [vmem:[%s172 + $0x218] sm:$0xff] %v1233
      %1347 = vst [vmem:[%s172 + $0x220] sm:$0xff] %v1234
      %1348 = vst [vmem:[%s172 + $0x228] sm:$0xff] %v1235
      %1349 = vst [vmem:[%s172 + $0x230] sm:$0xff] %v1236
      %1350 = vst [vmem:[%s172 + $0x238] sm:$0xff] %v1237
      %1351 = vst [vmem:[%s172 + $0x240] sm:$0xff] %v1238
      %1352 = vst [vmem:[%s172 + $0x248] sm:$0xff] %v1239
      %1353 = vst [vmem:[%s172 + $0x250] sm:$0xff] %v1240
      %1354 = vst [vmem:[%s172 + $0x258] sm:$0xff] %v1241
      %1355 = vst [vmem:[%s172 + $0x260] sm:$0xff] %v1242
      %1356 = vst [vmem:[%s172 + $0x268] sm:$0xff] %v1243
      %1357 = vst [vmem:[%s172 + $0x270] sm:$0xff] %v1244
      %1358 = vst [vmem:[%s172 + $0x278] sm:$0xff] %v1245
      %1359 = vst [vmem:[%s172 + $0x280] sm:$0xff] %v1246
      %1360 = vst [vmem:[%s172 + $0x288] sm:$0xff] %v1247
      %1361 = vst [vmem:[%s172 + $0x290] sm:$0xff] %v1248
      %1362 = vst [vmem:[%s172 + $0x298] sm:$0xff] %v1249
      %1363 = vst [vmem:[%s172 + $0x2a0] sm:$0xff] %v1250
      %1364 = vst [vmem:[%s172 + $0x2a8] sm:$0xff] %v1251
      %1365 = vst [vmem:[%s172 + $0x2b0] sm:$0xff] %v1252
      %1366 = vst [vmem:[%s172 + $0x2b8] sm:$0xff] %v1253
      %1367 = vst [vmem:[%s172 + $0x2c0] sm:$0xff] %v1254
      %1368 = vst [vmem:[%s172 + $0x2c8] sm:$0xff] %v1255
      %1369 = vst [vmem:[%s172 + $0x2d0] sm:$0xff] %v1256
      %1370 = vst [vmem:[%s172 + $0x2d8] sm:$0xff] %v1257
      %1371 = vst [vmem:[%s172 + $0x2e0] sm:$0xff] %v1258
      %1372 = vst [vmem:[%s172 + $0x2e8] sm:$0xff] %v1259
      %1373 = vst [vmem:[%s172 + $0x2f0] sm:$0xff] %v1260
      %1374 = vst [vmem:[%s172 + $0x2f8] sm:$0xff] %v1261
      %1375 = vst [vmem:[%s172 + $0x300] sm:$0xff] %v1262
      %1376 = vst [vmem:[%s172 + $0x308] sm:$0xff] %v1263
      %1377 = vst [vmem:[%s172 + $0x310] sm:$0xff] %v1264
      %1378 = vst [vmem:[%s172 + $0x318] sm:$0xff] %v1265
      %1379 = vst [vmem:[%s172 + $0x320] sm:$0xff] %v1266
      %1380 = vst [vmem:[%s172 + $0x328] sm:$0xff] %v1267
      %1381 = vst [vmem:[%s172 + $0x330] sm:$0xff] %v1268
      %1382 = vst [vmem:[%s172 + $0x338] sm:$0xff] %v1269
      %1383 = vst [vmem:[%s172 + $0x340] sm:$0xff] %v1270
      %1384 = vst [vmem:[%s172 + $0x348] sm:$0xff] %v1271
      %1385 = vst [vmem:[%s172 + $0x350] sm:$0xff] %v1272
      %1386 = vst [vmem:[%s172 + $0x358] sm:$0xff] %v1273
      %1387 = vst [vmem:[%s172 + $0x360] sm:$0xff] %v1274
      %1388 = vst [vmem:[%s172 + $0x368] sm:$0xff] %v1275
      %1389 = vst [vmem:[%s172 + $0x370] sm:$0xff] %v1276
      %1390 = vst [vmem:[%s172 + $0x378] sm:$0xff] %v1277
      %1391 = vst [vmem:[%s172 + $0x380] sm:$0xff] %v1278
      %s1392 = smul.u32 113, %s14
      %p1393 = scmp.lt.s32.totalorder %s1392, 903
      %s1394 = scalar_select %p1393, %s1392, 903
      %s1395 = smul.addr %s1394, 8
      %s1396 = scalar_lea.vmem %s3, %s1395
      // Predicated region
      $region33: #{conv_down_sample_forward.8} parent=31 // pred_check
        %p1397 = pneg %p100
      $region34: #{conv_down_sample_forward.8} parent=31 // pred_check_branch
        %1399 = sbr.rel (%p1397) target = $region36
      $region35: #{conv_down_sample_forward.8} parent=31 // pred_region
        %s1400 = smul.u32 113, %s14
      $region36: #{conv_down_sample_forward.8} parent=31 // pred_fallthru
        _
    $region32: #{conv_down_sample_forward.8} parent=5 // pred_fallthru
      _
    %p1401 = scmp.le.s32.totalorder 2, %s9
    // Predicated region
    $region37: #{conv_down_sample_forward.8} parent=5 // pred_check
      %p1402 = pneg %p1401
    $region38: #{conv_down_sample_forward.8} parent=5 // pred_check_branch
      %1404 = sbr.rel (%p1402) target = $region40
    $region39: #{conv_down_sample_forward.8} parent=5 // pred_region
      %s1405 = ssub.s32 %s9, 2
      // Predicated region
      $region41: #{conv_down_sample_forward.8} parent=39 // pred_check
        %p1406 = pneg %p106
      $region42: #{conv_down_sample_forward.8} parent=39 // pred_check_branch
        %1408 = sbr.rel (%p1406) target = $region44
      $region43: #{conv_down_sample_forward.8} parent=39 // pred_region
        %s1409 = smul.u32 113, %s15
        %p1410 = scmp.lt.s32.totalorder %s1409, 903
        %s1411 = scalar_select %p1410, %s1409, 903
        %s1412 = smul.addr %s1411, 8
        %s1413 = scalar_lea.vmem %s3, %s1412
      $region44: #{conv_down_sample_forward.8} parent=39 // pred_fallthru
        _
    $region40: #{conv_down_sample_forward.8} parent=5 // pred_fallthru
      _
  $region6: #{conv_down_sample_forward.8} parent=0 // loop_footer
    %s13 = sadd.s32 1, %s9
  $region7: #{conv_down_sample_forward.8} parent=0 // loop_footer_branch
    %8 = sbr.rel target = $region3
  $region8: #{conv_down_sample_forward.8} parent=0 // loop_exit
    _

// kernel: conv_down_sample_forward.9
$region0: #{conv_down_sample_forward.9}
  #allocation0 [shape = 'u32[]', space=smem, size = 0x4, offset = 0x4, fixed_abs, tag = 'smem constant byte address 0x4 - core index']
  #allocation1 [shape = 'u32[144,128]{1,0:T(1,128)}', space=vmem, size = 0x12000, scoped, tag = 'internal scratch']
  %s0 = inlined_call_operand.vmem [shape: f32[288,128], index: 0, kind: input, shape index: {}]
  %s1 = inlined_call_operand.vmem [shape: f32[128,128], index: 1, kind: input, shape index: {}]
  %s2 = inlined_call_operand.vmem [shape: f32[1,128], index: 2, kind: input, shape index: {}]
  %s3 = inlined_call_operand.vmem [shape: f32[288,128], index: 3, kind: output, shape index: {}]
  %s4 = sld [smem:[#allocation0]]
  $region22: #{conv_down_sample_forward.9} parent=0
    _
  %s6 = ssub.s32 1, %s4
  %s7 = scalar_select 0, %s6, %s4
  // Predicated region
  $region2: #{conv_down_sample_forward.9} parent=0 // pred_check
    _
  $region3: #{conv_down_sample_forward.9} parent=0 // pred_check_branch
    %9 = sbr.rel (0) target = $region5
  $region4: #{conv_down_sample_forward.9} parent=0 // pred_region
    _
  $region5: #{conv_down_sample_forward.9} parent=0 // pred_fallthru
    _
  // Predicated region
  $region6: #{conv_down_sample_forward.9} parent=0 // pred_check
    _
  $region7: #{conv_down_sample_forward.9} parent=0 // pred_check_branch
    %11 = sbr.rel (0) target = $region9
  $region8: #{conv_down_sample_forward.9} parent=0 // pred_region
    _
  $region9: #{conv_down_sample_forward.9} parent=0 // pred_fallthru
    _
  // Predicated region
  $region10: #{conv_down_sample_forward.9} parent=0 // pred_check
    _
  $region11: #{conv_down_sample_forward.9} parent=0 // pred_check_branch
    %13 = sbr.rel (0) target = $region13
  $region12: #{conv_down_sample_forward.9} parent=0 // pred_region
    _
  $region13: #{conv_down_sample_forward.9} parent=0 // pred_fallthru
    _
  %v14 = vld [vmem:[%s0] sm:$0xff]
  %v15 = vld [vmem:[%s0 + $0x8] sm:$0xff]
  %v16 = vld [vmem:[%s0 + $0x10] sm:$0xff]
  %v17 = vld [vmem:[%s0 + $0x18] sm:$0xff]
  %v18 = vld [vmem:[%s0 + $0x20] sm:$0xff]
  %v19 = vld [vmem:[%s0 + $0x28] sm:$0xff]
  %v20 = vld [vmem:[%s0 + $0x30] sm:$0xff]
  %v21 = vld [vmem:[%s0 + $0x38] sm:$0xff]
  %v22 = vld [vmem:[%s0 + $0x40] sm:$0xff]
  %v23 = vld [vmem:[%s0 + $0x48] sm:$0xff]
  %v24 = vld [vmem:[%s0 + $0x50] sm:$0xff]
  %v25 = vld [vmem:[%s0 + $0x58] sm:$0xff]
  %v26 = vld [vmem:[%s0 + $0x60] sm:$0xff]
  %v27 = vld [vmem:[%s0 + $0x68] sm:$0xff]
  %v28 = vld [vmem:[%s0 + $0x70] sm:$0xff]
  %v29 = vld [vmem:[%s0 + $0x78] sm:$0xff]
  %v30 = vld [vmem:[%s0 + $0x80] sm:$0xff]
  %v31 = vld [vmem:[%s0 + $0x88] sm:$0xff]
  %v32 = vld [vmem:[%s0 + $0x90] sm:$0xff]
  %v33 = vld [vmem:[%s0 + $0x98] sm:$0xff]
  %v34 = vld [vmem:[%s0 + $0xa0] sm:$0xff]
  %v35 = vld [vmem:[%s0 + $0xa8] sm:$0xff]
  %v36 = vld [vmem:[%s0 + $0xb0] sm:$0xff]
  %v37 = vld [vmem:[%s0 + $0xb8] sm:$0xff]
  %v38 = vld [vmem:[%s0 + $0xc0] sm:$0xff]
  %v39 = vld [vmem:[%s0 + $0xc8] sm:$0xff]
  %v40 = vld [vmem:[%s0 + $0xd0] sm:$0xff]
  %v41 = vld [vmem:[%s0 + $0xd8] sm:$0xff]
  %v42 = vld [vmem:[%s0 + $0xe0] sm:$0xff]
  %v43 = vld [vmem:[%s0 + $0xe8] sm:$0xff]
  %v44 = vld [vmem:[%s0 + $0xf0] sm:$0xff]
  %v45 = vld [vmem:[%s0 + $0xf8] sm:$0xff]
  %v46 = vld [vmem:[%s0 + $0x100] sm:$0xff]
  %v47 = vld [vmem:[%s0 + $0x108] sm:$0xff]
  %v48 = vld [vmem:[%s0 + $0x110] sm:$0xff]
  %v49 = vld [vmem:[%s0 + $0x118] sm:$0xff]
  %v50 = vld [vmem:[%s1] sm:$0xff]
  %v51 = vld [vmem:[%s1 + $0x8] sm:$0xff]
  %v52 = vld [vmem:[%s1 + $0x10] sm:$0xff]
  %v53 = vld [vmem:[%s1 + $0x18] sm:$0xff]
  %v54 = vld [vmem:[%s1 + $0x20] sm:$0xff]
  %v55 = vld [vmem:[%s1 + $0x28] sm:$0xff]
  %v56 = vld [vmem:[%s1 + $0x30] sm:$0xff]
  %v57 = vld [vmem:[%s1 + $0x38] sm:$0xff]
  %v58 = vld [vmem:[%s1 + $0x40] sm:$0xff]
  %v59 = vld [vmem:[%s1 + $0x48] sm:$0xff]
  %v60 = vld [vmem:[%s1 + $0x50] sm:$0xff]
  %v61 = vld [vmem:[%s1 + $0x58] sm:$0xff]
  %v62 = vld [vmem:[%s1 + $0x60] sm:$0xff]
  %v63 = vld [vmem:[%s1 + $0x68] sm:$0xff]
  %v64 = vld [vmem:[%s1 + $0x70] sm:$0xff]
  %v65 = vld [vmem:[%s1 + $0x78] sm:$0xff]
  %v66 = vld [vmem:[%s2] sm:$0x1]
  %v68 = vlaneseq
  %v69 = vshrl.u32 %v68, 7
  %v70 = vsub.s32 0, %v69
  %v71 = vrot.slane %v66, %v70
  %73 = vmatprep.subr.mxu0 0.0
  %74 = vmatpush1.msra.mxu0 %v50
  %75 = vmatprep.subr.mxu0 0.0
  %76 = vmatpush1.msra.mxu0 %v51
  %77 = vmatprep.subr.mxu0 0.0
  %78 = vmatpush1.msra.mxu0 %v52
  %79 = vmatprep.subr.mxu0 0.0
  %80 = vmatpush1.msra.mxu0 %v53
  %81 = vmatprep.subr.mxu0 0.0
  %82 = vmatpush1.msra.mxu0 %v54
  %83 = vmatprep.subr.mxu0 0.0
  %84 = vmatpush1.msra.mxu0 %v55
  %85 = vmatprep.subr.mxu0 0.0
  %86 = vmatpush1.msra.mxu0 %v56
  %87 = vmatprep.subr.mxu0 0.0
  %88 = vmatpush1.msra.mxu0 %v57
  %89 = vmatprep.subr.mxu0 0.0
  %90 = vmatpush1.msra.mxu0 %v58
  %91 = vmatprep.subr.mxu0 0.0
  %92 = vmatpush1.msra.mxu0 %v59
  %93 = vmatprep.subr.mxu0 0.0
  %94 = vmatpush1.msra.mxu0 %v60
  %95 = vmatprep.subr.mxu0 0.0
  %96 = vmatpush1.msra.mxu0 %v61
  %97 = vmatprep.subr.mxu0 0.0
  %98 = vmatpush1.msra.mxu0 %v62
  %99 = vmatprep.subr.mxu0 0.0
  %100 = vmatpush1.msra.mxu0 %v63
  %101 = vmatprep.subr.mxu0 0.0
  %102 = vmatpush1.msra.mxu0 %v64
  %103 = vmatprep.subr.mxu0 0.0
  %104 = vmatpush1.msra.mxu0 %v65
  %105 = vmatprep.subr.mxu0 0.0
  %106 = vmatpush1.msra.mxu0 0.0
  %107 = vmatprep.subr.mxu0 0.0
  %108 = vmatpush1.msra.mxu0 0.0
  %109 = vmatprep.subr.mxu0 0.0
  %110 = vmatpush1.msra.mxu0 0.0
  %111 = vmatprep.subr.mxu0 0.0
  %112 = vmatpush1.msra.mxu0 0.0
  %113 = vmatprep.subr.mxu0 0.0
  %114 = vmatpush1.msra.mxu0 0.0
  %115 = vmatprep.subr.mxu0 0.0
  %116 = vmatpush1.msra.mxu0 0.0
  %117 = vmatprep.subr.mxu0 0.0
  %118 = vmatpush1.msra.mxu0 0.0
  %119 = vmatprep.subr.mxu0 0.0
  %120 = vmatpush1.msra.mxu0 0.0
  %121 = vmatprep.subr.mxu0 0.0
  %122 = vmatpush1.msra.mxu0 0.0
  %123 = vmatprep.subr.mxu0 0.0
  %124 = vmatpush1.msra.mxu0 0.0
  %125 = vmatprep.subr.mxu0 0.0
  %126 = vmatpush1.msra.mxu0 0.0
  %127 = vmatprep.subr.mxu0 0.0
  %128 = vmatpush1.msra.mxu0 0.0
  %129 = vmatprep.subr.mxu0 0.0
  %130 = vmatpush1.msra.mxu0 0.0
  %131 = vmatprep.subr.mxu0 0.0
  %132 = vmatpush1.msra.mxu0 0.0
  %133 = vmatprep.subr.mxu0 0.0
  %134 = vmatpush1.msra.mxu0 0.0
  %135 = vmatprep.subr.mxu0 0.0
  %136 = vmatpush1.msra.mxu0 0.0
  %137 = vmatprep.mubr.f32.mxu0 0.0
  %138 = vmatmul.mubr.f32.gmra.mrb[0].mxu0 %v14
  %v139 = vpop.f32.mrb[0].mxu0
  %v140 = vadd.f32 %v71, %v139
  %v141 = vpop.f32.mrb[0].mxu0
  %142 = vmatprep.mubr.f32.mxu0 0.0
  %143 = vmatmul.mubr.f32.gmra.mrb[0].mxu0 %v15
  %v144 = vpop.f32.mrb[0].mxu0
  %v145 = vadd.f32 %v71, %v144
  %v146 = vpop.f32.mrb[0].mxu0
  %147 = vmatprep.mubr.f32.mxu0 0.0
  %148 = vmatmul.mubr.f32.gmra.mrb[0].mxu0 %v16
  %v149 = vpop.f32.mrb[0].mxu0
  %v150 = vadd.f32 %v71, %v149
  %v151 = vpop.f32.mrb[0].mxu0
  %152 = vmatprep.mubr.f32.mxu0 0.0
  %153 = vmatmul.mubr.f32.gmra.mrb[0].mxu0 %v17
  %v154 = vpop.f32.mrb[0].mxu0
  %v155 = vadd.f32 %v71, %v154
  %v156 = vpop.f32.mrb[0].mxu0
  %157 = vmatprep.mubr.f32.mxu0 0.0
  %158 = vmatmul.mubr.f32.gmra.mrb[0].mxu0 %v18
  %v159 = vpop.f32.mrb[0].mxu0
  %v160 = vadd.f32 %v71, %v159
  %v161 = vpop.f32.mrb[0].mxu0
  %162 = vmatprep.mubr.f32.mxu0 0.0
  %163 = vmatmul.mubr.f32.gmra.mrb[0].mxu0 %v19
  %v164 = vpop.f32.mrb[0].mxu0
  %v165 = vadd.f32 %v71, %v164
  %v166 = vpop.f32.mrb[0].mxu0
  %167 = vmatprep.mubr.f32.mxu0 0.0
  %168 = vmatmul.mubr.f32.gmra.mrb[0].mxu0 %v20
  %v169 = vpop.f32.mrb[0].mxu0
  %v170 = vadd.f32 %v71, %v169
  %v171 = vpop.f32.mrb[0].mxu0
  %172 = vmatprep.mubr.f32.mxu0 0.0
  %173 = vmatmul.mubr.f32.gmra.mrb[0].mxu0 %v21
  %v174 = vpop.f32.mrb[0].mxu0
  %v175 = vadd.f32 %v71, %v174
  %v176 = vpop.f32.mrb[0].mxu0
  %177 = vmatprep.mubr.f32.mxu0 0.0
  %178 = vmatmul.mubr.f32.gmra.mrb[0].mxu0 %v22
  %v179 = vpop.f32.mrb[0].mxu0
  %v180 = vadd.f32 %v71, %v179
  %v181 = vpop.f32.mrb[0].mxu0
  %182 = vmatprep.mubr.f32.mxu0 0.0
  %183 = vmatmul.mubr.f32.gmra.mrb[0].mxu0 %v23
  %v184 = vpop.f32.mrb[0].mxu0
  %v185 = vadd.f32 %v71, %v184
  %v186 = vpop.f32.mrb[0].mxu0
  %187 = vmatprep.mubr.f32.mxu0 0.0
  %188 = vmatmul.mubr.f32.gmra.mrb[0].mxu0 %v24
  %v189 = vpop.f32.mrb[0].mxu0
  %v190 = vadd.f32 %v71, %v189
  %v191 = vpop.f32.mrb[0].mxu0
  %192 = vmatprep.mubr.f32.mxu0 0.0
  %193 = vmatmul.mubr.f32.gmra.mrb[0].mxu0 %v25
  %v194 = vpop.f32.mrb[0].mxu0
  %v195 = vadd.f32 %v71, %v194
  %v196 = vpop.f32.mrb[0].mxu0
  %197 = vmatprep.mubr.f32.mxu0 0.0
  %198 = vmatmul.mubr.f32.gmra.mrb[0].mxu0 %v26
  %v199 = vpop.f32.mrb[0].mxu0
  %v200 = vadd.f32 %v71, %v199
  %v201 = vpop.f32.mrb[0].mxu0
  %202 = vmatprep.mubr.f32.mxu0 0.0
  %203 = vmatmul.mubr.f32.gmra.mrb[0].mxu0 %v27
  %v204 = vpop.f32.mrb[0].mxu0
  %v205 = vadd.f32 %v71, %v204
  %v206 = vpop.f32.mrb[0].mxu0
  %207 = vmatprep.mubr.f32.mxu0 0.0
  %208 = vmatmul.mubr.f32.gmra.mrb[0].mxu0 %v28
  %v209 = vpop.f32.mrb[0].mxu0
  %v210 = vadd.f32 %v71, %v209
  %v211 = vpop.f32.mrb[0].mxu0
  %212 = vmatprep.mubr.f32.mxu0 0.0
  %213 = vmatmul.mubr.f32.gmra.mrb[0].mxu0 %v29
  %v214 = vpop.f32.mrb[0].mxu0
  %v215 = vadd.f32 %v71, %v214
  %v216 = vpop.f32.mrb[0].mxu0
  %217 = vmatprep.mubr.f32.mxu0 0.0
  %218 = vmatmul.mubr.f32.gmra.mrb[0].mxu0 %v30
  %v219 = vpop.f32.mrb[0].mxu0
  %v220 = vadd.f32 %v71, %v219
  %v221 = vpop.f32.mrb[0].mxu0
  %222 = vmatprep.mubr.f32.mxu0 0.0
  %223 = vmatmul.mubr.f32.gmra.mrb[0].mxu0 %v31
  %v224 = vpop.f32.mrb[0].mxu0
  %v225 = vadd.f32 %v71, %v224
  %v226 = vpop.f32.mrb[0].mxu0
  %227 = vmatprep.mubr.f32.mxu0 0.0
  %228 = vmatmul.mubr.f32.gmra.mrb[0].mxu0 %v32
  %v229 = vpop.f32.mrb[0].mxu0
  %v230 = vadd.f32 %v71, %v229
  %v231 = vpop.f32.mrb[0].mxu0
  %232 = vmatprep.mubr.f32.mxu0 0.0
  %233 = vmatmul.mubr.f32.gmra.mrb[0].mxu0 %v33
  %v234 = vpop.f32.mrb[0].mxu0
  %v235 = vadd.f32 %v71, %v234
  %v236 = vpop.f32.mrb[0].mxu0
  %237 = vmatprep.mubr.f32.mxu0 0.0
  %238 = vmatmul.mubr.f32.gmra.mrb[0].mxu0 %v34
  %v239 = vpop.f32.mrb[0].mxu0
  %v240 = vadd.f32 %v71, %v239
  %v241 = vpop.f32.mrb[0].mxu0
  %242 = vmatprep.mubr.f32.mxu0 0.0
  %243 = vmatmul.mubr.f32.gmra.mrb[0].mxu0 %v35
  %v244 = vpop.f32.mrb[0].mxu0
  %v245 = vadd.f32 %v71, %v244
  %v246 = vpop.f32.mrb[0].mxu0
  %247 = vmatprep.mubr.f32.mxu0 0.0
  %248 = vmatmul.mubr.f32.gmra.mrb[0].mxu0 %v36
  %v249 = vpop.f32.mrb[0].mxu0
  %v250 = vadd.f32 %v71, %v249
  %v251 = vpop.f32.mrb[0].mxu0
  %252 = vmatprep.mubr.f32.mxu0 0.0
  %253 = vmatmul.mubr.f32.gmra.mrb[0].mxu0 %v37
  %v254 = vpop.f32.mrb[0].mxu0
  %v255 = vadd.f32 %v71, %v254
  %v256 = vpop.f32.mrb[0].mxu0
  %257 = vmatprep.mubr.f32.mxu0 0.0
  %258 = vmatmul.mubr.f32.gmra.mrb[0].mxu0 %v38
  %v259 = vpop.f32.mrb[0].mxu0
  %v260 = vadd.f32 %v71, %v259
  %v261 = vpop.f32.mrb[0].mxu0
  %262 = vmatprep.mubr.f32.mxu0 0.0
  %263 = vmatmul.mubr.f32.gmra.mrb[0].mxu0 %v39
  %v264 = vpop.f32.mrb[0].mxu0
  %v265 = vadd.f32 %v71, %v264
  %v266 = vpop.f32.mrb[0].mxu0
  %267 = vmatprep.mubr.f32.mxu0 0.0
  %268 = vmatmul.mubr.f32.gmra.mrb[0].mxu0 %v40
  %v269 = vpop.f32.mrb[0].mxu0
  %v270 = vadd.f32 %v71, %v269
  %v271 = vpop.f32.mrb[0].mxu0
  %272 = vmatprep.mubr.f32.mxu0 0.0
  %273 = vmatmul.mubr.f32.gmra.mrb[0].mxu0 %v41
  %v274 = vpop.f32.mrb[0].mxu0
  %v275 = vadd.f32 %v71, %v274
  %v276 = vpop.f32.mrb[0].mxu0
  %277 = vmatprep.mubr.f32.mxu0 0.0
  %278 = vmatmul.mubr.f32.gmra.mrb[0].mxu0 %v42
  %v279 = vpop.f32.mrb[0].mxu0
  %v280 = vadd.f32 %v71, %v279
  %v281 = vpop.f32.mrb[0].mxu0
  %282 = vmatprep.mubr.f32.mxu0 0.0
  %283 = vmatmul.mubr.f32.gmra.mrb[0].mxu0 %v43
  %v284 = vpop.f32.mrb[0].mxu0
  %v285 = vadd.f32 %v71, %v284
  %v286 = vpop.f32.mrb[0].mxu0
  %287 = vmatprep.mubr.f32.mxu0 0.0
  %288 = vmatmul.mubr.f32.gmra.mrb[0].mxu0 %v44
  %v289 = vpop.f32.mrb[0].mxu0
  %v290 = vadd.f32 %v71, %v289
  %v291 = vpop.f32.mrb[0].mxu0
  %292 = vmatprep.mubr.f32.mxu0 0.0
  %293 = vmatmul.mubr.f32.gmra.mrb[0].mxu0 %v45
  %v294 = vpop.f32.mrb[0].mxu0
  %v295 = vadd.f32 %v71, %v294
  %v296 = vpop.f32.mrb[0].mxu0
  %297 = vmatprep.mubr.f32.mxu0 0.0
  %298 = vmatmul.mubr.f32.gmra.mrb[0].mxu0 %v46
  %v299 = vpop.f32.mrb[0].mxu0
  %v300 = vadd.f32 %v71, %v299
  %v301 = vpop.f32.mrb[0].mxu0
  %302 = vmatprep.mubr.f32.mxu0 0.0
  %303 = vmatmul.mubr.f32.gmra.mrb[0].mxu0 %v47
  %v304 = vpop.f32.mrb[0].mxu0
  %v305 = vadd.f32 %v71, %v304
  %v306 = vpop.f32.mrb[0].mxu0
  %307 = vmatprep.mubr.f32.mxu0 0.0
  %308 = vmatmul.mubr.f32.gmra.mrb[0].mxu0 %v48
  %v309 = vpop.f32.mrb[0].mxu0
  %v310 = vadd.f32 %v71, %v309
  %v311 = vpop.f32.mrb[0].mxu0
  %312 = vmatprep.mubr.f32.mxu0 0.0
  %313 = vmatmul.mubr.f32.gmra.mrb[0].mxu0 %v49
  %v314 = vpop.f32.mrb[0].mxu0
  %v315 = vadd.f32 %v71, %v314
  %v316 = vpop.f32.mrb[0].mxu0
  %317 = vdwg.mxu0
  %vm318 = vcmp.ge.f32.partialorder %v140, 0.0
  %vm319 = vcmp.ge.f32.partialorder %v145, 0.0
  %vm320 = vcmp.ge.f32.partialorder %v150, 0.0
  %vm321 = vcmp.ge.f32.partialorder %v155, 0.0
  %vm322 = vcmp.ge.f32.partialorder %v160, 0.0
  %vm323 = vcmp.ge.f32.partialorder %v165, 0.0
  %vm324 = vcmp.ge.f32.partialorder %v170, 0.0
  %vm325 = vcmp.ge.f32.partialorder %v175, 0.0
  %vm326 = vcmp.ge.f32.partialorder %v180, 0.0
  %vm327 = vcmp.ge.f32.partialorder %v185, 0.0
  %vm328 = vcmp.ge.f32.partialorder %v190, 0.0
  %vm329 = vcmp.ge.f32.partialorder %v195, 0.0
  %vm330 = vcmp.ge.f32.partialorder %v200, 0.0
  %vm331 = vcmp.ge.f32.partialorder %v205, 0.0
  %vm332 = vcmp.ge.f32.partialorder %v210, 0.0
  %vm333 = vcmp.ge.f32.partialorder %v215, 0.0
  %vm334 = vcmp.ge.f32.partialorder %v220, 0.0
  %vm335 = vcmp.ge.f32.partialorder %v225, 0.0
  %vm336 = vcmp.ge.f32.partialorder %v230, 0.0
  %vm337 = vcmp.ge.f32.partialorder %v235, 0.0
  %vm338 = vcmp.ge.f32.partialorder %v240, 0.0
  %vm339 = vcmp.ge.f32.partialorder %v245, 0.0
  %vm340 = vcmp.ge.f32.partialorder %v250, 0.0
  %vm341 = vcmp.ge.f32.partialorder %v255, 0.0
  %vm342 = vcmp.ge.f32.partialorder %v260, 0.0
  %vm343 = vcmp.ge.f32.partialorder %v265, 0.0
  %vm344 = vcmp.ge.f32.partialorder %v270, 0.0
  %vm345 = vcmp.ge.f32.partialorder %v275, 0.0
  %vm346 = vcmp.ge.f32.partialorder %v280, 0.0
  %vm347 = vcmp.ge.f32.partialorder %v285, 0.0
  %vm348 = vcmp.ge.f32.partialorder %v290, 0.0
  %vm349 = vcmp.ge.f32.partialorder %v295, 0.0
  %vm350 = vcmp.ge.f32.partialorder %v300, 0.0
  %vm351 = vcmp.ge.f32.partialorder %v305, 0.0
  %vm352 = vcmp.ge.f32.partialorder %v310, 0.0
  %vm353 = vcmp.ge.f32.partialorder %v315, 0.0
  %v354 = vmul.f32 %v140, 0.2
  %v355 = vmul.f32 %v145, 0.2
  %v356 = vmul.f32 %v150, 0.2
  %v357 = vmul.f32 %v155, 0.2
  %v358 = vmul.f32 %v160, 0.2
  %v359 = vmul.f32 %v165, 0.2
  %v360 = vmul.f32 %v170, 0.2
  %v361 = vmul.f32 %v175, 0.2
  %v362 = vmul.f32 %v180, 0.2
  %v363 = vmul.f32 %v185, 0.2
  %v364 = vmul.f32 %v190, 0.2
  %v365 = vmul.f32 %v195, 0.2
  %v366 = vmul.f32 %v200, 0.2
  %v367 = vmul.f32 %v205, 0.2
  %v368 = vmul.f32 %v210, 0.2
  %v369 = vmul.f32 %v215, 0.2
  %v370 = vmul.f32 %v220, 0.2
  %v371 = vmul.f32 %v225, 0.2
  %v372 = vmul.f32 %v230, 0.2
  %v373 = vmul.f32 %v235, 0.2
  %v374 = vmul.f32 %v240, 0.2
  %v375 = vmul.f32 %v245, 0.2
  %v376 = vmul.f32 %v250, 0.2
  %v377 = vmul.f32 %v255, 0.2
  %v378 = vmul.f32 %v260, 0.2
  %v379 = vmul.f32 %v265, 0.2
  %v380 = vmul.f32 %v270, 0.2
  %v381 = vmul.f32 %v275, 0.2
  %v382 = vmul.f32 %v280, 0.2
  %v383 = vmul.f32 %v285, 0.2
  %v384 = vmul.f32 %v290, 0.2
  %v385 = vmul.f32 %v295, 0.2
  %v386 = vmul.f32 %v300, 0.2
  %v387 = vmul.f32 %v305, 0.2
  %v388 = vmul.f32 %v310, 0.2
  %v389 = vmul.f32 %v315, 0.2
  %v390 = vsel %vm318, %v140, %v354
  %v391 = vsel %vm319, %v145, %v355
  %v392 = vsel %vm320, %v150, %v356
  %v393 = vsel %vm321, %v155, %v357
  %v394 = vsel %vm322, %v160, %v358
  %v395 = vsel %vm323, %v165, %v359
  %v396 = vsel %vm324, %v170, %v360
  %v397 = vsel %vm325, %v175, %v361
  %v398 = vsel %vm326, %v180, %v362
  %v399 = vsel %vm327, %v185, %v363
  %v400 = vsel %vm328, %v190, %v364
  %v401 = vsel %vm329, %v195, %v365
  %v402 = vsel %vm330, %v200, %v366
  %v403 = vsel %vm331, %v205, %v367
  %v404 = vsel %vm332, %v210, %v368
  %v405 = vsel %vm333, %v215, %v369
  %v406 = vsel %vm334, %v220, %v370
  %v407 = vsel %vm335, %v225, %v371
  %v408 = vsel %vm336, %v230, %v372
  %v409 = vsel %vm337, %v235, %v373
  %v410 = vsel %vm338, %v240, %v374
  %v411 = vsel %vm339, %v245, %v375
  %v412 = vsel %vm340, %v250, %v376
  %v413 = vsel %vm341, %v255, %v377
  %v414 = vsel %vm342, %v260, %v378
  %v415 = vsel %vm343, %v265, %v379
  %v416 = vsel %vm344, %v270, %v380
  %v417 = vsel %vm345, %v275, %v381
  %v418 = vsel %vm346, %v280, %v382
  %v419 = vsel %vm347, %v285, %v383
  %v420 = vsel %vm348, %v290, %v384
  %v421 = vsel %vm349, %v295, %v385
  %v422 = vsel %vm350, %v300, %v386
  %v423 = vsel %vm351, %v305, %v387
  %v424 = vsel %vm352, %v310, %v388
  %v425 = vsel %vm353, %v315, %v389
  %426 = vst [vmem:[%s3] sm:$0xff] %v390
  %427 = vst [vmem:[%s3 + $0x8] sm:$0xff] %v391
  %428 = vst [vmem:[%s3 + $0x10] sm:$0xff] %v392
  %429 = vst [vmem:[%s3 + $0x18] sm:$0xff] %v393
  %430 = vst [vmem:[%s3 + $0x20] sm:$0xff] %v394
  %431 = vst [vmem:[%s3 + $0x28] sm:$0xff] %v395
  %432 = vst [vmem:[%s3 + $0x30] sm:$0xff] %v396
  %433 = vst [vmem:[%s3 + $0x38] sm:$0xff] %v397
  %434 = vst [vmem:[%s3 + $0x40] sm:$0xff] %v398
  %435 = vst [vmem:[%s3 + $0x48] sm:$0xff] %v399
  %436 = vst [vmem:[%s3 + $0x50] sm:$0xff] %v400
  %437 = vst [vmem:[%s3 + $0x58] sm:$0xff] %v401
  %438 = vst [vmem:[%s3 + $0x60] sm:$0xff] %v402
  %439 = vst [vmem:[%s3 + $0x68] sm:$0xff] %v403
  %440 = vst [vmem:[%s3 + $0x70] sm:$0xff] %v404
  %441 = vst [vmem:[%s3 + $0x78] sm:$0xff] %v405
  %442 = vst [vmem:[%s3 + $0x80] sm:$0xff] %v406
  %443 = vst [vmem:[%s3 + $0x88] sm:$0xff] %v407
  %444 = vst [vmem:[%s3 + $0x90] sm:$0xff] %v408
  %445 = vst [vmem:[%s3 + $0x98] sm:$0xff] %v409
  %446 = vst [vmem:[%s3 + $0xa0] sm:$0xff] %v410
  %447 = vst [vmem:[%s3 + $0xa8] sm:$0xff] %v411
  %448 = vst [vmem:[%s3 + $0xb0] sm:$0xff] %v412
  %449 = vst [vmem:[%s3 + $0xb8] sm:$0xff] %v413
  %450 = vst [vmem:[%s3 + $0xc0] sm:$0xff] %v414
  %451 = vst [vmem:[%s3 + $0xc8] sm:$0xff] %v415
  %452 = vst [vmem:[%s3 + $0xd0] sm:$0xff] %v416
  %453 = vst [vmem:[%s3 + $0xd8] sm:$0xff] %v417
  %454 = vst [vmem:[%s3 + $0xe0] sm:$0xff] %v418
  %455 = vst [vmem:[%s3 + $0xe8] sm:$0xff] %v419
  %456 = vst [vmem:[%s3 + $0xf0] sm:$0xff] %v420
  %457 = vst [vmem:[%s3 + $0xf8] sm:$0xff] %v421
  %458 = vst [vmem:[%s3 + $0x100] sm:$0xff] %v422
  %459 = vst [vmem:[%s3 + $0x108] sm:$0xff] %v423
  %460 = vst [vmem:[%s3 + $0x110] sm:$0xff] %v424
  %461 = vst [vmem:[%s3 + $0x118] sm:$0xff] %v425
  // Predicated region
  $region14: #{conv_down_sample_forward.9} parent=0 // pred_check
    _
  $region15: #{conv_down_sample_forward.9} parent=0 // pred_check_branch
    %463 = sbr.rel (0) target = $region17
  $region16: #{conv_down_sample_forward.9} parent=0 // pred_region
    _
  $region17: #{conv_down_sample_forward.9} parent=0 // pred_fallthru
    _
  // Predicated region
  $region18: #{conv_down_sample_forward.9} parent=0 // pred_check
    _
  $region19: #{conv_down_sample_forward.9} parent=0 // pred_check_branch
    %465 = sbr.rel (0) target = $region21
  $region20: #{conv_down_sample_forward.9} parent=0 // pred_region
    _
  $region21: #{conv_down_sample_forward.9} parent=0 // pred_fallthru
    _

// kernel: conv_down_sample_forward.10
$region0: #{conv_down_sample_forward.10}
  #allocation0 [shape = 'u32[]', space=smem, size = 0x4, offset = 0x4, fixed_abs, tag = 'smem constant byte address 0x4 - core index']
  #allocation1 [shape = 'u32[144,128]{1,0:T(1,128)}', space=vmem, size = 0x12000, scoped, tag = 'internal scratch']
  %s0 = inlined_call_operand.vmem [shape: f32[288,128], index: 0, kind: input, shape index: {}]
  %s1 = inlined_call_operand.vmem [shape: f32[128,128], index: 1, kind: input, shape index: {}]
  %s2 = inlined_call_operand.vmem [shape: f32[1,128], index: 2, kind: input, shape index: {}]
  %s3 = inlined_call_operand.vmem [shape: f32[288,128], index: 3, kind: input, shape index: {}, may-alias: {3,4}]
  %s4 = inlined_call_operand.vmem [shape: f32[288,128], index: 4, kind: output, shape index: {}, may-alias: {3,4}]
  %s5 = sld [smem:[#allocation0]]
  $region26: #{conv_down_sample_forward.10} parent=0
    _
  %s7 = ssub.s32 1, %s5
  %s8 = scalar_select 0, %s7, %s5
  // Predicated region
  $region2: #{conv_down_sample_forward.10} parent=0 // pred_check
    _
  $region3: #{conv_down_sample_forward.10} parent=0 // pred_check_branch
    %10 = sbr.rel (0) target = $region5
  $region4: #{conv_down_sample_forward.10} parent=0 // pred_region
    _
  $region5: #{conv_down_sample_forward.10} parent=0 // pred_fallthru
    _
  // Predicated region
  $region6: #{conv_down_sample_forward.10} parent=0 // pred_check
    _
  $region7: #{conv_down_sample_forward.10} parent=0 // pred_check_branch
    %12 = sbr.rel (0) target = $region9
  $region8: #{conv_down_sample_forward.10} parent=0 // pred_region
    _
  $region9: #{conv_down_sample_forward.10} parent=0 // pred_fallthru
    _
  // Predicated region
  $region10: #{conv_down_sample_forward.10} parent=0 // pred_check
    _
  $region11: #{conv_down_sample_forward.10} parent=0 // pred_check_branch
    %14 = sbr.rel (0) target = $region13
  $region12: #{conv_down_sample_forward.10} parent=0 // pred_region
    _
  $region13: #{conv_down_sample_forward.10} parent=0 // pred_fallthru
    _
  // Predicated region
  $region14: #{conv_down_sample_forward.10} parent=0 // pred_check
    _
  $region15: #{conv_down_sample_forward.10} parent=0 // pred_check_branch
    %16 = sbr.rel (0) target = $region17
  $region16: #{conv_down_sample_forward.10} parent=0 // pred_region
    _
  $region17: #{conv_down_sample_forward.10} parent=0 // pred_fallthru
    _
  %v17 = vld [vmem:[%s0] sm:$0xff]
  %v18 = vld [vmem:[%s0 + $0x8] sm:$0xff]
  %v19 = vld [vmem:[%s0 + $0x10] sm:$0xff]
  %v20 = vld [vmem:[%s0 + $0x18] sm:$0xff]
  %v21 = vld [vmem:[%s0 + $0x20] sm:$0xff]
  %v22 = vld [vmem:[%s0 + $0x28] sm:$0xff]
  %v23 = vld [vmem:[%s0 + $0x30] sm:$0xff]
  %v24 = vld [vmem:[%s0 + $0x38] sm:$0xff]
  %v25 = vld [vmem:[%s0 + $0x40] sm:$0xff]
  %v26 = vld [vmem:[%s0 + $0x48] sm:$0xff]
  %v27 = vld [vmem:[%s0 + $0x50] sm:$0xff]
  %v28 = vld [vmem:[%s0 + $0x58] sm:$0xff]
  %v29 = vld [vmem:[%s0 + $0x60] sm:$0xff]
  %v30 = vld [vmem:[%s0 + $0x68] sm:$0xff]
  %v31 = vld [vmem:[%s0 + $0x70] sm:$0xff]
  %v32 = vld [vmem:[%s0 + $0x78] sm:$0xff]
  %v33 = vld [vmem:[%s0 + $0x80] sm:$0xff]
  %v34 = vld [vmem:[%s0 + $0x88] sm:$0xff]
  %v35 = vld [vmem:[%s0 + $0x90] sm:$0xff]
  %v36 = vld [vmem:[%s0 + $0x98] sm:$0xff]
  %v37 = vld [vmem:[%s0 + $0xa0] sm:$0xff]
  %v38 = vld [vmem:[%s0 + $0xa8] sm:$0xff]
  %v39 = vld [vmem:[%s0 + $0xb0] sm:$0xff]
  %v40 = vld [vmem:[%s0 + $0xb8] sm:$0xff]
  %v41 = vld [vmem:[%s0 + $0xc0] sm:$0xff]
  %v42 = vld [vmem:[%s0 + $0xc8] sm:$0xff]
  %v43 = vld [vmem:[%s0 + $0xd0] sm:$0xff]
  %v44 = vld [vmem:[%s0 + $0xd8] sm:$0xff]
  %v45 = vld [vmem:[%s0 + $0xe0] sm:$0xff]
  %v46 = vld [vmem:[%s0 + $0xe8] sm:$0xff]
  %v47 = vld [vmem:[%s0 + $0xf0] sm:$0xff]
  %v48 = vld [vmem:[%s0 + $0xf8] sm:$0xff]
  %v49 = vld [vmem:[%s0 + $0x100] sm:$0xff]
  %v50 = vld [vmem:[%s0 + $0x108] sm:$0xff]
  %v51 = vld [vmem:[%s0 + $0x110] sm:$0xff]
  %v52 = vld [vmem:[%s0 + $0x118] sm:$0xff]
  %v53 = vld [vmem:[%s1] sm:$0xff]
  %v54 = vld [vmem:[%s1 + $0x8] sm:$0xff]
  %v55 = vld [vmem:[%s1 + $0x10] sm:$0xff]
  %v56 = vld [vmem:[%s1 + $0x18] sm:$0xff]
  %v57 = vld [vmem:[%s1 + $0x20] sm:$0xff]
  %v58 = vld [vmem:[%s1 + $0x28] sm:$0xff]
  %v59 = vld [vmem:[%s1 + $0x30] sm:$0xff]
  %v60 = vld [vmem:[%s1 + $0x38] sm:$0xff]
  %v61 = vld [vmem:[%s1 + $0x40] sm:$0xff]
  %v62 = vld [vmem:[%s1 + $0x48] sm:$0xff]
  %v63 = vld [vmem:[%s1 + $0x50] sm:$0xff]
  %v64 = vld [vmem:[%s1 + $0x58] sm:$0xff]
  %v65 = vld [vmem:[%s1 + $0x60] sm:$0xff]
  %v66 = vld [vmem:[%s1 + $0x68] sm:$0xff]
  %v67 = vld [vmem:[%s1 + $0x70] sm:$0xff]
  %v68 = vld [vmem:[%s1 + $0x78] sm:$0xff]
  %v69 = vld [vmem:[%s2] sm:$0x1]
  %v71 = vlaneseq
  %v72 = vshrl.u32 %v71, 7
  %v73 = vsub.s32 0, %v72
  %v74 = vrot.slane %v69, %v73
  %76 = vmatprep.subr.mxu0 0.0
  %77 = vmatpush1.msra.mxu0 %v53
  %78 = vmatprep.subr.mxu0 0.0
  %79 = vmatpush1.msra.mxu0 %v54
  %80 = vmatprep.subr.mxu0 0.0
  %81 = vmatpush1.msra.mxu0 %v55
  %82 = vmatprep.subr.mxu0 0.0
  %83 = vmatpush1.msra.mxu0 %v56
  %84 = vmatprep.subr.mxu0 0.0
  %85 = vmatpush1.msra.mxu0 %v57
  %86 = vmatprep.subr.mxu0 0.0
  %87 = vmatpush1.msra.mxu0 %v58
  %88 = vmatprep.subr.mxu0 0.0
  %89 = vmatpush1.msra.mxu0 %v59
  %90 = vmatprep.subr.mxu0 0.0
  %91 = vmatpush1.msra.mxu0 %v60
  %92 = vmatprep.subr.mxu0 0.0
  %93 = vmatpush1.msra.mxu0 %v61
  %94 = vmatprep.subr.mxu0 0.0
  %95 = vmatpush1.msra.mxu0 %v62
  %96 = vmatprep.subr.mxu0 0.0
  %97 = vmatpush1.msra.mxu0 %v63
  %98 = vmatprep.subr.mxu0 0.0
  %99 = vmatpush1.msra.mxu0 %v64
  %100 = vmatprep.subr.mxu0 0.0
  %101 = vmatpush1.msra.mxu0 %v65
  %102 = vmatprep.subr.mxu0 0.0
  %103 = vmatpush1.msra.mxu0 %v66
  %104 = vmatprep.subr.mxu0 0.0
  %105 = vmatpush1.msra.mxu0 %v67
  %106 = vmatprep.subr.mxu0 0.0
  %107 = vmatpush1.msra.mxu0 %v68
  %108 = vmatprep.subr.mxu0 0.0
  %109 = vmatpush1.msra.mxu0 0.0
  %110 = vmatprep.subr.mxu0 0.0
  %111 = vmatpush1.msra.mxu0 0.0
  %112 = vmatprep.subr.mxu0 0.0
  %113 = vmatpush1.msra.mxu0 0.0
  %114 = vmatprep.subr.mxu0 0.0
  %115 = vmatpush1.msra.mxu0 0.0
  %116 = vmatprep.subr.mxu0 0.0
  %117 = vmatpush1.msra.mxu0 0.0
  %118 = vmatprep.subr.mxu0 0.0
  %119 = vmatpush1.msra.mxu0 0.0
  %120 = vmatprep.subr.mxu0 0.0
  %121 = vmatpush1.msra.mxu0 0.0
  %122 = vmatprep.subr.mxu0 0.0
  %123 = vmatpush1.msra.mxu0 0.0
  %124 = vmatprep.subr.mxu0 0.0
  %125 = vmatpush1.msra.mxu0 0.0
  %126 = vmatprep.subr.mxu0 0.0
  %127 = vmatpush1.msra.mxu0 0.0
  %128 = vmatprep.subr.mxu0 0.0
  %129 = vmatpush1.msra.mxu0 0.0
  %130 = vmatprep.subr.mxu0 0.0
  %131 = vmatpush1.msra.mxu0 0.0
  %132 = vmatprep.subr.mxu0 0.0
  %133 = vmatpush1.msra.mxu0 0.0
  %134 = vmatprep.subr.mxu0 0.0
  %135 = vmatpush1.msra.mxu0 0.0
  %136 = vmatprep.subr.mxu0 0.0
  %137 = vmatpush1.msra.mxu0 0.0
  %138 = vmatprep.subr.mxu0 0.0
  %139 = vmatpush1.msra.mxu0 0.0
  %140 = vmatprep.mubr.f32.mxu0 0.0
  %141 = vmatmul.mubr.f32.gmra.mrb[0].mxu0 %v17
  %v142 = vpop.f32.mrb[0].mxu0
  %v143 = vadd.f32 %v74, %v142
  %v144 = vpop.f32.mrb[0].mxu0
  %145 = vmatprep.mubr.f32.mxu0 0.0
  %146 = vmatmul.mubr.f32.gmra.mrb[0].mxu0 %v18
  %v147 = vpop.f32.mrb[0].mxu0
  %v148 = vadd.f32 %v74, %v147
  %v149 = vpop.f32.mrb[0].mxu0
  %150 = vmatprep.mubr.f32.mxu0 0.0
  %151 = vmatmul.mubr.f32.gmra.mrb[0].mxu0 %v19
  %v152 = vpop.f32.mrb[0].mxu0
  %v153 = vadd.f32 %v74, %v152
  %v154 = vpop.f32.mrb[0].mxu0
  %155 = vmatprep.mubr.f32.mxu0 0.0
  %156 = vmatmul.mubr.f32.gmra.mrb[0].mxu0 %v20
  %v157 = vpop.f32.mrb[0].mxu0
  %v158 = vadd.f32 %v74, %v157
  %v159 = vpop.f32.mrb[0].mxu0
  %160 = vmatprep.mubr.f32.mxu0 0.0
  %161 = vmatmul.mubr.f32.gmra.mrb[0].mxu0 %v21
  %v162 = vpop.f32.mrb[0].mxu0
  %v163 = vadd.f32 %v74, %v162
  %v164 = vpop.f32.mrb[0].mxu0
  %165 = vmatprep.mubr.f32.mxu0 0.0
  %166 = vmatmul.mubr.f32.gmra.mrb[0].mxu0 %v22
  %v167 = vpop.f32.mrb[0].mxu0
  %v168 = vadd.f32 %v74, %v167
  %v169 = vpop.f32.mrb[0].mxu0
  %170 = vmatprep.mubr.f32.mxu0 0.0
  %171 = vmatmul.mubr.f32.gmra.mrb[0].mxu0 %v23
  %v172 = vpop.f32.mrb[0].mxu0
  %v173 = vadd.f32 %v74, %v172
  %v174 = vpop.f32.mrb[0].mxu0
  %175 = vmatprep.mubr.f32.mxu0 0.0
  %176 = vmatmul.mubr.f32.gmra.mrb[0].mxu0 %v24
  %v177 = vpop.f32.mrb[0].mxu0
  %v178 = vadd.f32 %v74, %v177
  %v179 = vpop.f32.mrb[0].mxu0
  %180 = vmatprep.mubr.f32.mxu0 0.0
  %181 = vmatmul.mubr.f32.gmra.mrb[0].mxu0 %v25
  %v182 = vpop.f32.mrb[0].mxu0
  %v183 = vadd.f32 %v74, %v182
  %v184 = vpop.f32.mrb[0].mxu0
  %185 = vmatprep.mubr.f32.mxu0 0.0
  %186 = vmatmul.mubr.f32.gmra.mrb[0].mxu0 %v26
  %v187 = vpop.f32.mrb[0].mxu0
  %v188 = vadd.f32 %v74, %v187
  %v189 = vpop.f32.mrb[0].mxu0
  %190 = vmatprep.mubr.f32.mxu0 0.0
  %191 = vmatmul.mubr.f32.gmra.mrb[0].mxu0 %v27
  %v192 = vpop.f32.mrb[0].mxu0
  %v193 = vadd.f32 %v74, %v192
  %v194 = vpop.f32.mrb[0].mxu0
  %195 = vmatprep.mubr.f32.mxu0 0.0
  %196 = vmatmul.mubr.f32.gmra.mrb[0].mxu0 %v28
  %v197 = vpop.f32.mrb[0].mxu0
  %v198 = vadd.f32 %v74, %v197
  %v199 = vpop.f32.mrb[0].mxu0
  %200 = vmatprep.mubr.f32.mxu0 0.0
  %201 = vmatmul.mubr.f32.gmra.mrb[0].mxu0 %v29
  %v202 = vpop.f32.mrb[0].mxu0
  %v203 = vadd.f32 %v74, %v202
  %v204 = vpop.f32.mrb[0].mxu0
  %205 = vmatprep.mubr.f32.mxu0 0.0
  %206 = vmatmul.mubr.f32.gmra.mrb[0].mxu0 %v30
  %v207 = vpop.f32.mrb[0].mxu0
  %v208 = vadd.f32 %v74, %v207
  %v209 = vpop.f32.mrb[0].mxu0
  %210 = vmatprep.mubr.f32.mxu0 0.0
  %211 = vmatmul.mubr.f32.gmra.mrb[0].mxu0 %v31
  %v212 = vpop.f32.mrb[0].mxu0
  %v213 = vadd.f32 %v74, %v212
  %v214 = vpop.f32.mrb[0].mxu0
  %215 = vmatprep.mubr.f32.mxu0 0.0
  %216 = vmatmul.mubr.f32.gmra.mrb[0].mxu0 %v32
  %v217 = vpop.f32.mrb[0].mxu0
  %v218 = vadd.f32 %v74, %v217
  %v219 = vpop.f32.mrb[0].mxu0
  %220 = vmatprep.mubr.f32.mxu0 0.0
  %221 = vmatmul.mubr.f32.gmra.mrb[0].mxu0 %v33
  %v222 = vpop.f32.mrb[0].mxu0
  %v223 = vadd.f32 %v74, %v222
  %v224 = vpop.f32.mrb[0].mxu0
  %225 = vmatprep.mubr.f32.mxu0 0.0
  %226 = vmatmul.mubr.f32.gmra.mrb[0].mxu0 %v34
  %v227 = vpop.f32.mrb[0].mxu0
  %v228 = vadd.f32 %v74, %v227
  %v229 = vpop.f32.mrb[0].mxu0
  %230 = vmatprep.mubr.f32.mxu0 0.0
  %231 = vmatmul.mubr.f32.gmra.mrb[0].mxu0 %v35
  %v232 = vpop.f32.mrb[0].mxu0
  %v233 = vadd.f32 %v74, %v232
  %v234 = vpop.f32.mrb[0].mxu0
  %235 = vmatprep.mubr.f32.mxu0 0.0
  %236 = vmatmul.mubr.f32.gmra.mrb[0].mxu0 %v36
  %v237 = vpop.f32.mrb[0].mxu0
  %v238 = vadd.f32 %v74, %v237
  %v239 = vpop.f32.mrb[0].mxu0
  %240 = vmatprep.mubr.f32.mxu0 0.0
  %241 = vmatmul.mubr.f32.gmra.mrb[0].mxu0 %v37
  %v242 = vpop.f32.mrb[0].mxu0
  %v243 = vadd.f32 %v74, %v242
  %v244 = vpop.f32.mrb[0].mxu0
  %245 = vmatprep.mubr.f32.mxu0 0.0
  %246 = vmatmul.mubr.f32.gmra.mrb[0].mxu0 %v38
  %v247 = vpop.f32.mrb[0].mxu0
  %v248 = vadd.f32 %v74, %v247
  %v249 = vpop.f32.mrb[0].mxu0
  %250 = vmatprep.mubr.f32.mxu0 0.0
  %251 = vmatmul.mubr.f32.gmra.mrb[0].mxu0 %v39
  %v252 = vpop.f32.mrb[0].mxu0
  %v253 = vadd.f32 %v74, %v252
  %v254 = vpop.f32.mrb[0].mxu0
  %255 = vmatprep.mubr.f32.mxu0 0.0
  %256 = vmatmul.mubr.f32.gmra.mrb[0].mxu0 %v40
  %v257 = vpop.f32.mrb[0].mxu0
  %v258 = vadd.f32 %v74, %v257
  %v259 = vpop.f32.mrb[0].mxu0
  %260 = vmatprep.mubr.f32.mxu0 0.0
  %261 = vmatmul.mubr.f32.gmra.mrb[0].mxu0 %v41
  %v262 = vpop.f32.mrb[0].mxu0
  %v263 = vadd.f32 %v74, %v262
  %v264 = vpop.f32.mrb[0].mxu0
  %265 = vmatprep.mubr.f32.mxu0 0.0
  %266 = vmatmul.mubr.f32.gmra.mrb[0].mxu0 %v42
  %v267 = vpop.f32.mrb[0].mxu0
  %v268 = vadd.f32 %v74, %v267
  %v269 = vpop.f32.mrb[0].mxu0
  %270 = vmatprep.mubr.f32.mxu0 0.0
  %271 = vmatmul.mubr.f32.gmra.mrb[0].mxu0 %v43
  %v272 = vpop.f32.mrb[0].mxu0
  %v273 = vadd.f32 %v74, %v272
  %v274 = vpop.f32.mrb[0].mxu0
  %275 = vmatprep.mubr.f32.mxu0 0.0
  %276 = vmatmul.mubr.f32.gmra.mrb[0].mxu0 %v44
  %v277 = vpop.f32.mrb[0].mxu0
  %v278 = vadd.f32 %v74, %v277
  %v279 = vpop.f32.mrb[0].mxu0
  %280 = vmatprep.mubr.f32.mxu0 0.0
  %281 = vmatmul.mubr.f32.gmra.mrb[0].mxu0 %v45
  %v282 = vpop.f32.mrb[0].mxu0
  %v283 = vadd.f32 %v74, %v282
  %v284 = vpop.f32.mrb[0].mxu0
  %285 = vmatprep.mubr.f32.mxu0 0.0
  %286 = vmatmul.mubr.f32.gmra.mrb[0].mxu0 %v46
  %v287 = vpop.f32.mrb[0].mxu0
  %v288 = vadd.f32 %v74, %v287
  %v289 = vpop.f32.mrb[0].mxu0
  %290 = vmatprep.mubr.f32.mxu0 0.0
  %291 = vmatmul.mubr.f32.gmra.mrb[0].mxu0 %v47
  %v292 = vpop.f32.mrb[0].mxu0
  %v293 = vadd.f32 %v74, %v292
  %v294 = vpop.f32.mrb[0].mxu0
  %295 = vmatprep.mubr.f32.mxu0 0.0
  %296 = vmatmul.mubr.f32.gmra.mrb[0].mxu0 %v48
  %v297 = vpop.f32.mrb[0].mxu0
  %v298 = vadd.f32 %v74, %v297
  %v299 = vpop.f32.mrb[0].mxu0
  %300 = vmatprep.mubr.f32.mxu0 0.0
  %301 = vmatmul.mubr.f32.gmra.mrb[0].mxu0 %v49
  %v302 = vpop.f32.mrb[0].mxu0
  %v303 = vadd.f32 %v74, %v302
  %v304 = vpop.f32.mrb[0].mxu0
  %305 = vmatprep.mubr.f32.mxu0 0.0
  %306 = vmatmul.mubr.f32.gmra.mrb[0].mxu0 %v50
  %v307 = vpop.f32.mrb[0].mxu0
  %v308 = vadd.f32 %v74, %v307
  %v309 = vpop.f32.mrb[0].mxu0
  %310 = vmatprep.mubr.f32.mxu0 0.0
  %311 = vmatmul.mubr.f32.gmra.mrb[0].mxu0 %v51
  %v312 = vpop.f32.mrb[0].mxu0
  %v313 = vadd.f32 %v74, %v312
  %v314 = vpop.f32.mrb[0].mxu0
  %315 = vmatprep.mubr.f32.mxu0 0.0
  %316 = vmatmul.mubr.f32.gmra.mrb[0].mxu0 %v52
  %v317 = vpop.f32.mrb[0].mxu0
  %v318 = vadd.f32 %v74, %v317
  %v319 = vpop.f32.mrb[0].mxu0
  %320 = vdwg.mxu0
  %vm321 = vcmp.ge.f32.partialorder %v143, 0.0
  %vm322 = vcmp.ge.f32.partialorder %v148, 0.0
  %vm323 = vcmp.ge.f32.partialorder %v153, 0.0
  %vm324 = vcmp.ge.f32.partialorder %v158, 0.0
  %vm325 = vcmp.ge.f32.partialorder %v163, 0.0
  %vm326 = vcmp.ge.f32.partialorder %v168, 0.0
  %vm327 = vcmp.ge.f32.partialorder %v173, 0.0
  %vm328 = vcmp.ge.f32.partialorder %v178, 0.0
  %vm329 = vcmp.ge.f32.partialorder %v183, 0.0
  %vm330 = vcmp.ge.f32.partialorder %v188, 0.0
  %vm331 = vcmp.ge.f32.partialorder %v193, 0.0
  %vm332 = vcmp.ge.f32.partialorder %v198, 0.0
  %vm333 = vcmp.ge.f32.partialorder %v203, 0.0
  %vm334 = vcmp.ge.f32.partialorder %v208, 0.0
  %vm335 = vcmp.ge.f32.partialorder %v213, 0.0
  %vm336 = vcmp.ge.f32.partialorder %v218, 0.0
  %vm337 = vcmp.ge.f32.partialorder %v223, 0.0
  %vm338 = vcmp.ge.f32.partialorder %v228, 0.0
  %vm339 = vcmp.ge.f32.partialorder %v233, 0.0
  %vm340 = vcmp.ge.f32.partialorder %v238, 0.0
  %vm341 = vcmp.ge.f32.partialorder %v243, 0.0
  %vm342 = vcmp.ge.f32.partialorder %v248, 0.0
  %vm343 = vcmp.ge.f32.partialorder %v253, 0.0
  %vm344 = vcmp.ge.f32.partialorder %v258, 0.0
  %vm345 = vcmp.ge.f32.partialorder %v263, 0.0
  %vm346 = vcmp.ge.f32.partialorder %v268, 0.0
  %vm347 = vcmp.ge.f32.partialorder %v273, 0.0
  %vm348 = vcmp.ge.f32.partialorder %v278, 0.0
  %vm349 = vcmp.ge.f32.partialorder %v283, 0.0
  %vm350 = vcmp.ge.f32.partialorder %v288, 0.0
  %vm351 = vcmp.ge.f32.partialorder %v293, 0.0
  %vm352 = vcmp.ge.f32.partialorder %v298, 0.0
  %vm353 = vcmp.ge.f32.partialorder %v303, 0.0
  %vm354 = vcmp.ge.f32.partialorder %v308, 0.0
  %vm355 = vcmp.ge.f32.partialorder %v313, 0.0
  %vm356 = vcmp.ge.f32.partialorder %v318, 0.0
  %v357 = vmul.f32 %v143, 0.2
  %v358 = vmul.f32 %v148, 0.2
  %v359 = vmul.f32 %v153, 0.2
  %v360 = vmul.f32 %v158, 0.2
  %v361 = vmul.f32 %v163, 0.2
  %v362 = vmul.f32 %v168, 0.2
  %v363 = vmul.f32 %v173, 0.2
  %v364 = vmul.f32 %v178, 0.2
  %v365 = vmul.f32 %v183, 0.2
  %v366 = vmul.f32 %v188, 0.2
  %v367 = vmul.f32 %v193, 0.2
  %v368 = vmul.f32 %v198, 0.2
  %v369 = vmul.f32 %v203, 0.2
  %v370 = vmul.f32 %v208, 0.2
  %v371 = vmul.f32 %v213, 0.2
  %v372 = vmul.f32 %v218, 0.2
  %v373 = vmul.f32 %v223, 0.2
  %v374 = vmul.f32 %v228, 0.2
  %v375 = vmul.f32 %v233, 0.2
  %v376 = vmul.f32 %v238, 0.2
  %v377 = vmul.f32 %v243, 0.2
  %v378 = vmul.f32 %v248, 0.2
  %v379 = vmul.f32 %v253, 0.2
  %v380 = vmul.f32 %v258, 0.2
  %v381 = vmul.f32 %v263, 0.2
  %v382 = vmul.f32 %v268, 0.2
  %v383 = vmul.f32 %v273, 0.2
  %v384 = vmul.f32 %v278, 0.2
  %v385 = vmul.f32 %v283, 0.2
  %v386 = vmul.f32 %v288, 0.2
  %v387 = vmul.f32 %v293, 0.2
  %v388 = vmul.f32 %v298, 0.2
  %v389 = vmul.f32 %v303, 0.2
  %v390 = vmul.f32 %v308, 0.2
  %v391 = vmul.f32 %v313, 0.2
  %v392 = vmul.f32 %v318, 0.2
  %v393 = vsel %vm321, %v143, %v357
  %v394 = vsel %vm322, %v148, %v358
  %v395 = vsel %vm323, %v153, %v359
  %v396 = vsel %vm324, %v158, %v360
  %v397 = vsel %vm325, %v163, %v361
  %v398 = vsel %vm326, %v168, %v362
  %v399 = vsel %vm327, %v173, %v363
  %v400 = vsel %vm328, %v178, %v364
  %v401 = vsel %vm329, %v183, %v365
  %v402 = vsel %vm330, %v188, %v366
  %v403 = vsel %vm331, %v193, %v367
  %v404 = vsel %vm332, %v198, %v368
  %v405 = vsel %vm333, %v203, %v369
  %v406 = vsel %vm334, %v208, %v370
  %v407 = vsel %vm335, %v213, %v371
  %v408 = vsel %vm336, %v218, %v372
  %v409 = vsel %vm337, %v223, %v373
  %v410 = vsel %vm338, %v228, %v374
  %v411 = vsel %vm339, %v233, %v375
  %v412 = vsel %vm340, %v238, %v376
  %v413 = vsel %vm341, %v243, %v377
  %v414 = vsel %vm342, %v248, %v378
  %v415 = vsel %vm343, %v253, %v379
  %v416 = vsel %vm344, %v258, %v380
  %v417 = vsel %vm345, %v263, %v381
  %v418 = vsel %vm346, %v268, %v382
  %v419 = vsel %vm347, %v273, %v383
  %v420 = vsel %vm348, %v278, %v384
  %v421 = vsel %vm349, %v283, %v385
  %v422 = vsel %vm350, %v288, %v386
  %v423 = vsel %vm351, %v293, %v387
  %v424 = vsel %vm352, %v298, %v388
  %v425 = vsel %vm353, %v303, %v389
  %v426 = vsel %vm354, %v308, %v390
  %v427 = vsel %vm355, %v313, %v391
  %v428 = vsel %vm356, %v318, %v392
  %v429 = vld [vmem:[%s3] sm:$0xff]
  %v430 = vld [vmem:[%s3 + $0x8] sm:$0xff]
  %v431 = vld [vmem:[%s3 + $0x10] sm:$0xff]
  %v432 = vld [vmem:[%s3 + $0x18] sm:$0xff]
  %v433 = vld [vmem:[%s3 + $0x20] sm:$0xff]
  %v434 = vld [vmem:[%s3 + $0x28] sm:$0xff]
  %v435 = vld [vmem:[%s3 + $0x30] sm:$0xff]
  %v436 = vld [vmem:[%s3 + $0x38] sm:$0xff]
  %v437 = vld [vmem:[%s3 + $0x40] sm:$0xff]
  %v438 = vld [vmem:[%s3 + $0x48] sm:$0xff]
  %v439 = vld [vmem:[%s3 + $0x50] sm:$0xff]
  %v440 = vld [vmem:[%s3 + $0x58] sm:$0xff]
  %v441 = vld [vmem:[%s3 + $0x60] sm:$0xff]
  %v442 = vld [vmem:[%s3 + $0x68] sm:$0xff]
  %v443 = vld [vmem:[%s3 + $0x70] sm:$0xff]
  %v444 = vld [vmem:[%s3 + $0x78] sm:$0xff]
  %v445 = vld [vmem:[%s3 + $0x80] sm:$0xff]
  %v446 = vld [vmem:[%s3 + $0x88] sm:$0xff]
  %v447 = vld [vmem:[%s3 + $0x90] sm:$0xff]
  %v448 = vld [vmem:[%s3 + $0x98] sm:$0xff]
  %v449 = vld [vmem:[%s3 + $0xa0] sm:$0xff]
  %v450 = vld [vmem:[%s3 + $0xa8] sm:$0xff]
  %v451 = vld [vmem:[%s3 + $0xb0] sm:$0xff]
  %v452 = vld [vmem:[%s3 + $0xb8] sm:$0xff]
  %v453 = vld [vmem:[%s3 + $0xc0] sm:$0xff]
  %v454 = vld [vmem:[%s3 + $0xc8] sm:$0xff]
  %v455 = vld [vmem:[%s3 + $0xd0] sm:$0xff]
  %v456 = vld [vmem:[%s3 + $0xd8] sm:$0xff]
  %v457 = vld [vmem:[%s3 + $0xe0] sm:$0xff]
  %v458 = vld [vmem:[%s3 + $0xe8] sm:$0xff]
  %v459 = vld [vmem:[%s3 + $0xf0] sm:$0xff]
  %v460 = vld [vmem:[%s3 + $0xf8] sm:$0xff]
  %v461 = vld [vmem:[%s3 + $0x100] sm:$0xff]
  %v462 = vld [vmem:[%s3 + $0x108] sm:$0xff]
  %v463 = vld [vmem:[%s3 + $0x110] sm:$0xff]
  %v464 = vld [vmem:[%s3 + $0x118] sm:$0xff]
  %v465 = vadd.f32 %v429, %v393
  %v466 = vadd.f32 %v430, %v394
  %v467 = vadd.f32 %v431, %v395
  %v468 = vadd.f32 %v432, %v396
  %v469 = vadd.f32 %v433, %v397
  %v470 = vadd.f32 %v434, %v398
  %v471 = vadd.f32 %v435, %v399
  %v472 = vadd.f32 %v436, %v400
  %v473 = vadd.f32 %v437, %v401
  %v474 = vadd.f32 %v438, %v402
  %v475 = vadd.f32 %v439, %v403
  %v476 = vadd.f32 %v440, %v404
  %v477 = vadd.f32 %v441, %v405
  %v478 = vadd.f32 %v442, %v406
  %v479 = vadd.f32 %v443, %v407
  %v480 = vadd.f32 %v444, %v408
  %v481 = vadd.f32 %v445, %v409
  %v482 = vadd.f32 %v446, %v410
  %v483 = vadd.f32 %v447, %v411
  %v484 = vadd.f32 %v448, %v412
  %v485 = vadd.f32 %v449, %v413
  %v486 = vadd.f32 %v450, %v414
  %v487 = vadd.f32 %v451, %v415
  %v488 = vadd.f32 %v452, %v416
  %v489 = vadd.f32 %v453, %v417
  %v490 = vadd.f32 %v454, %v418
  %v491 = vadd.f32 %v455, %v419
  %v492 = vadd.f32 %v456, %v420
  %v493 = vadd.f32 %v457, %v421
  %v494 = vadd.f32 %v458, %v422
  %v495 = vadd.f32 %v459, %v423
  %v496 = vadd.f32 %v460, %v424
  %v497 = vadd.f32 %v461, %v425
  %v498 = vadd.f32 %v462, %v426
  %v499 = vadd.f32 %v463, %v427
  %v500 = vadd.f32 %v464, %v428
  %501 = vst [vmem:[%s4] sm:$0xff] %v465
  %502 = vst [vmem:[%s4 + $0x8] sm:$0xff] %v466
  %503 = vst [vmem:[%s4 + $0x10] sm:$0xff] %v467
  %504 = vst [vmem:[%s4 + $0x18] sm:$0xff] %v468
  %505 = vst [vmem:[%s4 + $0x20] sm:$0xff] %v469
  %506 = vst [vmem:[%s4 + $0x28] sm:$0xff] %v470
  %507 = vst [vmem:[%s4 + $0x30] sm:$0xff] %v471
  %508 = vst [vmem:[%s4 + $0x38] sm:$0xff] %v472
  %509 = vst [vmem:[%s4 + $0x40] sm:$0xff] %v473
  %510 = vst [vmem:[%s4 + $0x48] sm:$0xff] %v474
  %511 = vst [vmem:[%s4 + $0x50] sm:$0xff] %v475
  %512 = vst [vmem:[%s4 + $0x58] sm:$0xff] %v476
  %513 = vst [vmem:[%s4 + $0x60] sm:$0xff] %v477
  %514 = vst [vmem:[%s4 + $0x68] sm:$0xff] %v478
  %515 = vst [vmem:[%s4 + $0x70] sm:$0xff] %v479
  %516 = vst [vmem:[%s4 + $0x78] sm:$0xff] %v480
  %517 = vst [vmem:[%s4 + $0x80] sm:$0xff] %v481
  %518 = vst [vmem:[%s4 + $0x88] sm:$0xff] %v482
  %519 = vst [vmem:[%s4 + $0x90] sm:$0xff] %v483
  %520 = vst [vmem:[%s4 + $0x98] sm:$0xff] %v484
  %521 = vst [vmem:[%s4 + $0xa0] sm:$0xff] %v485
  %522 = vst [vmem:[%s4 + $0xa8] sm:$0xff] %v486
  %523 = vst [vmem:[%s4 + $0xb0] sm:$0xff] %v487
  %524 = vst [vmem:[%s4 + $0xb8] sm:$0xff] %v488
  %525 = vst [vmem:[%s4 + $0xc0] sm:$0xff] %v489
  %526 = vst [vmem:[%s4 + $0xc8] sm:$0xff] %v490
  %527 = vst [vmem:[%s4 + $0xd0] sm:$0xff] %v491
  %528 = vst [vmem:[%s4 + $0xd8] sm:$0xff] %v492
  %529 = vst [vmem:[%s4 + $0xe0] sm:$0xff] %v493
  %530 = vst [vmem:[%s4 + $0xe8] sm:$0xff] %v494
  %531 = vst [vmem:[%s4 + $0xf0] sm:$0xff] %v495
  %532 = vst [vmem:[%s4 + $0xf8] sm:$0xff] %v496
  %533 = vst [vmem:[%s4 + $0x100] sm:$0xff] %v497
  %534 = vst [vmem:[%s4 + $0x108] sm:$0xff] %v498
  %535 = vst [vmem:[%s4 + $0x110] sm:$0xff] %v499
  %536 = vst [vmem:[%s4 + $0x118] sm:$0xff] %v500
  // Predicated region
  $region18: #{conv_down_sample_forward.10} parent=0 // pred_check
    _
  $region19: #{conv_down_sample_forward.10} parent=0 // pred_check_branch
    %538 = sbr.rel (0) target = $region21
  $region20: #{conv_down_sample_forward.10} parent=0 // pred_region
    _
  $region21: #{conv_down_sample_forward.10} parent=0 // pred_fallthru
    _
  // Predicated region
  $region22: #{conv_down_sample_forward.10} parent=0 // pred_check
    _
  $region23: #{conv_down_sample_forward.10} parent=0 // pred_check_branch
    %540 = sbr.rel (0) target = $region25
  $region24: #{conv_down_sample_forward.10} parent=0 // pred_region
    _
  $region25: #{conv_down_sample_forward.10} parent=0 // pred_fallthru
    _

// kernel: conv_down_sample_forward.11
$region0: #{conv_down_sample_forward.11}
  #allocation0 [shape = 'u32[]', space=smem, size = 0x4, offset = 0x4, fixed_abs, tag = 'smem constant byte address 0x4 - core index']
  #allocation1 [shape = 'u32[144,128]{1,0:T(1,128)}', space=vmem, size = 0x12000, scoped, tag = 'internal scratch']
  %s0 = inlined_call_operand.vmem [shape: f32[32,128], index: 0, kind: input, shape index: {}]
  %s1 = inlined_call_operand.vmem [shape: f32[128,128], index: 1, kind: input, shape index: {}]
  %s2 = inlined_call_operand.vmem [shape: f32[1,128], index: 2, kind: input, shape index: {}]
  %s3 = inlined_call_operand.vmem [shape: f32[32,128], index: 3, kind: output, shape index: {}]
  %s4 = sld [smem:[#allocation0]]
  $region22: #{conv_down_sample_forward.11} parent=0
    _
  %s6 = ssub.s32 1, %s4
  %s7 = scalar_select 0, %s6, %s4
  // Predicated region
  $region2: #{conv_down_sample_forward.11} parent=0 // pred_check
    _
  $region3: #{conv_down_sample_forward.11} parent=0 // pred_check_branch
    %9 = sbr.rel (0) target = $region5
  $region4: #{conv_down_sample_forward.11} parent=0 // pred_region
    _
  $region5: #{conv_down_sample_forward.11} parent=0 // pred_fallthru
    _
  // Predicated region
  $region6: #{conv_down_sample_forward.11} parent=0 // pred_check
    _
  $region7: #{conv_down_sample_forward.11} parent=0 // pred_check_branch
    %11 = sbr.rel (0) target = $region9
  $region8: #{conv_down_sample_forward.11} parent=0 // pred_region
    _
  $region9: #{conv_down_sample_forward.11} parent=0 // pred_fallthru
    _
  // Predicated region
  $region10: #{conv_down_sample_forward.11} parent=0 // pred_check
    _
  $region11: #{conv_down_sample_forward.11} parent=0 // pred_check_branch
    %13 = sbr.rel (0) target = $region13
  $region12: #{conv_down_sample_forward.11} parent=0 // pred_region
    _
  $region13: #{conv_down_sample_forward.11} parent=0 // pred_fallthru
    _
  %v14 = vld [vmem:[%s0] sm:$0xff]
  %v15 = vld [vmem:[%s0 + $0x8] sm:$0xff]
  %v16 = vld [vmem:[%s0 + $0x10] sm:$0xff]
  %v17 = vld [vmem:[%s0 + $0x18] sm:$0xff]
  %v18 = vld [vmem:[%s1] sm:$0xff]
  %v19 = vld [vmem:[%s1 + $0x8] sm:$0xff]
  %v20 = vld [vmem:[%s1 + $0x10] sm:$0xff]
  %v21 = vld [vmem:[%s1 + $0x18] sm:$0xff]
  %v22 = vld [vmem:[%s1 + $0x20] sm:$0xff]
  %v23 = vld [vmem:[%s1 + $0x28] sm:$0xff]
  %v24 = vld [vmem:[%s1 + $0x30] sm:$0xff]
  %v25 = vld [vmem:[%s1 + $0x38] sm:$0xff]
  %v26 = vld [vmem:[%s1 + $0x40] sm:$0xff]
  %v27 = vld [vmem:[%s1 + $0x48] sm:$0xff]
  %v28 = vld [vmem:[%s1 + $0x50] sm:$0xff]
  %v29 = vld [vmem:[%s1 + $0x58] sm:$0xff]
  %v30 = vld [vmem:[%s1 + $0x60] sm:$0xff]
  %v31 = vld [vmem:[%s1 + $0x68] sm:$0xff]
  %v32 = vld [vmem:[%s1 + $0x70] sm:$0xff]
  %v33 = vld [vmem:[%s1 + $0x78] sm:$0xff]
  %v34 = vld [vmem:[%s2] sm:$0x1]
  %v36 = vlaneseq
  %v37 = vshrl.u32 %v36, 7
  %v38 = vsub.s32 0, %v37
  %v39 = vrot.slane %v34, %v38
  %41 = vmatprep.subr.mxu0 0.0
  %42 = vmatpush1.msra.mxu0 %v18
  %43 = vmatprep.subr.mxu0 0.0
  %44 = vmatpush1.msra.mxu0 %v19
  %45 = vmatprep.subr.mxu0 0.0
  %46 = vmatpush1.msra.mxu0 %v20
  %47 = vmatprep.subr.mxu0 0.0
  %48 = vmatpush1.msra.mxu0 %v21
  %49 = vmatprep.subr.mxu0 0.0
  %50 = vmatpush1.msra.mxu0 %v22
  %51 = vmatprep.subr.mxu0 0.0
  %52 = vmatpush1.msra.mxu0 %v23
  %53 = vmatprep.subr.mxu0 0.0
  %54 = vmatpush1.msra.mxu0 %v24
  %55 = vmatprep.subr.mxu0 0.0
  %56 = vmatpush1.msra.mxu0 %v25
  %57 = vmatprep.subr.mxu0 0.0
  %58 = vmatpush1.msra.mxu0 %v26
  %59 = vmatprep.subr.mxu0 0.0
  %60 = vmatpush1.msra.mxu0 %v27
  %61 = vmatprep.subr.mxu0 0.0
  %62 = vmatpush1.msra.mxu0 %v28
  %63 = vmatprep.subr.mxu0 0.0
  %64 = vmatpush1.msra.mxu0 %v29
  %65 = vmatprep.subr.mxu0 0.0
  %66 = vmatpush1.msra.mxu0 %v30
  %67 = vmatprep.subr.mxu0 0.0
  %68 = vmatpush1.msra.mxu0 %v31
  %69 = vmatprep.subr.mxu0 0.0
  %70 = vmatpush1.msra.mxu0 %v32
  %71 = vmatprep.subr.mxu0 0.0
  %72 = vmatpush1.msra.mxu0 %v33
  %73 = vmatprep.subr.mxu0 0.0
  %74 = vmatpush1.msra.mxu0 0.0
  %75 = vmatprep.subr.mxu0 0.0
  %76 = vmatpush1.msra.mxu0 0.0
  %77 = vmatprep.subr.mxu0 0.0
  %78 = vmatpush1.msra.mxu0 0.0
  %79 = vmatprep.subr.mxu0 0.0
  %80 = vmatpush1.msra.mxu0 0.0
  %81 = vmatprep.subr.mxu0 0.0
  %82 = vmatpush1.msra.mxu0 0.0
  %83 = vmatprep.subr.mxu0 0.0
  %84 = vmatpush1.msra.mxu0 0.0
  %85 = vmatprep.subr.mxu0 0.0
  %86 = vmatpush1.msra.mxu0 0.0
  %87 = vmatprep.subr.mxu0 0.0
  %88 = vmatpush1.msra.mxu0 0.0
  %89 = vmatprep.subr.mxu0 0.0
  %90 = vmatpush1.msra.mxu0 0.0
  %91 = vmatprep.subr.mxu0 0.0
  %92 = vmatpush1.msra.mxu0 0.0
  %93 = vmatprep.subr.mxu0 0.0
  %94 = vmatpush1.msra.mxu0 0.0
  %95 = vmatprep.subr.mxu0 0.0
  %96 = vmatpush1.msra.mxu0 0.0
  %97 = vmatprep.subr.mxu0 0.0
  %98 = vmatpush1.msra.mxu0 0.0
  %99 = vmatprep.subr.mxu0 0.0
  %100 = vmatpush1.msra.mxu0 0.0
  %101 = vmatprep.subr.mxu0 0.0
  %102 = vmatpush1.msra.mxu0 0.0
  %103 = vmatprep.subr.mxu0 0.0
  %104 = vmatpush1.msra.mxu0 0.0
  %105 = vmatprep.mubr.f32.mxu0 0.0
  %106 = vmatmul.mubr.f32.gmra.mrb[0].mxu0 %v14
  %v107 = vpop.f32.mrb[0].mxu0
  %v108 = vadd.f32 %v39, %v107
  %v109 = vpop.f32.mrb[0].mxu0
  %110 = vmatprep.mubr.f32.mxu0 0.0
  %111 = vmatmul.mubr.f32.gmra.mrb[0].mxu0 %v15
  %v112 = vpop.f32.mrb[0].mxu0
  %v113 = vadd.f32 %v39, %v112
  %v114 = vpop.f32.mrb[0].mxu0
  %115 = vmatprep.mubr.f32.mxu0 0.0
  %116 = vmatmul.mubr.f32.gmra.mrb[0].mxu0 %v16
  %v117 = vpop.f32.mrb[0].mxu0
  %v118 = vadd.f32 %v39, %v117
  %v119 = vpop.f32.mrb[0].mxu0
  %120 = vmatprep.mubr.f32.mxu0 0.0
  %121 = vmatmul.mubr.f32.gmra.mrb[0].mxu0 %v17
  %v122 = vpop.f32.mrb[0].mxu0
  %v123 = vadd.f32 %v39, %v122
  %v124 = vpop.f32.mrb[0].mxu0
  %125 = vdwg.mxu0
  %vm126 = vcmp.ge.f32.partialorder %v108, 0.0
  %vm127 = vcmp.ge.f32.partialorder %v113, 0.0
  %vm128 = vcmp.ge.f32.partialorder %v118, 0.0
  %vm129 = vcmp.ge.f32.partialorder %v123, 0.0
  %v130 = vmul.f32 %v108, 0.2
  %v131 = vmul.f32 %v113, 0.2
  %v132 = vmul.f32 %v118, 0.2
  %v133 = vmul.f32 %v123, 0.2
  %v134 = vsel %vm126, %v108, %v130
  %v135 = vsel %vm127, %v113, %v131
  %v136 = vsel %vm128, %v118, %v132
  %v137 = vsel %vm129, %v123, %v133
  %138 = vst [vmem:[%s3] sm:$0xff] %v134
  %139 = vst [vmem:[%s3 + $0x8] sm:$0xff] %v135
  %140 = vst [vmem:[%s3 + $0x10] sm:$0xff] %v136
  %141 = vst [vmem:[%s3 + $0x18] sm:$0xff] %v137
  // Predicated region
  $region14: #{conv_down_sample_forward.11} parent=0 // pred_check
    _
  $region15: #{conv_down_sample_forward.11} parent=0 // pred_check_branch
    %143 = sbr.rel (0) target = $region17
  $region16: #{conv_down_sample_forward.11} parent=0 // pred_region
    _
  $region17: #{conv_down_sample_forward.11} parent=0 // pred_fallthru
    _
  // Predicated region
  $region18: #{conv_down_sample_forward.11} parent=0 // pred_check
    _
  $region19: #{conv_down_sample_forward.11} parent=0 // pred_check_branch
    %145 = sbr.rel (0) target = $region21
  $region20: #{conv_down_sample_forward.11} parent=0 // pred_region
    _
  $region21: #{conv_down_sample_forward.11} parent=0 // pred_fallthru
    _

// kernel: conv_down_sample_forward.12
$region0: #{conv_down_sample_forward.12}
  #allocation0 [shape = 'u32[]', space=smem, size = 0x4, offset = 0x4, fixed_abs, tag = 'smem constant byte address 0x4 - core index']
  #allocation1 [shape = 'u32[144,128]{1,0:T(1,128)}', space=vmem, size = 0x12000, scoped, tag = 'internal scratch']
  %s0 = inlined_call_operand.vmem [shape: f32[32,256], index: 0, kind: input, shape index: {}]
  %s1 = inlined_call_operand.vmem [shape: f32[256,128], index: 1, kind: input, shape index: {}]
  %s2 = inlined_call_operand.vmem [shape: f32[1,128], index: 2, kind: input, shape index: {}]
  %s3 = inlined_call_operand.vmem [shape: f32[32,128], index: 3, kind: input, shape index: {}, may-alias: {3,4}]
  %s4 = inlined_call_operand.vmem [shape: f32[32,128], index: 4, kind: output, shape index: {}, may-alias: {3,4}]
  %s5 = sld [smem:[#allocation0]]
  $region26: #{conv_down_sample_forward.12} parent=0
    _
  %s7 = ssub.s32 1, %s5
  %s8 = scalar_select 0, %s7, %s5
  // Predicated region
  $region2: #{conv_down_sample_forward.12} parent=0 // pred_check
    _
  $region3: #{conv_down_sample_forward.12} parent=0 // pred_check_branch
    %10 = sbr.rel (0) target = $region5
  $region4: #{conv_down_sample_forward.12} parent=0 // pred_region
    _
  $region5: #{conv_down_sample_forward.12} parent=0 // pred_fallthru
    _
  // Predicated region
  $region6: #{conv_down_sample_forward.12} parent=0 // pred_check
    _
  $region7: #{conv_down_sample_forward.12} parent=0 // pred_check_branch
    %12 = sbr.rel (0) target = $region9
  $region8: #{conv_down_sample_forward.12} parent=0 // pred_region
    _
  $region9: #{conv_down_sample_forward.12} parent=0 // pred_fallthru
    _
  // Predicated region
  $region10: #{conv_down_sample_forward.12} parent=0 // pred_check
    _
  $region11: #{conv_down_sample_forward.12} parent=0 // pred_check_branch
    %14 = sbr.rel (0) target = $region13
  $region12: #{conv_down_sample_forward.12} parent=0 // pred_region
    _
  $region13: #{conv_down_sample_forward.12} parent=0 // pred_fallthru
    _
  // Predicated region
  $region14: #{conv_down_sample_forward.12} parent=0 // pred_check
    _
  $region15: #{conv_down_sample_forward.12} parent=0 // pred_check_branch
    %16 = sbr.rel (0) target = $region17
  $region16: #{conv_down_sample_forward.12} parent=0 // pred_region
    _
  $region17: #{conv_down_sample_forward.12} parent=0 // pred_fallthru
    _
  %v17 = vld [vmem:[%s0] sm:$0xff]
  %v18 = vld [vmem:[%s0 + $0x8] sm:$0xff]
  %v19 = vld [vmem:[%s0 + $0x10] sm:$0xff]
  %v20 = vld [vmem:[%s0 + $0x18] sm:$0xff]
  %v21 = vld [vmem:[%s0 + $0x20] sm:$0xff]
  %v22 = vld [vmem:[%s0 + $0x28] sm:$0xff]
  %v23 = vld [vmem:[%s0 + $0x30] sm:$0xff]
  %v24 = vld [vmem:[%s0 + $0x38] sm:$0xff]
  %v25 = vld [vmem:[%s1] sm:$0xff]
  %v26 = vld [vmem:[%s1 + $0x8] sm:$0xff]
  %v27 = vld [vmem:[%s1 + $0x10] sm:$0xff]
  %v28 = vld [vmem:[%s1 + $0x18] sm:$0xff]
  %v29 = vld [vmem:[%s1 + $0x20] sm:$0xff]
  %v30 = vld [vmem:[%s1 + $0x28] sm:$0xff]
  %v31 = vld [vmem:[%s1 + $0x30] sm:$0xff]
  %v32 = vld [vmem:[%s1 + $0x38] sm:$0xff]
  %v33 = vld [vmem:[%s1 + $0x40] sm:$0xff]
  %v34 = vld [vmem:[%s1 + $0x48] sm:$0xff]
  %v35 = vld [vmem:[%s1 + $0x50] sm:$0xff]
  %v36 = vld [vmem:[%s1 + $0x58] sm:$0xff]
  %v37 = vld [vmem:[%s1 + $0x60] sm:$0xff]
  %v38 = vld [vmem:[%s1 + $0x68] sm:$0xff]
  %v39 = vld [vmem:[%s1 + $0x70] sm:$0xff]
  %v40 = vld [vmem:[%s1 + $0x78] sm:$0xff]
  %v41 = vld [vmem:[%s1 + $0x80] sm:$0xff]
  %v42 = vld [vmem:[%s1 + $0x88] sm:$0xff]
  %v43 = vld [vmem:[%s1 + $0x90] sm:$0xff]
  %v44 = vld [vmem:[%s1 + $0x98] sm:$0xff]
  %v45 = vld [vmem:[%s1 + $0xa0] sm:$0xff]
  %v46 = vld [vmem:[%s1 + $0xa8] sm:$0xff]
  %v47 = vld [vmem:[%s1 + $0xb0] sm:$0xff]
  %v48 = vld [vmem:[%s1 + $0xb8] sm:$0xff]
  %v49 = vld [vmem:[%s1 + $0xc0] sm:$0xff]
  %v50 = vld [vmem:[%s1 + $0xc8] sm:$0xff]
  %v51 = vld [vmem:[%s1 + $0xd0] sm:$0xff]
  %v52 = vld [vmem:[%s1 + $0xd8] sm:$0xff]
  %v53 = vld [vmem:[%s1 + $0xe0] sm:$0xff]
  %v54 = vld [vmem:[%s1 + $0xe8] sm:$0xff]
  %v55 = vld [vmem:[%s1 + $0xf0] sm:$0xff]
  %v56 = vld [vmem:[%s1 + $0xf8] sm:$0xff]
  %v57 = vld [vmem:[%s2] sm:$0x1]
  %v59 = vlaneseq
  %v60 = vshrl.u32 %v59, 7
  %v61 = vsub.s32 0, %v60
  %v62 = vrot.slane %v57, %v61
  %64 = vmatprep.subr.mxu0 0.0
  %65 = vmatpush1.msra.mxu0 %v25
  %66 = vmatprep.subr.mxu0 0.0
  %67 = vmatpush1.msra.mxu0 %v26
  %68 = vmatprep.subr.mxu0 0.0
  %69 = vmatpush1.msra.mxu0 %v27
  %70 = vmatprep.subr.mxu0 0.0
  %71 = vmatpush1.msra.mxu0 %v28
  %72 = vmatprep.subr.mxu0 0.0
  %73 = vmatpush1.msra.mxu0 %v29
  %74 = vmatprep.subr.mxu0 0.0
  %75 = vmatpush1.msra.mxu0 %v30
  %76 = vmatprep.subr.mxu0 0.0
  %77 = vmatpush1.msra.mxu0 %v31
  %78 = vmatprep.subr.mxu0 0.0
  %79 = vmatpush1.msra.mxu0 %v32
  %80 = vmatprep.subr.mxu0 0.0
  %81 = vmatpush1.msra.mxu0 %v33
  %82 = vmatprep.subr.mxu0 0.0
  %83 = vmatpush1.msra.mxu0 %v34
  %84 = vmatprep.subr.mxu0 0.0
  %85 = vmatpush1.msra.mxu0 %v35
  %86 = vmatprep.subr.mxu0 0.0
  %87 = vmatpush1.msra.mxu0 %v36
  %88 = vmatprep.subr.mxu0 0.0
  %89 = vmatpush1.msra.mxu0 %v37
  %90 = vmatprep.subr.mxu0 0.0
  %91 = vmatpush1.msra.mxu0 %v38
  %92 = vmatprep.subr.mxu0 0.0
  %93 = vmatpush1.msra.mxu0 %v39
  %94 = vmatprep.subr.mxu0 0.0
  %95 = vmatpush1.msra.mxu0 %v40
  %96 = vmatprep.subr.mxu0 0.0
  %97 = vmatpush1.msra.mxu0 %v41
  %98 = vmatprep.subr.mxu0 0.0
  %99 = vmatpush1.msra.mxu0 %v42
  %100 = vmatprep.subr.mxu0 0.0
  %101 = vmatpush1.msra.mxu0 %v43
  %102 = vmatprep.subr.mxu0 0.0
  %103 = vmatpush1.msra.mxu0 %v44
  %104 = vmatprep.subr.mxu0 0.0
  %105 = vmatpush1.msra.mxu0 %v45
  %106 = vmatprep.subr.mxu0 0.0
  %107 = vmatpush1.msra.mxu0 %v46
  %108 = vmatprep.subr.mxu0 0.0
  %109 = vmatpush1.msra.mxu0 %v47
  %110 = vmatprep.subr.mxu0 0.0
  %111 = vmatpush1.msra.mxu0 %v48
  %112 = vmatprep.subr.mxu0 0.0
  %113 = vmatpush1.msra.mxu0 %v49
  %114 = vmatprep.subr.mxu0 0.0
  %115 = vmatpush1.msra.mxu0 %v50
  %116 = vmatprep.subr.mxu0 0.0
  %117 = vmatpush1.msra.mxu0 %v51
  %118 = vmatprep.subr.mxu0 0.0
  %119 = vmatpush1.msra.mxu0 %v52
  %120 = vmatprep.subr.mxu0 0.0
  %121 = vmatpush1.msra.mxu0 %v53
  %122 = vmatprep.subr.mxu0 0.0
  %123 = vmatpush1.msra.mxu0 %v54
  %124 = vmatprep.subr.mxu0 0.0
  %125 = vmatpush1.msra.mxu0 %v55
  %126 = vmatprep.subr.mxu0 0.0
  %127 = vmatpush1.msra.mxu0 %v56
  %128 = vmatprep.mubr.f32.mxu0 %v18
  %129 = vmatmul.mubr.f32.gmra.mrb[0].mxu0 %v17
  %v130 = vpop.f32.mrb[0].mxu0
  %v131 = vadd.f32 %v62, %v130
  %v132 = vpop.f32.mrb[0].mxu0
  %133 = vmatprep.mubr.f32.mxu0 %v20
  %134 = vmatmul.mubr.f32.gmra.mrb[0].mxu0 %v19
  %v135 = vpop.f32.mrb[0].mxu0
  %v136 = vadd.f32 %v62, %v135
  %v137 = vpop.f32.mrb[0].mxu0
  %138 = vmatprep.mubr.f32.mxu0 %v22
  %139 = vmatmul.mubr.f32.gmra.mrb[0].mxu0 %v21
  %v140 = vpop.f32.mrb[0].mxu0
  %v141 = vadd.f32 %v62, %v140
  %v142 = vpop.f32.mrb[0].mxu0
  %143 = vmatprep.mubr.f32.mxu0 %v24
  %144 = vmatmul.mubr.f32.gmra.mrb[0].mxu0 %v23
  %v145 = vpop.f32.mrb[0].mxu0
  %v146 = vadd.f32 %v62, %v145
  %v147 = vpop.f32.mrb[0].mxu0
  %148 = vdwg.mxu0
  %vm149 = vcmp.ge.f32.partialorder %v131, 0.0
  %vm150 = vcmp.ge.f32.partialorder %v136, 0.0
  %vm151 = vcmp.ge.f32.partialorder %v141, 0.0
  %vm152 = vcmp.ge.f32.partialorder %v146, 0.0
  %v153 = vmul.f32 %v131, 0.2
  %v154 = vmul.f32 %v136, 0.2
  %v155 = vmul.f32 %v141, 0.2
  %v156 = vmul.f32 %v146, 0.2
  %v157 = vsel %vm149, %v131, %v153
  %v158 = vsel %vm150, %v136, %v154
  %v159 = vsel %vm151, %v141, %v155
  %v160 = vsel %vm152, %v146, %v156
  %v161 = vld [vmem:[%s3] sm:$0xff]
  %v162 = vld [vmem:[%s3 + $0x8] sm:$0xff]
  %v163 = vld [vmem:[%s3 + $0x10] sm:$0xff]
  %v164 = vld [vmem:[%s3 + $0x18] sm:$0xff]
  %v165 = vadd.f32 %v161, %v157
  %v166 = vadd.f32 %v162, %v158
  %v167 = vadd.f32 %v163, %v159
  %v168 = vadd.f32 %v164, %v160
  %169 = vst [vmem:[%s4] sm:$0xff] %v165
  %170 = vst [vmem:[%s4 + $0x8] sm:$0xff] %v166
  %171 = vst [vmem:[%s4 + $0x10] sm:$0xff] %v167
  %172 = vst [vmem:[%s4 + $0x18] sm:$0xff] %v168
  // Predicated region
  $region18: #{conv_down_sample_forward.12} parent=0 // pred_check
    _
  $region19: #{conv_down_sample_forward.12} parent=0 // pred_check_branch
    %174 = sbr.rel (0) target = $region21
  $region20: #{conv_down_sample_forward.12} parent=0 // pred_region
    _
  $region21: #{conv_down_sample_forward.12} parent=0 // pred_fallthru
    _
  // Predicated region
  $region22: #{conv_down_sample_forward.12} parent=0 // pred_check
    _
  $region23: #{conv_down_sample_forward.12} parent=0 // pred_check_branch
    %176 = sbr.rel (0) target = $region25
  $region24: #{conv_down_sample_forward.12} parent=0 // pred_region
    _
  $region25: #{conv_down_sample_forward.12} parent=0 // pred_fallthru
    _

// kernel: conv_down_sample_forward.13
$region0: #{conv_down_sample_forward.13}
  #allocation0 [shape = 'u32[]', space=smem, size = 0x4, offset = 0x4, fixed_abs, tag = 'smem constant byte address 0x4 - core index']
  #allocation1 [shape = 'u32[144,128]{1,0:T(1,128)}', space=vmem, size = 0x12000, scoped, tag = 'internal scratch']
  %s0 = inlined_call_operand.vmem [shape: f32[8,256], index: 0, kind: input, shape index: {}]
  %s1 = inlined_call_operand.vmem [shape: f32[256,128], index: 1, kind: input, shape index: {}]
  %s2 = inlined_call_operand.vmem [shape: f32[1,128], index: 2, kind: input, shape index: {}]
  %s3 = inlined_call_operand.vmem [shape: f32[8,128], index: 3, kind: output, shape index: {}]
  %s4 = sld [smem:[#allocation0]]
  $region22: #{conv_down_sample_forward.13} parent=0
    _
  %s6 = ssub.s32 1, %s4
  %s7 = scalar_select 0, %s6, %s4
  // Predicated region
  $region2: #{conv_down_sample_forward.13} parent=0 // pred_check
    _
  $region3: #{conv_down_sample_forward.13} parent=0 // pred_check_branch
    %9 = sbr.rel (0) target = $region5
  $region4: #{conv_down_sample_forward.13} parent=0 // pred_region
    _
  $region5: #{conv_down_sample_forward.13} parent=0 // pred_fallthru
    _
  // Predicated region
  $region6: #{conv_down_sample_forward.13} parent=0 // pred_check
    _
  $region7: #{conv_down_sample_forward.13} parent=0 // pred_check_branch
    %11 = sbr.rel (0) target = $region9
  $region8: #{conv_down_sample_forward.13} parent=0 // pred_region
    _
  $region9: #{conv_down_sample_forward.13} parent=0 // pred_fallthru
    _
  // Predicated region
  $region10: #{conv_down_sample_forward.13} parent=0 // pred_check
    _
  $region11: #{conv_down_sample_forward.13} parent=0 // pred_check_branch
    %13 = sbr.rel (0) target = $region13
  $region12: #{conv_down_sample_forward.13} parent=0 // pred_region
    _
  $region13: #{conv_down_sample_forward.13} parent=0 // pred_fallthru
    _
  %v14 = vld [vmem:[%s0] sm:$0xff]
  %v15 = vld [vmem:[%s0 + $0x8] sm:$0xff]
  %v16 = vld [vmem:[%s1] sm:$0xff]
  %v17 = vld [vmem:[%s1 + $0x8] sm:$0xff]
  %v18 = vld [vmem:[%s1 + $0x10] sm:$0xff]
  %v19 = vld [vmem:[%s1 + $0x18] sm:$0xff]
  %v20 = vld [vmem:[%s1 + $0x20] sm:$0xff]
  %v21 = vld [vmem:[%s1 + $0x28] sm:$0xff]
  %v22 = vld [vmem:[%s1 + $0x30] sm:$0xff]
  %v23 = vld [vmem:[%s1 + $0x38] sm:$0xff]
  %v24 = vld [vmem:[%s1 + $0x40] sm:$0xff]
  %v25 = vld [vmem:[%s1 + $0x48] sm:$0xff]
  %v26 = vld [vmem:[%s1 + $0x50] sm:$0xff]
  %v27 = vld [vmem:[%s1 + $0x58] sm:$0xff]
  %v28 = vld [vmem:[%s1 + $0x60] sm:$0xff]
  %v29 = vld [vmem:[%s1 + $0x68] sm:$0xff]
  %v30 = vld [vmem:[%s1 + $0x70] sm:$0xff]
  %v31 = vld [vmem:[%s1 + $0x78] sm:$0xff]
  %v32 = vld [vmem:[%s1 + $0x80] sm:$0xff]
  %v33 = vld [vmem:[%s1 + $0x88] sm:$0xff]
  %v34 = vld [vmem:[%s1 + $0x90] sm:$0xff]
  %v35 = vld [vmem:[%s1 + $0x98] sm:$0xff]
  %v36 = vld [vmem:[%s1 + $0xa0] sm:$0xff]
  %v37 = vld [vmem:[%s1 + $0xa8] sm:$0xff]
  %v38 = vld [vmem:[%s1 + $0xb0] sm:$0xff]
  %v39 = vld [vmem:[%s1 + $0xb8] sm:$0xff]
  %v40 = vld [vmem:[%s1 + $0xc0] sm:$0xff]
  %v41 = vld [vmem:[%s1 + $0xc8] sm:$0xff]
  %v42 = vld [vmem:[%s1 + $0xd0] sm:$0xff]
  %v43 = vld [vmem:[%s1 + $0xd8] sm:$0xff]
  %v44 = vld [vmem:[%s1 + $0xe0] sm:$0xff]
  %v45 = vld [vmem:[%s1 + $0xe8] sm:$0xff]
  %v46 = vld [vmem:[%s1 + $0xf0] sm:$0xff]
  %v47 = vld [vmem:[%s1 + $0xf8] sm:$0xff]
  %v48 = vld [vmem:[%s2] sm:$0x1]
  %v50 = vlaneseq
  %v51 = vshrl.u32 %v50, 7
  %v52 = vsub.s32 0, %v51
  %v53 = vrot.slane %v48, %v52
  %55 = vmatprep.subr.mxu0 0.0
  %56 = vmatpush1.msra.mxu0 %v16
  %57 = vmatprep.subr.mxu0 0.0
  %58 = vmatpush1.msra.mxu0 %v17
  %59 = vmatprep.subr.mxu0 0.0
  %60 = vmatpush1.msra.mxu0 %v18
  %61 = vmatprep.subr.mxu0 0.0
  %62 = vmatpush1.msra.mxu0 %v19
  %63 = vmatprep.subr.mxu0 0.0
  %64 = vmatpush1.msra.mxu0 %v20
  %65 = vmatprep.subr.mxu0 0.0
  %66 = vmatpush1.msra.mxu0 %v21
  %67 = vmatprep.subr.mxu0 0.0
  %68 = vmatpush1.msra.mxu0 %v22
  %69 = vmatprep.subr.mxu0 0.0
  %70 = vmatpush1.msra.mxu0 %v23
  %71 = vmatprep.subr.mxu0 0.0
  %72 = vmatpush1.msra.mxu0 %v24
  %73 = vmatprep.subr.mxu0 0.0
  %74 = vmatpush1.msra.mxu0 %v25
  %75 = vmatprep.subr.mxu0 0.0
  %76 = vmatpush1.msra.mxu0 %v26
  %77 = vmatprep.subr.mxu0 0.0
  %78 = vmatpush1.msra.mxu0 %v27
  %79 = vmatprep.subr.mxu0 0.0
  %80 = vmatpush1.msra.mxu0 %v28
  %81 = vmatprep.subr.mxu0 0.0
  %82 = vmatpush1.msra.mxu0 %v29
  %83 = vmatprep.subr.mxu0 0.0
  %84 = vmatpush1.msra.mxu0 %v30
  %85 = vmatprep.subr.mxu0 0.0
  %86 = vmatpush1.msra.mxu0 %v31
  %87 = vmatprep.subr.mxu0 0.0
  %88 = vmatpush1.msra.mxu0 %v32
  %89 = vmatprep.subr.mxu0 0.0
  %90 = vmatpush1.msra.mxu0 %v33
  %91 = vmatprep.subr.mxu0 0.0
  %92 = vmatpush1.msra.mxu0 %v34
  %93 = vmatprep.subr.mxu0 0.0
  %94 = vmatpush1.msra.mxu0 %v35
  %95 = vmatprep.subr.mxu0 0.0
  %96 = vmatpush1.msra.mxu0 %v36
  %97 = vmatprep.subr.mxu0 0.0
  %98 = vmatpush1.msra.mxu0 %v37
  %99 = vmatprep.subr.mxu0 0.0
  %100 = vmatpush1.msra.mxu0 %v38
  %101 = vmatprep.subr.mxu0 0.0
  %102 = vmatpush1.msra.mxu0 %v39
  %103 = vmatprep.subr.mxu0 0.0
  %104 = vmatpush1.msra.mxu0 %v40
  %105 = vmatprep.subr.mxu0 0.0
  %106 = vmatpush1.msra.mxu0 %v41
  %107 = vmatprep.subr.mxu0 0.0
  %108 = vmatpush1.msra.mxu0 %v42
  %109 = vmatprep.subr.mxu0 0.0
  %110 = vmatpush1.msra.mxu0 %v43
  %111 = vmatprep.subr.mxu0 0.0
  %112 = vmatpush1.msra.mxu0 %v44
  %113 = vmatprep.subr.mxu0 0.0
  %114 = vmatpush1.msra.mxu0 %v45
  %115 = vmatprep.subr.mxu0 0.0
  %116 = vmatpush1.msra.mxu0 %v46
  %117 = vmatprep.subr.mxu0 0.0
  %118 = vmatpush1.msra.mxu0 %v47
  %119 = vmatprep.mubr.f32.mxu0 %v15
  %120 = vmatmul.mubr.f32.gmra.mrb[0].mxu0 %v14
  %v121 = vpop.f32.mrb[0].mxu0
  %v122 = vadd.f32 %v53, %v121
  %v123 = vpop.f32.mrb[0].mxu0
  %124 = vdwg.mxu0
  %vm125 = vcmp.ge.f32.partialorder %v122, 0.0
  %v126 = vmul.f32 %v122, 0.2
  %v127 = vsel %vm125, %v122, %v126
  %128 = vst [vmem:[%s3] sm:$0xff] %v127
  // Predicated region
  $region14: #{conv_down_sample_forward.13} parent=0 // pred_check
    _
  $region15: #{conv_down_sample_forward.13} parent=0 // pred_check_branch
    %130 = sbr.rel (0) target = $region17
  $region16: #{conv_down_sample_forward.13} parent=0 // pred_region
    _
  $region17: #{conv_down_sample_forward.13} parent=0 // pred_fallthru
    _
  // Predicated region
  $region18: #{conv_down_sample_forward.13} parent=0 // pred_check
    _
  $region19: #{conv_down_sample_forward.13} parent=0 // pred_check_branch
    %132 = sbr.rel (0) target = $region21
  $region20: #{conv_down_sample_forward.13} parent=0 // pred_region
    _
  $region21: #{conv_down_sample_forward.13} parent=0 // pred_fallthru
    _

// kernel: conv_down_sample_forward.14
$region0: #{conv_down_sample_forward.14}
  #allocation0 [shape = 'u32[]', space=smem, size = 0x4, offset = 0x4, fixed_abs, tag = 'smem constant byte address 0x4 - core index']
  #allocation1 [shape = 'u32[144,128]{1,0:T(1,128)}', space=vmem, size = 0x12000, scoped, tag = 'internal scratch']
  %s0 = inlined_call_operand.vmem [shape: f32[8,384], index: 0, kind: input, shape index: {}]
  %s1 = inlined_call_operand.vmem [shape: f32[384,128], index: 1, kind: input, shape index: {}]
  %s2 = inlined_call_operand.vmem [shape: f32[1,128], index: 2, kind: input, shape index: {}]
  %s3 = inlined_call_operand.vmem [shape: f32[8,128], index: 3, kind: input, shape index: {}, may-alias: {3,4}]
  %s4 = inlined_call_operand.vmem [shape: f32[8,128], index: 4, kind: output, shape index: {}, may-alias: {3,4}]
  %s5 = sld [smem:[#allocation0]]
  $region26: #{conv_down_sample_forward.14} parent=0
    _
  %s7 = ssub.s32 1, %s5
  %s8 = scalar_select 0, %s7, %s5
  // Predicated region
  $region2: #{conv_down_sample_forward.14} parent=0 // pred_check
    _
  $region3: #{conv_down_sample_forward.14} parent=0 // pred_check_branch
    %10 = sbr.rel (0) target = $region5
  $region4: #{conv_down_sample_forward.14} parent=0 // pred_region
    _
  $region5: #{conv_down_sample_forward.14} parent=0 // pred_fallthru
    _
  // Predicated region
  $region6: #{conv_down_sample_forward.14} parent=0 // pred_check
    _
  $region7: #{conv_down_sample_forward.14} parent=0 // pred_check_branch
    %12 = sbr.rel (0) target = $region9
  $region8: #{conv_down_sample_forward.14} parent=0 // pred_region
    _
  $region9: #{conv_down_sample_forward.14} parent=0 // pred_fallthru
    _
  // Predicated region
  $region10: #{conv_down_sample_forward.14} parent=0 // pred_check
    _
  $region11: #{conv_down_sample_forward.14} parent=0 // pred_check_branch
    %14 = sbr.rel (0) target = $region13
  $region12: #{conv_down_sample_forward.14} parent=0 // pred_region
    _
  $region13: #{conv_down_sample_forward.14} parent=0 // pred_fallthru
    _
  // Predicated region
  $region14: #{conv_down_sample_forward.14} parent=0 // pred_check
    _
  $region15: #{conv_down_sample_forward.14} parent=0 // pred_check_branch
    %16 = sbr.rel (0) target = $region17
  $region16: #{conv_down_sample_forward.14} parent=0 // pred_region
    _
  $region17: #{conv_down_sample_forward.14} parent=0 // pred_fallthru
    _
  %v17 = vld [vmem:[%s0] sm:$0xff]
  %v18 = vld [vmem:[%s0 + $0x8] sm:$0xff]
  %v19 = vld [vmem:[%s0 + $0x10] sm:$0xff]
  %v20 = vld [vmem:[%s1] sm:$0xff]
  %v21 = vld [vmem:[%s1 + $0x8] sm:$0xff]
  %v22 = vld [vmem:[%s1 + $0x10] sm:$0xff]
  %v23 = vld [vmem:[%s1 + $0x18] sm:$0xff]
  %v24 = vld [vmem:[%s1 + $0x20] sm:$0xff]
  %v25 = vld [vmem:[%s1 + $0x28] sm:$0xff]
  %v26 = vld [vmem:[%s1 + $0x30] sm:$0xff]
  %v27 = vld [vmem:[%s1 + $0x38] sm:$0xff]
  %v28 = vld [vmem:[%s1 + $0x40] sm:$0xff]
  %v29 = vld [vmem:[%s1 + $0x48] sm:$0xff]
  %v30 = vld [vmem:[%s1 + $0x50] sm:$0xff]
  %v31 = vld [vmem:[%s1 + $0x58] sm:$0xff]
  %v32 = vld [vmem:[%s1 + $0x60] sm:$0xff]
  %v33 = vld [vmem:[%s1 + $0x68] sm:$0xff]
  %v34 = vld [vmem:[%s1 + $0x70] sm:$0xff]
  %v35 = vld [vmem:[%s1 + $0x78] sm:$0xff]
  %v36 = vld [vmem:[%s1 + $0x80] sm:$0xff]
  %v37 = vld [vmem:[%s1 + $0x88] sm:$0xff]
  %v38 = vld [vmem:[%s1 + $0x90] sm:$0xff]
  %v39 = vld [vmem:[%s1 + $0x98] sm:$0xff]
  %v40 = vld [vmem:[%s1 + $0xa0] sm:$0xff]
  %v41 = vld [vmem:[%s1 + $0xa8] sm:$0xff]
  %v42 = vld [vmem:[%s1 + $0xb0] sm:$0xff]
  %v43 = vld [vmem:[%s1 + $0xb8] sm:$0xff]
  %v44 = vld [vmem:[%s1 + $0xc0] sm:$0xff]
  %v45 = vld [vmem:[%s1 + $0xc8] sm:$0xff]
  %v46 = vld [vmem:[%s1 + $0xd0] sm:$0xff]
  %v47 = vld [vmem:[%s1 + $0xd8] sm:$0xff]
  %v48 = vld [vmem:[%s1 + $0xe0] sm:$0xff]
  %v49 = vld [vmem:[%s1 + $0xe8] sm:$0xff]
  %v50 = vld [vmem:[%s1 + $0xf0] sm:$0xff]
  %v51 = vld [vmem:[%s1 + $0xf8] sm:$0xff]
  %v52 = vld [vmem:[%s1 + $0x100] sm:$0xff]
  %v53 = vld [vmem:[%s1 + $0x108] sm:$0xff]
  %v54 = vld [vmem:[%s1 + $0x110] sm:$0xff]
  %v55 = vld [vmem:[%s1 + $0x118] sm:$0xff]
  %v56 = vld [vmem:[%s1 + $0x120] sm:$0xff]
  %v57 = vld [vmem:[%s1 + $0x128] sm:$0xff]
  %v58 = vld [vmem:[%s1 + $0x130] sm:$0xff]
  %v59 = vld [vmem:[%s1 + $0x138] sm:$0xff]
  %v60 = vld [vmem:[%s1 + $0x140] sm:$0xff]
  %v61 = vld [vmem:[%s1 + $0x148] sm:$0xff]
  %v62 = vld [vmem:[%s1 + $0x150] sm:$0xff]
  %v63 = vld [vmem:[%s1 + $0x158] sm:$0xff]
  %v64 = vld [vmem:[%s1 + $0x160] sm:$0xff]
  %v65 = vld [vmem:[%s1 + $0x168] sm:$0xff]
  %v66 = vld [vmem:[%s1 + $0x170] sm:$0xff]
  %v67 = vld [vmem:[%s1 + $0x178] sm:$0xff]
  %v68 = vld [vmem:[%s2] sm:$0x1]
  %v70 = vlaneseq
  %v71 = vshrl.u32 %v70, 7
  %v72 = vsub.s32 0, %v71
  %v73 = vrot.slane %v68, %v72
  %75 = vmatprep.subr.mxu0 0.0
  %76 = vmatpush1.msra.mxu0 %v20
  %77 = vmatprep.subr.mxu0 0.0
  %78 = vmatpush1.msra.mxu0 %v21
  %79 = vmatprep.subr.mxu0 0.0
  %80 = vmatpush1.msra.mxu0 %v22
  %81 = vmatprep.subr.mxu0 0.0
  %82 = vmatpush1.msra.mxu0 %v23
  %83 = vmatprep.subr.mxu0 0.0
  %84 = vmatpush1.msra.mxu0 %v24
  %85 = vmatprep.subr.mxu0 0.0
  %86 = vmatpush1.msra.mxu0 %v25
  %87 = vmatprep.subr.mxu0 0.0
  %88 = vmatpush1.msra.mxu0 %v26
  %89 = vmatprep.subr.mxu0 0.0
  %90 = vmatpush1.msra.mxu0 %v27
  %91 = vmatprep.subr.mxu0 0.0
  %92 = vmatpush1.msra.mxu0 %v28
  %93 = vmatprep.subr.mxu0 0.0
  %94 = vmatpush1.msra.mxu0 %v29
  %95 = vmatprep.subr.mxu0 0.0
  %96 = vmatpush1.msra.mxu0 %v30
  %97 = vmatprep.subr.mxu0 0.0
  %98 = vmatpush1.msra.mxu0 %v31
  %99 = vmatprep.subr.mxu0 0.0
  %100 = vmatpush1.msra.mxu0 %v32
  %101 = vmatprep.subr.mxu0 0.0
  %102 = vmatpush1.msra.mxu0 %v33
  %103 = vmatprep.subr.mxu0 0.0
  %104 = vmatpush1.msra.mxu0 %v34
  %105 = vmatprep.subr.mxu0 0.0
  %106 = vmatpush1.msra.mxu0 %v35
  %107 = vmatprep.subr.mxu0 0.0
  %108 = vmatpush1.msra.mxu0 %v36
  %109 = vmatprep.subr.mxu0 0.0
  %110 = vmatpush1.msra.mxu0 %v37
  %111 = vmatprep.subr.mxu0 0.0
  %112 = vmatpush1.msra.mxu0 %v38
  %113 = vmatprep.subr.mxu0 0.0
  %114 = vmatpush1.msra.mxu0 %v39
  %115 = vmatprep.subr.mxu0 0.0
  %116 = vmatpush1.msra.mxu0 %v40
  %117 = vmatprep.subr.mxu0 0.0
  %118 = vmatpush1.msra.mxu0 %v41
  %119 = vmatprep.subr.mxu0 0.0
  %120 = vmatpush1.msra.mxu0 %v42
  %121 = vmatprep.subr.mxu0 0.0
  %122 = vmatpush1.msra.mxu0 %v43
  %123 = vmatprep.subr.mxu0 0.0
  %124 = vmatpush1.msra.mxu0 %v44
  %125 = vmatprep.subr.mxu0 0.0
  %126 = vmatpush1.msra.mxu0 %v45
  %127 = vmatprep.subr.mxu0 0.0
  %128 = vmatpush1.msra.mxu0 %v46
  %129 = vmatprep.subr.mxu0 0.0
  %130 = vmatpush1.msra.mxu0 %v47
  %131 = vmatprep.subr.mxu0 0.0
  %132 = vmatpush1.msra.mxu0 %v48
  %133 = vmatprep.subr.mxu0 0.0
  %134 = vmatpush1.msra.mxu0 %v49
  %135 = vmatprep.subr.mxu0 0.0
  %136 = vmatpush1.msra.mxu0 %v50
  %137 = vmatprep.subr.mxu0 0.0
  %138 = vmatpush1.msra.mxu0 %v51
  %139 = vmatprep.mubr.f32.mxu0 %v18
  %140 = vmatmul.mubr.f32.gmra.mrb[0].mxu0 %v17
  %v141 = vpop.f32.mrb[0].mxu0
  %v142 = vadd.f32 %v73, %v141
  %v143 = vpop.f32.mrb[0].mxu0
  %144 = vdwg.mxu0
  %145 = vmatprep.subr.mxu0 0.0
  %146 = vmatpush1.msra.mxu0 %v52
  %147 = vmatprep.subr.mxu0 0.0
  %148 = vmatpush1.msra.mxu0 %v53
  %149 = vmatprep.subr.mxu0 0.0
  %150 = vmatpush1.msra.mxu0 %v54
  %151 = vmatprep.subr.mxu0 0.0
  %152 = vmatpush1.msra.mxu0 %v55
  %153 = vmatprep.subr.mxu0 0.0
  %154 = vmatpush1.msra.mxu0 %v56
  %155 = vmatprep.subr.mxu0 0.0
  %156 = vmatpush1.msra.mxu0 %v57
  %157 = vmatprep.subr.mxu0 0.0
  %158 = vmatpush1.msra.mxu0 %v58
  %159 = vmatprep.subr.mxu0 0.0
  %160 = vmatpush1.msra.mxu0 %v59
  %161 = vmatprep.subr.mxu0 0.0
  %162 = vmatpush1.msra.mxu0 %v60
  %163 = vmatprep.subr.mxu0 0.0
  %164 = vmatpush1.msra.mxu0 %v61
  %165 = vmatprep.subr.mxu0 0.0
  %166 = vmatpush1.msra.mxu0 %v62
  %167 = vmatprep.subr.mxu0 0.0
  %168 = vmatpush1.msra.mxu0 %v63
  %169 = vmatprep.subr.mxu0 0.0
  %170 = vmatpush1.msra.mxu0 %v64
  %171 = vmatprep.subr.mxu0 0.0
  %172 = vmatpush1.msra.mxu0 %v65
  %173 = vmatprep.subr.mxu0 0.0
  %174 = vmatpush1.msra.mxu0 %v66
  %175 = vmatprep.subr.mxu0 0.0
  %176 = vmatpush1.msra.mxu0 %v67
  %177 = vmatprep.subr.mxu0 0.0
  %178 = vmatpush1.msra.mxu0 0.0
  %179 = vmatprep.subr.mxu0 0.0
  %180 = vmatpush1.msra.mxu0 0.0
  %181 = vmatprep.subr.mxu0 0.0
  %182 = vmatpush1.msra.mxu0 0.0
  %183 = vmatprep.subr.mxu0 0.0
  %184 = vmatpush1.msra.mxu0 0.0
  %185 = vmatprep.subr.mxu0 0.0
  %186 = vmatpush1.msra.mxu0 0.0
  %187 = vmatprep.subr.mxu0 0.0
  %188 = vmatpush1.msra.mxu0 0.0
  %189 = vmatprep.subr.mxu0 0.0
  %190 = vmatpush1.msra.mxu0 0.0
  %191 = vmatprep.subr.mxu0 0.0
  %192 = vmatpush1.msra.mxu0 0.0
  %193 = vmatprep.subr.mxu0 0.0
  %194 = vmatpush1.msra.mxu0 0.0
  %195 = vmatprep.subr.mxu0 0.0
  %196 = vmatpush1.msra.mxu0 0.0
  %197 = vmatprep.subr.mxu0 0.0
  %198 = vmatpush1.msra.mxu0 0.0
  %199 = vmatprep.subr.mxu0 0.0
  %200 = vmatpush1.msra.mxu0 0.0
  %201 = vmatprep.subr.mxu0 0.0
  %202 = vmatpush1.msra.mxu0 0.0
  %203 = vmatprep.subr.mxu0 0.0
  %204 = vmatpush1.msra.mxu0 0.0
  %205 = vmatprep.subr.mxu0 0.0
  %206 = vmatpush1.msra.mxu0 0.0
  %207 = vmatprep.subr.mxu0 0.0
  %208 = vmatpush1.msra.mxu0 0.0
  %209 = vmatprep.mubr.f32.mxu0 0.0
  %210 = vmatmul.mubr.f32.gmra.mrb[0].mxu0 %v19
  %v211 = vpop.f32.mrb[0].mxu0
  %v212 = vadd.f32 %v142, %v211
  %v213 = vpop.f32.mrb[0].mxu0
  %214 = vdwg.mxu0
  %vm215 = vcmp.ge.f32.partialorder %v212, 0.0
  %v216 = vmul.f32 %v212, 0.2
  %v217 = vsel %vm215, %v212, %v216
  %v218 = vld [vmem:[%s3] sm:$0xff]
  %v219 = vadd.f32 %v218, %v217
  %220 = vst [vmem:[%s4] sm:$0xff] %v219
  // Predicated region
  $region18: #{conv_down_sample_forward.14} parent=0 // pred_check
    _
  $region19: #{conv_down_sample_forward.14} parent=0 // pred_check_branch
    %222 = sbr.rel (0) target = $region21
  $region20: #{conv_down_sample_forward.14} parent=0 // pred_region
    _
  $region21: #{conv_down_sample_forward.14} parent=0 // pred_fallthru
    _
  // Predicated region
  $region22: #{conv_down_sample_forward.14} parent=0 // pred_check
    _
  $region23: #{conv_down_sample_forward.14} parent=0 // pred_check_branch
    %224 = sbr.rel (0) target = $region25
  $region24: #{conv_down_sample_forward.14} parent=0 // pred_region
    _
  $region25: #{conv_down_sample_forward.14} parent=0 // pred_fallthru
    _

// kernel: conv_down_sample_forward.15
$region0: #{conv_down_sample_forward.15}
  #allocation0 [shape = 'u32[]', space=smem, size = 0x4, offset = 0x4, fixed_abs, tag = 'smem constant byte address 0x4 - core index']
  #allocation1 [shape = 'u32[144,128]{1,0:T(1,128)}', space=vmem, size = 0x12000, scoped, tag = 'internal scratch']
  %s0 = inlined_call_operand.vmem [shape: f32[8,384], index: 0, kind: input, shape index: {}]
  %s1 = inlined_call_operand.vmem [shape: f32[384,128], index: 1, kind: input, shape index: {}]
  %s2 = inlined_call_operand.vmem [shape: f32[1,128], index: 2, kind: input, shape index: {}]
  %s3 = inlined_call_operand.hbm [shape: f32[8,128], index: 3, kind: output, shape index: {}]
  %s4 = sld [smem:[#allocation0]]
  $region22: #{conv_down_sample_forward.15} parent=0
    _
  %s6 = ssub.s32 1, %s4
  %s7 = scalar_select 0, %s6, %s4
  $region1: #{conv_down_sample_forward.15} parent=0
    #allocation2 [shape = 'u8[4096]{0}', space=vmem, size = 0x1000, scoped, tag = 'output window, operand 0, single buffered']
    #allocation3 [shape = 's32[1]{0}', space=sflag, size = 0x4, scoped, tag = 'scoped memory for conv_down_sample_forward.15']
    %8 = vsyncpa [#allocation3], 0
    // Predicated region
    $region2: #{conv_down_sample_forward.15} parent=1 // pred_check
      _
    $region3: #{conv_down_sample_forward.15} parent=1 // pred_check_branch
      %10 = sbr.rel (0) target = $region5
    $region4: #{conv_down_sample_forward.15} parent=1 // pred_region
      _
    $region5: #{conv_down_sample_forward.15} parent=1 // pred_fallthru
      _
    // Predicated region
    $region6: #{conv_down_sample_forward.15} parent=1 // pred_check
      _
    $region7: #{conv_down_sample_forward.15} parent=1 // pred_check_branch
      %12 = sbr.rel (0) target = $region9
    $region8: #{conv_down_sample_forward.15} parent=1 // pred_region
      _
    $region9: #{conv_down_sample_forward.15} parent=1 // pred_fallthru
      _
    // Predicated region
    $region10: #{conv_down_sample_forward.15} parent=1 // pred_check
      _
    $region11: #{conv_down_sample_forward.15} parent=1 // pred_check_branch
      %14 = sbr.rel (0) target = $region13
    $region12: #{conv_down_sample_forward.15} parent=1 // pred_region
      _
    $region13: #{conv_down_sample_forward.15} parent=1 // pred_fallthru
      _
    %v15 = vld [vmem:[%s0] sm:$0xff]
    %v16 = vld [vmem:[%s0 + $0x8] sm:$0xff]
    %v17 = vld [vmem:[%s0 + $0x10] sm:$0xff]
    %v18 = vld [vmem:[%s1] sm:$0xff]
    %v19 = vld [vmem:[%s1 + $0x8] sm:$0xff]
    %v20 = vld [vmem:[%s1 + $0x10] sm:$0xff]
    %v21 = vld [vmem:[%s1 + $0x18] sm:$0xff]
    %v22 = vld [vmem:[%s1 + $0x20] sm:$0xff]
    %v23 = vld [vmem:[%s1 + $0x28] sm:$0xff]
    %v24 = vld [vmem:[%s1 + $0x30] sm:$0xff]
    %v25 = vld [vmem:[%s1 + $0x38] sm:$0xff]
    %v26 = vld [vmem:[%s1 + $0x40] sm:$0xff]
    %v27 = vld [vmem:[%s1 + $0x48] sm:$0xff]
    %v28 = vld [vmem:[%s1 + $0x50] sm:$0xff]
    %v29 = vld [vmem:[%s1 + $0x58] sm:$0xff]
    %v30 = vld [vmem:[%s1 + $0x60] sm:$0xff]
    %v31 = vld [vmem:[%s1 + $0x68] sm:$0xff]
    %v32 = vld [vmem:[%s1 + $0x70] sm:$0xff]
    %v33 = vld [vmem:[%s1 + $0x78] sm:$0xff]
    %v34 = vld [vmem:[%s1 + $0x80] sm:$0xff]
    %v35 = vld [vmem:[%s1 + $0x88] sm:$0xff]
    %v36 = vld [vmem:[%s1 + $0x90] sm:$0xff]
    %v37 = vld [vmem:[%s1 + $0x98] sm:$0xff]
    %v38 = vld [vmem:[%s1 + $0xa0] sm:$0xff]
    %v39 = vld [vmem:[%s1 + $0xa8] sm:$0xff]
    %v40 = vld [vmem:[%s1 + $0xb0] sm:$0xff]
    %v41 = vld [vmem:[%s1 + $0xb8] sm:$0xff]
    %v42 = vld [vmem:[%s1 + $0xc0] sm:$0xff]
    %v43 = vld [vmem:[%s1 + $0xc8] sm:$0xff]
    %v44 = vld [vmem:[%s1 + $0xd0] sm:$0xff]
    %v45 = vld [vmem:[%s1 + $0xd8] sm:$0xff]
    %v46 = vld [vmem:[%s1 + $0xe0] sm:$0xff]
    %v47 = vld [vmem:[%s1 + $0xe8] sm:$0xff]
    %v48 = vld [vmem:[%s1 + $0xf0] sm:$0xff]
    %v49 = vld [vmem:[%s1 + $0xf8] sm:$0xff]
    %v50 = vld [vmem:[%s1 + $0x100] sm:$0xff]
    %v51 = vld [vmem:[%s1 + $0x108] sm:$0xff]
    %v52 = vld [vmem:[%s1 + $0x110] sm:$0xff]
    %v53 = vld [vmem:[%s1 + $0x118] sm:$0xff]
    %v54 = vld [vmem:[%s1 + $0x120] sm:$0xff]
    %v55 = vld [vmem:[%s1 + $0x128] sm:$0xff]
    %v56 = vld [vmem:[%s1 + $0x130] sm:$0xff]
    %v57 = vld [vmem:[%s1 + $0x138] sm:$0xff]
    %v58 = vld [vmem:[%s1 + $0x140] sm:$0xff]
    %v59 = vld [vmem:[%s1 + $0x148] sm:$0xff]
    %v60 = vld [vmem:[%s1 + $0x150] sm:$0xff]
    %v61 = vld [vmem:[%s1 + $0x158] sm:$0xff]
    %v62 = vld [vmem:[%s1 + $0x160] sm:$0xff]
    %v63 = vld [vmem:[%s1 + $0x168] sm:$0xff]
    %v64 = vld [vmem:[%s1 + $0x170] sm:$0xff]
    %v65 = vld [vmem:[%s1 + $0x178] sm:$0xff]
    %v66 = vld [vmem:[%s2] sm:$0x1]
    %v68 = vlaneseq
    %v69 = vshrl.u32 %v68, 7
    %v70 = vsub.s32 0, %v69
    %v71 = vrot.slane %v66, %v70
    %73 = vmatprep.subr.mxu0 0.0
    %74 = vmatpush1.msra.mxu0 %v18
    %75 = vmatprep.subr.mxu0 0.0
    %76 = vmatpush1.msra.mxu0 %v19
    %77 = vmatprep.subr.mxu0 0.0
    %78 = vmatpush1.msra.mxu0 %v20
    %79 = vmatprep.subr.mxu0 0.0
    %80 = vmatpush1.msra.mxu0 %v21
    %81 = vmatprep.subr.mxu0 0.0
    %82 = vmatpush1.msra.mxu0 %v22
    %83 = vmatprep.subr.mxu0 0.0
    %84 = vmatpush1.msra.mxu0 %v23
    %85 = vmatprep.subr.mxu0 0.0
    %86 = vmatpush1.msra.mxu0 %v24
    %87 = vmatprep.subr.mxu0 0.0
    %88 = vmatpush1.msra.mxu0 %v25
    %89 = vmatprep.subr.mxu0 0.0
    %90 = vmatpush1.msra.mxu0 %v26
    %91 = vmatprep.subr.mxu0 0.0
    %92 = vmatpush1.msra.mxu0 %v27
    %93 = vmatprep.subr.mxu0 0.0
    %94 = vmatpush1.msra.mxu0 %v28
    %95 = vmatprep.subr.mxu0 0.0
    %96 = vmatpush1.msra.mxu0 %v29
    %97 = vmatprep.subr.mxu0 0.0
    %98 = vmatpush1.msra.mxu0 %v30
    %99 = vmatprep.subr.mxu0 0.0
    %100 = vmatpush1.msra.mxu0 %v31
    %101 = vmatprep.subr.mxu0 0.0
    %102 = vmatpush1.msra.mxu0 %v32
    %103 = vmatprep.subr.mxu0 0.0
    %104 = vmatpush1.msra.mxu0 %v33
    %105 = vmatprep.subr.mxu0 0.0
    %106 = vmatpush1.msra.mxu0 %v34
    %107 = vmatprep.subr.mxu0 0.0
    %108 = vmatpush1.msra.mxu0 %v35
    %109 = vmatprep.subr.mxu0 0.0
    %110 = vmatpush1.msra.mxu0 %v36
    %111 = vmatprep.subr.mxu0 0.0
    %112 = vmatpush1.msra.mxu0 %v37
    %113 = vmatprep.subr.mxu0 0.0
    %114 = vmatpush1.msra.mxu0 %v38
    %115 = vmatprep.subr.mxu0 0.0
    %116 = vmatpush1.msra.mxu0 %v39
    %117 = vmatprep.subr.mxu0 0.0
    %118 = vmatpush1.msra.mxu0 %v40
    %119 = vmatprep.subr.mxu0 0.0
    %120 = vmatpush1.msra.mxu0 %v41
    %121 = vmatprep.subr.mxu0 0.0
    %122 = vmatpush1.msra.mxu0 %v42
    %123 = vmatprep.subr.mxu0 0.0
    %124 = vmatpush1.msra.mxu0 %v43
    %125 = vmatprep.subr.mxu0 0.0
    %126 = vmatpush1.msra.mxu0 %v44
    %127 = vmatprep.subr.mxu0 0.0
    %128 = vmatpush1.msra.mxu0 %v45
    %129 = vmatprep.subr.mxu0 0.0
    %130 = vmatpush1.msra.mxu0 %v46
    %131 = vmatprep.subr.mxu0 0.0
    %132 = vmatpush1.msra.mxu0 %v47
    %133 = vmatprep.subr.mxu0 0.0
    %134 = vmatpush1.msra.mxu0 %v48
    %135 = vmatprep.subr.mxu0 0.0
    %136 = vmatpush1.msra.mxu0 %v49
    %137 = vmatprep.mubr.f32.mxu0 %v16
    %138 = vmatmul.mubr.f32.gmra.mrb[0].mxu0 %v15
    %v139 = vpop.f32.mrb[0].mxu0
    %v140 = vadd.f32 %v71, %v139
    %v141 = vpop.f32.mrb[0].mxu0
    %142 = vdwg.mxu0
    %143 = vmatprep.subr.mxu0 0.0
    %144 = vmatpush1.msra.mxu0 %v50
    %145 = vmatprep.subr.mxu0 0.0
    %146 = vmatpush1.msra.mxu0 %v51
    %147 = vmatprep.subr.mxu0 0.0
    %148 = vmatpush1.msra.mxu0 %v52
    %149 = vmatprep.subr.mxu0 0.0
    %150 = vmatpush1.msra.mxu0 %v53
    %151 = vmatprep.subr.mxu0 0.0
    %152 = vmatpush1.msra.mxu0 %v54
    %153 = vmatprep.subr.mxu0 0.0
    %154 = vmatpush1.msra.mxu0 %v55
    %155 = vmatprep.subr.mxu0 0.0
    %156 = vmatpush1.msra.mxu0 %v56
    %157 = vmatprep.subr.mxu0 0.0
    %158 = vmatpush1.msra.mxu0 %v57
    %159 = vmatprep.subr.mxu0 0.0
    %160 = vmatpush1.msra.mxu0 %v58
    %161 = vmatprep.subr.mxu0 0.0
    %162 = vmatpush1.msra.mxu0 %v59
    %163 = vmatprep.subr.mxu0 0.0
    %164 = vmatpush1.msra.mxu0 %v60
    %165 = vmatprep.subr.mxu0 0.0
    %166 = vmatpush1.msra.mxu0 %v61
    %167 = vmatprep.subr.mxu0 0.0
    %168 = vmatpush1.msra.mxu0 %v62
    %169 = vmatprep.subr.mxu0 0.0
    %170 = vmatpush1.msra.mxu0 %v63
    %171 = vmatprep.subr.mxu0 0.0
    %172 = vmatpush1.msra.mxu0 %v64
    %173 = vmatprep.subr.mxu0 0.0
    %174 = vmatpush1.msra.mxu0 %v65
    %175 = vmatprep.subr.mxu0 0.0
    %176 = vmatpush1.msra.mxu0 0.0
    %177 = vmatprep.subr.mxu0 0.0
    %178 = vmatpush1.msra.mxu0 0.0
    %179 = vmatprep.subr.mxu0 0.0
    %180 = vmatpush1.msra.mxu0 0.0
    %181 = vmatprep.subr.mxu0 0.0
    %182 = vmatpush1.msra.mxu0 0.0
    %183 = vmatprep.subr.mxu0 0.0
    %184 = vmatpush1.msra.mxu0 0.0
    %185 = vmatprep.subr.mxu0 0.0
    %186 = vmatpush1.msra.mxu0 0.0
    %187 = vmatprep.subr.mxu0 0.0
    %188 = vmatpush1.msra.mxu0 0.0
    %189 = vmatprep.subr.mxu0 0.0
    %190 = vmatpush1.msra.mxu0 0.0
    %191 = vmatprep.subr.mxu0 0.0
    %192 = vmatpush1.msra.mxu0 0.0
    %193 = vmatprep.subr.mxu0 0.0
    %194 = vmatpush1.msra.mxu0 0.0
    %195 = vmatprep.subr.mxu0 0.0
    %196 = vmatpush1.msra.mxu0 0.0
    %197 = vmatprep.subr.mxu0 0.0
    %198 = vmatpush1.msra.mxu0 0.0
    %199 = vmatprep.subr.mxu0 0.0
    %200 = vmatpush1.msra.mxu0 0.0
    %201 = vmatprep.subr.mxu0 0.0
    %202 = vmatpush1.msra.mxu0 0.0
    %203 = vmatprep.subr.mxu0 0.0
    %204 = vmatpush1.msra.mxu0 0.0
    %205 = vmatprep.subr.mxu0 0.0
    %206 = vmatpush1.msra.mxu0 0.0
    %207 = vmatprep.mubr.f32.mxu0 0.0
    %208 = vmatmul.mubr.f32.gmra.mrb[0].mxu0 %v17
    %v209 = vpop.f32.mrb[0].mxu0
    %v210 = vadd.f32 %v140, %v209
    %v211 = vpop.f32.mrb[0].mxu0
    %212 = vdwg.mxu0
    %213 = vst [vmem:[#allocation2] sm:$0xff] %v210
    // Predicated region
    $region14: #{conv_down_sample_forward.15} parent=1 // pred_check
      _
    $region15: #{conv_down_sample_forward.15} parent=1 // pred_check_branch
      %215 = sbr.rel (0) target = $region17
    $region16: #{conv_down_sample_forward.15} parent=1 // pred_region
      %s217 = ssub.s32 128, 128
      %218 = vsyncadd [#allocation3], %s217
      %s220 = sshll.u32 [#allocation2], 4
      %s221 = int_to_ptr.vmem [resolvable:$true] %s220
      %223 = dma.vmem_to_hbm [thread:$0]  %s221, 128, %s3, [#allocation3]
    $region17: #{conv_down_sample_forward.15} parent=1 // pred_fallthru
      _
    // Predicated region
    $region18: #{conv_down_sample_forward.15} parent=1 // pred_check
      _
    $region19: #{conv_down_sample_forward.15} parent=1 // pred_check_branch
      %225 = sbr.rel (0) target = $region21
    $region20: #{conv_down_sample_forward.15} parent=1 // pred_region
      %226 = dma.done [#allocation3], 128
    $region21: #{conv_down_sample_forward.15} parent=1 // pred_fallthru
      _
    %227 = vsyncpa [#allocation3], 1

</llo_original>
